<compile_context>
chip_gen: v5e
topology: v5e:2x2
jax: 0.10.0
libtpu: 0.0.40
codegen_flags: <defaults>
</compile_context>

<pallas_src>
import functools

import jax
import jax.numpy as jnp
from jax.experimental import pallas as pl
from jax.experimental.pallas import tpu as pltpu


def _vmem_spec():
    return pl.BlockSpec(memory_space=pltpu.MemorySpace.VMEM)


# ----------------------------------------------------------------------------
# Kernel 1: whole bidirectional encoder LSTM stack in ONE pallas_call.
#   x_ref        : (T*Bp, E) f32  -- embeddings, flattened over (T, Bp)
#   per layer    : w_ih (Din, 8H), w_hh (H, 8H), b (1, 8H)   [fwd 4H | bwd 4H]
#                  gate order inside each 4H block: [i, f, o, g]
#   hcat_ref out : (Bp, 2H) f32   -- cat(final fwd hidden, final bwd hidden)
#   scratch      : gx (T*Bp, 8H), xbuf (T*Bp, 2H) inter-layer activations
# ----------------------------------------------------------------------------
def _enc_bilstm_kernel(x_ref, *refs, nlayers, T, H):
    n = 3 * nlayers
    w_refs = refs[:n]
    hcat_ref = refs[n]
    gx_ref = refs[n + 1]
    xbuf_ref = refs[n + 2]
    Bp = hcat_ref.shape[0]
    H3, H4 = 3 * H, 4 * H

    h_f = c_f = h_b = c_b = jnp.zeros((Bp, H), jnp.float32)
    for l in range(nlayers):
        w_ih = w_refs[3 * l][...]          # (Din, 8H)
        w_hh = w_refs[3 * l + 1][...]      # (H,   8H)
        b = w_refs[3 * l + 2][...]         # (1,   8H)
        xin = x_ref[...] if l == 0 else xbuf_ref[...]
        # Fused input projection: all timesteps, BOTH directions, one matmul.
        gx_ref[...] = jnp.dot(xin, w_ih, preferred_element_type=jnp.float32) + b
        w_hh_f = w_hh[:, :H4]
        w_hh_b = w_hh[:, H4:]
        h_f = c_f = h_b = c_b = jnp.zeros((Bp, H), jnp.float32)
        for s in range(T):                 # static indices, fully unrolled
            tf, tb = s, T - 1 - s
            g_f = gx_ref[pl.ds(tf * Bp, Bp), pl.ds(0, H4)] + jnp.dot(
                h_f, w_hh_f, preferred_element_type=jnp.float32)
            g_b = gx_ref[pl.ds(tb * Bp, Bp), pl.ds(H4, H4)] + jnp.dot(
                h_b, w_hh_b, preferred_element_type=jnp.float32)
            # gate order [i, f, o, g]: sigmoid over 3H, tanh over H.
            s_f = jax.nn.sigmoid(g_f[:, :H3])
            s_b = jax.nn.sigmoid(g_b[:, :H3])
            gg_f = jnp.tanh(g_f[:, H3:])
            gg_b = jnp.tanh(g_b[:, H3:])
            c_f = s_f[:, H:2 * H] * c_f + s_f[:, :H] * gg_f
            h_f = s_f[:, 2 * H:] * jnp.tanh(c_f)
            c_b = s_b[:, H:2 * H] * c_b + s_b[:, :H] * gg_b
            h_b = s_b[:, 2 * H:] * jnp.tanh(c_b)
            xbuf_ref[pl.ds(tf * Bp, Bp), pl.ds(0, H)] = h_f
            xbuf_ref[pl.ds(tb * Bp, Bp), pl.ds(H, H)] = h_b
        # TODO(synk): inter-layer dropout (eval-mode identity here).
    hcat_ref[:, pl.ds(0, H)] = h_f      # == h_n[-2]  (last layer, forward)
    hcat_ref[:, pl.ds(H, H)] = h_b      # == h_n[-1]  (last layer, backward)


def bilstm_encode(x_flat, layers, *, T, H, Bp):
    nlayers = len(layers)
    ws = []
    for lp in layers:
        ws += [lp["w_ih"], lp["w_hh"], lp["b"]]
    kernel = functools.partial(_enc_bilstm_kernel, nlayers=nlayers, T=T, H=H)
    return pl.pallas_call(
        kernel,
        out_shape=jax.ShapeDtypeStruct((Bp, 2 * H), jnp.float32),
        in_specs=[_vmem_spec()] * (1 + 3 * nlayers),
        out_specs=_vmem_spec(),
        scratch_shapes=[pltpu.VMEM((T * Bp, 8 * H), jnp.float32),
                        pltpu.VMEM((T * Bp, 2 * H), jnp.float32)],
        compiler_params=pltpu.CompilerParams(
            vmem_limit_bytes=32 * 1024 * 1024),
    )(x_flat, *ws)


# ----------------------------------------------------------------------------
# Kernel 2: whole unidirectional decoder LSTM stack in ONE pallas_call.
#   x_ref      : (T*Bp, E) f32
#   per layer  : w_ih (Din, 4H), w_hh (H, 4H), b (1, 4H)  gate order [i,f,o,g]
#   out_ref    : (T*Bp, H) f32  last-layer hidden sequence; also reused as the
#                inter-layer activation buffer (gx is fully materialized into
#                scratch before out_ref is overwritten).
#   scratch    : gx (T*Bp, 4H)
# ----------------------------------------------------------------------------
def _dec_lstm_kernel(x_ref, *refs, nlayers, T, H):
    n = 3 * nlayers
    w_refs = refs[:n]
    out_ref = refs[n]
    gx_ref = refs[n + 1]
    Bp = out_ref.shape[0] // T
    H3, H4 = 3 * H, 4 * H

    for l in range(nlayers):
        w_ih = w_refs[3 * l][...]
        w_hh = w_refs[3 * l + 1][...]
        b = w_refs[3 * l + 2][...]
        xin = x_ref[...] if l == 0 else out_ref[...]
        gx_ref[...] = jnp.dot(xin, w_ih, preferred_element_type=jnp.float32) + b
        h = c = jnp.zeros((Bp, H), jnp.float32)
        for s in range(T):                 # static indices, fully unrolled
            g = gx_ref[pl.ds(s * Bp, Bp), :] + jnp.dot(
                h, w_hh, preferred_element_type=jnp.float32)
            sg = jax.nn.sigmoid(g[:, :H3])
            gg = jnp.tanh(g[:, H3:])
            c = sg[:, H:2 * H] * c + sg[:, :H] * gg
            h = sg[:, 2 * H:] * jnp.tanh(c)
            out_ref[pl.ds(s * Bp, Bp), :] = h
        # TODO(synk): inter-layer dropout (eval-mode identity here).


def lstm_decode(x_flat, layers, *, T, H, Bp):
    nlayers = len(layers)
    ws = []
    for lp in layers:
        ws += [lp["w_ih"], lp["w_hh"], lp["b"]]
    kernel = functools.partial(_dec_lstm_kernel, nlayers=nlayers, T=T, H=H)
    out = pl.pallas_call(
        kernel,
        out_shape=jax.ShapeDtypeStruct((T * Bp, H), jnp.float32),
        in_specs=[_vmem_spec()] * (1 + 3 * nlayers),
        out_specs=_vmem_spec(),
        scratch_shapes=[pltpu.VMEM((T * Bp, 4 * H), jnp.float32)],
        compiler_params=pltpu.CompilerParams(
            vmem_limit_bytes=32 * 1024 * 1024),
    )(x_flat, *ws)
    return out.reshape(T, Bp, H)


# ----------------------------------------------------------------------------
# Glue (plain JAX): embedding lookup + small head linears (left to XLA fusion
# per review -- launch overhead would exceed their compute).
# ----------------------------------------------------------------------------
def _linear(x, w, b):
    # PyTorch nn.Linear layout: w (out, in), b (out,)
    return jnp.dot(x, w.T) + b


def dae_forward(token_ids, eps, params):
    """DAE.forward(input, args, is_train=False) -> (mu, logvar, z, logits)."""
    T, B = token_ids.shape
    H = params["E"][0]["w_hh"].shape[0]
    Bp = max(8, ((B + 7) // 8) * 8)                  # fill f32 sublanes
    ids = jnp.pad(token_ids, ((0, 0), (0, Bp - B)))
    emb = params["embed"][ids]                        # (T, Bp, E)
    E_dim = emb.shape[-1]
    # ---- encode (dropout = identity in eval mode) ----
    h = bilstm_encode(emb.reshape(T * Bp, E_dim), params["E"],
                      T=T, H=H, Bp=Bp)[:B]            # (B, 2H)
    mu = _linear(h, params["h2mu_w"], params["h2mu_b"])
    logvar = _linear(h, params["h2logvar_w"], params["h2logvar_b"])
    # ---- reparameterize ----
    z = mu + eps * jnp.exp(0.5 * logvar)
    # ---- decode ----
    z_p = jnp.pad(z, ((0, Bp - B), (0, 0)))
    dec_in = emb + _linear(z_p, params["z2emb_w"], params["z2emb_b"])[None]
    out = lstm_decode(dec_in.reshape(T * Bp, E_dim), params["G"],
                      T=T, H=H, Bp=Bp)                # (T, Bp, H)
    logits = _linear(out, params["proj_w"], params["proj_b"])
    return mu, logvar, z, logits[:, :B]


# ----------------------------------------------------------------------------
# Deterministic parameter construction (kernel-friendly packed layouts).
# Gate order is [i, f, o, g] (a fixed relabeling of PyTorch's [i, f, g, o];
# real checkpoints would be permuted once at load time).
# ----------------------------------------------------------------------------
def init_params(key, vocab, dim_emb, dim_h, dim_z, nlayers):
    def u(k, shape, scale):
        return jax.random.uniform(k, shape, jnp.float32, -scale, scale)

    ks = iter(jax.random.split(key, 16 + 8 * nlayers))
    s_h = 1.0 / float(dim_h) ** 0.5
    s_2h = 1.0 / float(2 * dim_h) ** 0.5
    s_z = 1.0 / float(dim_z) ** 0.5
    p = {
        "embed": u(next(ks), (vocab, dim_emb), 0.1),
        "h2mu_w": u(next(ks), (dim_z, 2 * dim_h), s_2h),
        "h2mu_b": u(next(ks), (dim_z,), s_2h),
        "h2logvar_w": u(next(ks), (dim_z, 2 * dim_h), s_2h),
        "h2logvar_b": u(next(ks), (dim_z,), s_2h),
        "z2emb_w": u(next(ks), (dim_emb, dim_z), s_z),
        "z2emb_b": u(next(ks), (dim_emb,), s_z),
        "proj_w": u(next(ks), (vocab, dim_h), 0.1),
        "proj_b": jnp.zeros((vocab,), jnp.float32),
    }

    def lstm_stack(num_dir, din0):
        g = num_dir * 4 * dim_h          # packed gate width (both directions)
        layers = []
        for layer in range(nlayers):
            din = din0 if layer == 0 else num_dir * dim_h
            layers.append({
                "w_ih": u(next(ks), (din, g), s_h),
                "w_hh": u(next(ks), (dim_h, g), s_h),
                "b": (u(next(ks), (1, g), s_h) + u(next(ks), (1, g), s_h)),
            })
        return layers

    p["E"] = lstm_stack(2, dim_emb)      # bidirectional encoder
    p["G"] = lstm_stack(1, dim_emb)      # unidirectional decoder
    return p


# ----------------------------------------------------------------------------
# Pure-JAX f32 reference (lax.scan LSTM) for correctness checking.
# ----------------------------------------------------------------------------
def _lstm_ref(x, w_ih, w_hh, b, reverse=False):
    T, B, _ = x.shape
    H = w_hh.shape[0]
    gx = jnp.einsum("tbd,dg->tbg", x, w_ih) + b
    if reverse:
        gx = gx[::-1]

    def step(carry, g):
        h, c = carry
        gates = g + h @ w_hh                  # gate order [i, f, o, g]
        i = jax.nn.sigmoid(gates[:, :H])
        f = jax.nn.sigmoid(gates[:, H:2 * H])
        o = jax.nn.sigmoid(gates[:, 2 * H:3 * H])
        gg = jnp.tanh(gates[:, 3 * H:])
        c = f * c + i * gg
        h = o * jnp.tanh(c)
        return (h, c), h

    init = (jnp.zeros((B, H), jnp.float32), jnp.zeros((B, H), jnp.float32))
    _, hs = jax.lax.scan(step, init, gx)
    return hs[::-1] if reverse else hs


def dae_forward_ref(token_ids, eps, params):
    H4 = 4 * params["E"][0]["w_hh"].shape[0]
    emb = params["embed"][token_ids]
    x = emb
    h_cat = None
    for lp in params["E"]:
        f = _lstm_ref(x, lp["w_ih"][:, :H4], lp["w_hh"][:, :H4], lp["b"][:, :H4])
        bw = _lstm_ref(x, lp["w_ih"][:, H4:], lp["w_hh"][:, H4:], lp["b"][:, H4:],
                       reverse=True)
        x = jnp.concatenate([f, bw], axis=-1)
        h_cat = jnp.concatenate([f[-1], bw[0]], axis=-1)
    mu = _linear(h_cat, params["h2mu_w"], params["h2mu_b"])
    logvar = _linear(h_cat, params["h2logvar_w"], params["h2logvar_b"])
    z = mu + eps * jnp.exp(0.5 * logvar)
    x = emb + _linear(z, params["z2emb_w"], params["z2emb_b"])[None]
    for lp in params["G"]:
        x = _lstm_ref(x, lp["w_ih"], lp["w_hh"], lp["b"])
    logits = _linear(x, params["proj_w"], params["proj_b"])
    return mu, logvar, z, logits


if __name__ == "__main__":
    VOCAB, DIM_EMB, DIM_H, DIM_Z, NLAYERS = 50, 16, 32, 16, 2
    SEQ, BATCH = 8, 2

    key = jax.random.PRNGKey(0)
    k_param, k_ids, k_eps = jax.random.split(key, 3)
    params = init_params(k_param, VOCAB, DIM_EMB, DIM_H, DIM_Z, NLAYERS)
    token_ids = jax.random.randint(k_ids, (SEQ, BATCH), 0, VOCAB, dtype=jnp.int32)
    eps = jax.random.normal(k_eps, (BATCH, DIM_Z), jnp.float32)

    fwd = jax.jit(dae_forward)
    mu, logvar, z, logits = fwd(token_ids, eps, params)
    jax.block_until_ready(logits)

    assert mu.shape == (BATCH, DIM_Z)
    assert logvar.shape == (BATCH, DIM_Z)
    assert z.shape == (BATCH, DIM_Z)
    assert logits.shape == (SEQ, BATCH, VOCAB)
    assert bool(jnp.all(jnp.isfinite(logits)))

    # Cross-check against the pure-JAX f32 reference.
    mu_r, logvar_r, z_r, logits_r = dae_forward_ref(token_ids, eps, params)
    assert bool(jnp.allclose(mu, mu_r, atol=5e-2))
    assert bool(jnp.allclose(logvar, logvar_r, atol=5e-2))
    assert bool(jnp.allclose(z, z_r, atol=5e-2))
    assert bool(jnp.allclose(logits, logits_r, atol=5e-2))

    print("KERNEL_OK")
</pallas_src>

<mosaic_0001>
module attributes {stable_mosaic.version = 11 : i64} {
  func.func @_enc_bilstm_kernel(%arg0: memref<64x16xf32, #tpu.memory_space<vmem>>, %arg1: memref<16x256xf32, #tpu.memory_space<vmem>>, %arg2: memref<32x256xf32, #tpu.memory_space<vmem>>, %arg3: memref<1x256xf32, #tpu.memory_space<vmem>>, %arg4: memref<64x256xf32, #tpu.memory_space<vmem>>, %arg5: memref<32x256xf32, #tpu.memory_space<vmem>>, %arg6: memref<1x256xf32, #tpu.memory_space<vmem>>, %arg7: memref<8x64xf32, #tpu.memory_space<vmem>>, %arg8: memref<64x256xf32, #tpu.memory_space<vmem>>, %arg9: memref<64x64xf32, #tpu.memory_space<vmem>>) attributes {dimension_semantics = [], scalar_prefetch = 0 : i64, scratch_operands = 2 : i64, tpu.core_type = #tpu.core_type<tc>} {
    %c0 = arith.constant 0 : index
    %c0_0 = arith.constant 0 : index
    %0 = vector.load %arg1[%c0, %c0_0] : memref<16x256xf32, #tpu.memory_space<vmem>>, vector<16x256xf32>
    %c0_1 = arith.constant 0 : index
    %c0_2 = arith.constant 0 : index
    %1 = vector.load %arg2[%c0_1, %c0_2] : memref<32x256xf32, #tpu.memory_space<vmem>>, vector<32x256xf32>
    %c0_3 = arith.constant 0 : index
    %c0_4 = arith.constant 0 : index
    %2 = vector.load %arg3[%c0_3, %c0_4] : memref<1x256xf32, #tpu.memory_space<vmem>>, vector<1x256xf32>
    %c0_5 = arith.constant 0 : index
    %c0_6 = arith.constant 0 : index
    %3 = vector.load %arg0[%c0_5, %c0_6] : memref<64x16xf32, #tpu.memory_space<vmem>>, vector<64x16xf32>
    %cst = arith.constant dense<0.000000e+00> : vector<64x256xf32>
    %4 = tpu.matmul %3, %0, %cst {dimension_numbers = #tpu.dot_dimension_numbers<[1], [0], [0], [1], [0, 0, 1, 1], [], []>} : vector<64x16xf32>, vector<16x256xf32>, vector<64x256xf32> -> vector<64x256xf32>
    %5 = vector.broadcast %2 : vector<1x256xf32> to vector<64x256xf32>
    %6 = arith.addf %4, %5 : vector<64x256xf32>
    %c0_7 = arith.constant 0 : index
    %c0_8 = arith.constant 0 : index
    %7 = vector.load %arg8[%c0_7, %c0_8] : memref<64x256xf32, #tpu.memory_space<vmem>>, vector<64x256xf32>
    tpu.vector_store %arg8[%c0_7, %c0_8], %6 {strides = array<i32>} : memref<64x256xf32, #tpu.memory_space<vmem>>, vector<64x256xf32>,
    %8 = vector.extract_strided_slice %1 {offsets = [0, 0], sizes = [32, 128], strides = [1, 1]} : vector<32x256xf32> to vector<32x128xf32>
    %9 = vector.extract_strided_slice %1 {offsets = [0, 128], sizes = [32, 128], strides = [1, 1]} : vector<32x256xf32> to vector<32x128xf32>
    %cst_9 = arith.constant 0.000000e+00 : f32
    %10 = vector.broadcast %cst_9 : f32 to vector<8x32xf32>
    %c0_10 = arith.constant 0 : index
    %c0_11 = arith.constant 0 : index
    %11 = vector.load %arg8[%c0_10, %c0_11] : memref<64x256xf32, #tpu.memory_space<vmem>>, vector<8x128xf32>
    %cst_12 = arith.constant dense<0.000000e+00> : vector<8x128xf32>
    %12 = tpu.matmul %10, %8, %cst_12 {dimension_numbers = #tpu.dot_dimension_numbers<[1], [0], [0], [1], [0, 0, 1, 1], [], []>} : vector<8x32xf32>, vector<32x128xf32>, vector<8x128xf32> -> vector<8x128xf32>
    %13 = arith.addf %11, %12 : vector<8x128xf32>
    %c56 = arith.constant 56 : index
    %c128 = arith.constant 128 : index
    %14 = vector.load %arg8[%c56, %c128] : memref<64x256xf32, #tpu.memory_space<vmem>>, vector<8x128xf32>
    %cst_13 = arith.constant dense<0.000000e+00> : vector<8x128xf32>
    %15 = tpu.matmul %10, %9, %cst_13 {dimension_numbers = #tpu.dot_dimension_numbers<[1], [0], [0], [1], [0, 0, 1, 1], [], []>} : vector<8x32xf32>, vector<32x128xf32>, vector<8x128xf32> -> vector<8x128xf32>
    %16 = arith.addf %14, %15 : vector<8x128xf32>
    %17 = vector.extract_strided_slice %13 {offsets = [0, 0], sizes = [8, 96], strides = [1, 1]} : vector<8x128xf32> to vector<8x96xf32>
    %18 = arith.negf %17 : vector<8x96xf32>
    %19 = math.exp %18 : vector<8x96xf32>
    %cst_14 = arith.constant 1.000000e+00 : f32
    %20 = vector.broadcast %cst_14 : f32 to vector<8x96xf32>
    %21 = arith.addf %20, %19 : vector<8x96xf32>
    %22 = arith.divf %20, %21 : vector<8x96xf32>
    %23 = vector.extract_strided_slice %16 {offsets = [0, 0], sizes = [8, 96], strides = [1, 1]} : vector<8x128xf32> to vector<8x96xf32>
    %24 = arith.negf %23 : vector<8x96xf32>
    %25 = math.exp %24 : vector<8x96xf32>
    %cst_15 = arith.constant 1.000000e+00 : f32
    %26 = vector.broadcast %cst_15 : f32 to vector<8x96xf32>
    %27 = arith.addf %26, %25 : vector<8x96xf32>
    %28 = arith.divf %26, %27 : vector<8x96xf32>
    %29 = vector.extract_strided_slice %13 {offsets = [0, 96], sizes = [8, 32], strides = [1, 1]} : vector<8x128xf32> to vector<8x32xf32>
    %30 = math.tanh %29 : vector<8x32xf32>
    %31 = vector.extract_strided_slice %16 {offsets = [0, 96], sizes = [8, 32], strides = [1, 1]} : vector<8x128xf32> to vector<8x32xf32>
    %32 = math.tanh %31 : vector<8x32xf32>
    %33 = vector.extract_strided_slice %22 {offsets = [0, 32], sizes = [8, 32], strides = [1, 1]} : vector<8x96xf32> to vector<8x32xf32>
    %34 = arith.mulf %33, %10 : vector<8x32xf32>
    %35 = vector.extract_strided_slice %22 {offsets = [0, 0], sizes = [8, 32], strides = [1, 1]} : vector<8x96xf32> to vector<8x32xf32>
    %36 = arith.mulf %35, %30 : vector<8x32xf32>
    %37 = arith.addf %34, %36 : vector<8x32xf32>
    %38 = vector.extract_strided_slice %22 {offsets = [0, 64], sizes = [8, 32], strides = [1, 1]} : vector<8x96xf32> to vector<8x32xf32>
    %39 = math.tanh %37 : vector<8x32xf32>
    %40 = arith.mulf %38, %39 : vector<8x32xf32>
    %41 = vector.extract_strided_slice %28 {offsets = [0, 32], sizes = [8, 32], strides = [1, 1]} : vector<8x96xf32> to vector<8x32xf32>
    %42 = arith.mulf %41, %10 : vector<8x32xf32>
    %43 = vector.extract_strided_slice %28 {offsets = [0, 0], sizes = [8, 32], strides = [1, 1]} : vector<8x96xf32> to vector<8x32xf32>
    %44 = arith.mulf %43, %32 : vector<8x32xf32>
    %45 = arith.addf %42, %44 : vector<8x32xf32>
    %46 = vector.extract_strided_slice %28 {offsets = [0, 64], sizes = [8, 32], strides = [1, 1]} : vector<8x96xf32> to vector<8x32xf32>
    %47 = math.tanh %45 : vector<8x32xf32>
    %48 = arith.mulf %46, %47 : vector<8x32xf32>
    %c0_16 = arith.constant 0 : index
    %c0_17 = arith.constant 0 : index
    %49 = vector.load %arg9[%c0_16, %c0_17] : memref<64x64xf32, #tpu.memory_space<vmem>>, vector<8x32xf32>
    tpu.vector_store %arg9[%c0_16, %c0_17], %40 {strides = array<i32>} : memref<64x64xf32, #tpu.memory_space<vmem>>, vector<8x32xf32>,
    %c56_18 = arith.constant 56 : index
    %c32 = arith.constant 32 : index
    %50 = vector.load %arg9[%c56_18, %c32] : memref<64x64xf32, #tpu.memory_space<vmem>>, vector<8x32xf32>
    tpu.vector_store %arg9[%c56_18, %c32], %48 {strides = array<i32>} : memref<64x64xf32, #tpu.memory_space<vmem>>, vector<8x32xf32>,
    %c8 = arith.constant 8 : index
    %c0_19 = arith.constant 0 : index
    %51 = vector.load %arg8[%c8, %c0_19] : memref<64x256xf32, #tpu.memory_space<vmem>>, vector<8x128xf32>
    %cst_20 = arith.constant dense<0.000000e+00> : vector<8x128xf32>
    %52 = tpu.matmul %40, %8, %cst_20 {dimension_numbers = #tpu.dot_dimension_numbers<[1], [0], [0], [1], [0, 0, 1, 1], [], []>} : vector<8x32xf32>, vector<32x128xf32>, vector<8x128xf32> -> vector<8x128xf32>
    %53 = arith.addf %51, %52 : vector<8x128xf32>
    %c48 = arith.constant 48 : index
    %c128_21 = arith.constant 128 : index
    %54 = vector.load %arg8[%c48, %c128_21] : memref<64x256xf32, #tpu.memory_space<vmem>>, vector<8x128xf32>
    %cst_22 = arith.constant dense<0.000000e+00> : vector<8x128xf32>
    %55 = tpu.matmul %48, %9, %cst_22 {dimension_numbers = #tpu.dot_dimension_numbers<[1], [0], [0], [1], [0, 0, 1, 1], [], []>} : vector<8x32xf32>, vector<32x128xf32>, vector<8x128xf32> -> vector<8x128xf32>
    %56 = arith.addf %54, %55 : vector<8x128xf32>
    %57 = vector.extract_strided_slice %53 {offsets = [0, 0], sizes = [8, 96], strides = [1, 1]} : vector<8x128xf32> to vector<8x96xf32>
    %58 = arith.negf %57 : vector<8x96xf32>
    %59 = math.exp %58 : vector<8x96xf32>
    %cst_23 = arith.constant 1.000000e+00 : f32
    %60 = vector.broadcast %cst_23 : f32 to vector<8x96xf32>
    %61 = arith.addf %60, %59 : vector<8x96xf32>
    %62 = arith.divf %60, %61 : vector<8x96xf32>
    %63 = vector.extract_strided_slice %56 {offsets = [0, 0], sizes = [8, 96], strides = [1, 1]} : vector<8x128xf32> to vector<8x96xf32>
    %64 = arith.negf %63 : vector<8x96xf32>
    %65 = math.exp %64 : vector<8x96xf32>
    %cst_24 = arith.constant 1.000000e+00 : f32
    %66 = vector.broadcast %cst_24 : f32 to vector<8x96xf32>
    %67 = arith.addf %66, %65 : vector<8x96xf32>
    %68 = arith.divf %66, %67 : vector<8x96xf32>
    %69 = vector.extract_strided_slice %53 {offsets = [0, 96], sizes = [8, 32], strides = [1, 1]} : vector<8x128xf32> to vector<8x32xf32>
    %70 = math.tanh %69 : vector<8x32xf32>
    %71 = vector.extract_strided_slice %56 {offsets = [0, 96], sizes = [8, 32], strides = [1, 1]} : vector<8x128xf32> to vector<8x32xf32>
    %72 = math.tanh %71 : vector<8x32xf32>
    %73 = vector.extract_strided_slice %62 {offsets = [0, 32], sizes = [8, 32], strides = [1, 1]} : vector<8x96xf32> to vector<8x32xf32>
    %74 = arith.mulf %73, %37 : vector<8x32xf32>
    %75 = vector.extract_strided_slice %62 {offsets = [0, 0], sizes = [8, 32], strides = [1, 1]} : vector<8x96xf32> to vector<8x32xf32>
    %76 = arith.mulf %75, %70 : vector<8x32xf32>
    %77 = arith.addf %74, %76 : vector<8x32xf32>
    %78 = vector.extract_strided_slice %62 {offsets = [0, 64], sizes = [8, 32], strides = [1, 1]} : vector<8x96xf32> to vector<8x32xf32>
    %79 = math.tanh %77 : vector<8x32xf32>
    %80 = arith.mulf %78, %79 : vector<8x32xf32>
    %81 = vector.extract_strided_slice %68 {offsets = [0, 32], sizes = [8, 32], strides = [1, 1]} : vector<8x96xf32> to vector<8x32xf32>
    %82 = arith.mulf %81, %45 : vector<8x32xf32>
    %83 = vector.extract_strided_slice %68 {offsets = [0, 0], sizes = [8, 32], strides = [1, 1]} : vector<8x96xf32> to vector<8x32xf32>
    %84 = arith.mulf %83, %72 : vector<8x32xf32>
    %85 = arith.addf %82, %84 : vector<8x32xf32>
    %86 = vector.extract_strided_slice %68 {offsets = [0, 64], sizes = [8, 32], strides = [1, 1]} : vector<8x96xf32> to vector<8x32xf32>
    %87 = math.tanh %85 : vector<8x32xf32>
    %88 = arith.mulf %86, %87 : vector<8x32xf32>
    %c8_25 = arith.constant 8 : index
    %c0_26 = arith.constant 0 : index
    %89 = vector.load %arg9[%c8_25, %c0_26] : memref<64x64xf32, #tpu.memory_space<vmem>>, vector<8x32xf32>
    tpu.vector_store %arg9[%c8_25, %c0_26], %80 {strides = array<i32>} : memref<64x64xf32, #tpu.memory_space<vmem>>, vector<8x32xf32>,
    %c48_27 = arith.constant 48 : index
    %c32_28 = arith.constant 32 : index
    %90 = vector.load %arg9[%c48_27, %c32_28] : memref<64x64xf32, #tpu.memory_space<vmem>>, vector<8x32xf32>
    tpu.vector_store %arg9[%c48_27, %c32_28], %88 {strides = array<i32>} : memref<64x64xf32, #tpu.memory_space<vmem>>, vector<8x32xf32>,
    %c16 = arith.constant 16 : index
    %c0_29 = arith.constant 0 : index
    %91 = vector.load %arg8[%c16, %c0_29] : memref<64x256xf32, #tpu.memory_space<vmem>>, vector<8x128xf32>
    %cst_30 = arith.constant dense<0.000000e+00> : vector<8x128xf32>
    %92 = tpu.matmul %80, %8, %cst_30 {dimension_numbers = #tpu.dot_dimension_numbers<[1], [0], [0], [1], [0, 0, 1, 1], [], []>} : vector<8x32xf32>, vector<32x128xf32>, vector<8x128xf32> -> vector<8x128xf32>
    %93 = arith.addf %91, %92 : vector<8x128xf32>
    %c40 = arith.constant 40 : index
    %c128_31 = arith.constant 128 : index
    %94 = vector.load %arg8[%c40, %c128_31] : memref<64x256xf32, #tpu.memory_space<vmem>>, vector<8x128xf32>
    %cst_32 = arith.constant dense<0.000000e+00> : vector<8x128xf32>
    %95 = tpu.matmul %88, %9, %cst_32 {dimension_numbers = #tpu.dot_dimension_numbers<[1], [0], [0], [1], [0, 0, 1, 1], [], []>} : vector<8x32xf32>, vector<32x128xf32>, vector<8x128xf32> -> vector<8x128xf32>
    %96 = arith.addf %94, %95 : vector<8x128xf32>
    %97 = vector.extract_strided_slice %93 {offsets = [0, 0], sizes = [8, 96], strides = [1, 1]} : vector<8x128xf32> to vector<8x96xf32>
    %98 = arith.negf %97 : vector<8x96xf32>
    %99 = math.exp %98 : vector<8x96xf32>
    %cst_33 = arith.constant 1.000000e+00 : f32
    %100 = vector.broadcast %cst_33 : f32 to vector<8x96xf32>
    %101 = arith.addf %100, %99 : vector<8x96xf32>
    %102 = arith.divf %100, %101 : vector<8x96xf32>
    %103 = vector.extract_strided_slice %96 {offsets = [0, 0], sizes = [8, 96], strides = [1, 1]} : vector<8x128xf32> to vector<8x96xf32>
    %104 = arith.negf %103 : vector<8x96xf32>
    %105 = math.exp %104 : vector<8x96xf32>
    %cst_34 = arith.constant 1.000000e+00 : f32
    %106 = vector.broadcast %cst_34 : f32 to vector<8x96xf32>
    %107 = arith.addf %106, %105 : vector<8x96xf32>
    %108 = arith.divf %106, %107 : vector<8x96xf32>
    %109 = vector.extract_strided_slice %93 {offsets = [0, 96], sizes = [8, 32], strides = [1, 1]} : vector<8x128xf32> to vector<8x32xf32>
    %110 = math.tanh %109 : vector<8x32xf32>
    %111 = vector.extract_strided_slice %96 {offsets = [0, 96], sizes = [8, 32], strides = [1, 1]} : vector<8x128xf32> to vector<8x32xf32>
    %112 = math.tanh %111 : vector<8x32xf32>
    %113 = vector.extract_strided_slice %102 {offsets = [0, 32], sizes = [8, 32], strides = [1, 1]} : vector<8x96xf32> to vector<8x32xf32>
    %114 = arith.mulf %113, %77 : vector<8x32xf32>
    %115 = vector.extract_strided_slice %102 {offsets = [0, 0], sizes = [8, 32], strides = [1, 1]} : vector<8x96xf32> to vector<8x32xf32>
    %116 = arith.mulf %115, %110 : vector<8x32xf32>
    %117 = arith.addf %114, %116 : vector<8x32xf32>
    %118 = vector.extract_strided_slice %102 {offsets = [0, 64], sizes = [8, 32], strides = [1, 1]} : vector<8x96xf32> to vector<8x32xf32>
    %119 = math.tanh %117 : vector<8x32xf32>
    %120 = arith.mulf %118, %119 : vector<8x32xf32>
    %121 = vector.extract_strided_slice %108 {offsets = [0, 32], sizes = [8, 32], strides = [1, 1]} : vector<8x96xf32> to vector<8x32xf32>
    %122 = arith.mulf %121, %85 : vector<8x32xf32>
    %123 = vector.extract_strided_slice %108 {offsets = [0, 0], sizes = [8, 32], strides = [1, 1]} : vector<8x96xf32> to vector<8x32xf32>
    %124 = arith.mulf %123, %112 : vector<8x32xf32>
    %125 = arith.addf %122, %124 : vector<8x32xf32>
    %126 = vector.extract_strided_slice %108 {offsets = [0, 64], sizes = [8, 32], strides = [1, 1]} : vector<8x96xf32> to vector<8x32xf32>
    %127 = math.tanh %125 : vector<8x32xf32>
    %128 = arith.mulf %126, %127 : vector<8x32xf32>
    %c16_35 = arith.constant 16 : index
    %c0_36 = arith.constant 0 : index
    %129 = vector.load %arg9[%c16_35, %c0_36] : memref<64x64xf32, #tpu.memory_space<vmem>>, vector<8x32xf32>
    tpu.vector_store %arg9[%c16_35, %c0_36], %120 {strides = array<i32>} : memref<64x64xf32, #tpu.memory_space<vmem>>, vector<8x32xf32>,
    %c40_37 = arith.constant 40 : index
    %c32_38 = arith.constant 32 : index
    %130 = vector.load %arg9[%c40_37, %c32_38] : memref<64x64xf32, #tpu.memory_space<vmem>>, vector<8x32xf32>
    tpu.vector_store %arg9[%c40_37, %c32_38], %128 {strides = array<i32>} : memref<64x64xf32, #tpu.memory_space<vmem>>, vector<8x32xf32>,
    %c24 = arith.constant 24 : index
    %c0_39 = arith.constant 0 : index
    %131 = vector.load %arg8[%c24, %c0_39] : memref<64x256xf32, #tpu.memory_space<vmem>>, vector<8x128xf32>
    %cst_40 = arith.constant dense<0.000000e+00> : vector<8x128xf32>
    %132 = tpu.matmul %120, %8, %cst_40 {dimension_numbers = #tpu.dot_dimension_numbers<[1], [0], [0], [1], [0, 0, 1, 1], [], []>} : vector<8x32xf32>, vector<32x128xf32>, vector<8x128xf32> -> vector<8x128xf32>
    %133 = arith.addf %131, %132 : vector<8x128xf32>
    %c32_41 = arith.constant 32 : index
    %c128_42 = arith.constant 128 : index
    %134 = vector.load %arg8[%c32_41, %c128_42] : memref<64x256xf32, #tpu.memory_space<vmem>>, vector<8x128xf32>
    %cst_43 = arith.constant dense<0.000000e+00> : vector<8x128xf32>
    %135 = tpu.matmul %128, %9, %cst_43 {dimension_numbers = #tpu.dot_dimension_numbers<[1], [0], [0], [1], [0, 0, 1, 1], [], []>} : vector<8x32xf32>, vector<32x128xf32>, vector<8x128xf32> -> vector<8x128xf32>
    %136 = arith.addf %134, %135 : vector<8x128xf32>
    %137 = vector.extract_strided_slice %133 {offsets = [0, 0], sizes = [8, 96], strides = [1, 1]} : vector<8x128xf32> to vector<8x96xf32>
    %138 = arith.negf %137 : vector<8x96xf32>
    %139 = math.exp %138 : vector<8x96xf32>
    %cst_44 = arith.constant 1.000000e+00 : f32
    %140 = vector.broadcast %cst_44 : f32 to vector<8x96xf32>
    %141 = arith.addf %140, %139 : vector<8x96xf32>
    %142 = arith.divf %140, %141 : vector<8x96xf32>
    %143 = vector.extract_strided_slice %136 {offsets = [0, 0], sizes = [8, 96], strides = [1, 1]} : vector<8x128xf32> to vector<8x96xf32>
    %144 = arith.negf %143 : vector<8x96xf32>
    %145 = math.exp %144 : vector<8x96xf32>
    %cst_45 = arith.constant 1.000000e+00 : f32
    %146 = vector.broadcast %cst_45 : f32 to vector<8x96xf32>
    %147 = arith.addf %146, %145 : vector<8x96xf32>
    %148 = arith.divf %146, %147 : vector<8x96xf32>
    %149 = vector.extract_strided_slice %133 {offsets = [0, 96], sizes = [8, 32], strides = [1, 1]} : vector<8x128xf32> to vector<8x32xf32>
    %150 = math.tanh %149 : vector<8x32xf32>
    %151 = vector.extract_strided_slice %136 {offsets = [0, 96], sizes = [8, 32], strides = [1, 1]} : vector<8x128xf32> to vector<8x32xf32>
    %152 = math.tanh %151 : vector<8x32xf32>
    %153 = vector.extract_strided_slice %142 {offsets = [0, 32], sizes = [8, 32], strides = [1, 1]} : vector<8x96xf32> to vector<8x32xf32>
    %154 = arith.mulf %153, %117 : vector<8x32xf32>
    %155 = vector.extract_strided_slice %142 {offsets = [0, 0], sizes = [8, 32], strides = [1, 1]} : vector<8x96xf32> to vector<8x32xf32>
    %156 = arith.mulf %155, %150 : vector<8x32xf32>
    %157 = arith.addf %154, %156 : vector<8x32xf32>
    %158 = vector.extract_strided_slice %142 {offsets = [0, 64], sizes = [8, 32], strides = [1, 1]} : vector<8x96xf32> to vector<8x32xf32>
    %159 = math.tanh %157 : vector<8x32xf32>
    %160 = arith.mulf %158, %159 : vector<8x32xf32>
    %161 = vector.extract_strided_slice %148 {offsets = [0, 32], sizes = [8, 32], strides = [1, 1]} : vector<8x96xf32> to vector<8x32xf32>
    %162 = arith.mulf %161, %125 : vector<8x32xf32>
    %163 = vector.extract_strided_slice %148 {offsets = [0, 0], sizes = [8, 32], strides = [1, 1]} : vector<8x96xf32> to vector<8x32xf32>
    %164 = arith.mulf %163, %152 : vector<8x32xf32>
    %165 = arith.addf %162, %164 : vector<8x32xf32>
    %166 = vector.extract_strided_slice %148 {offsets = [0, 64], sizes = [8, 32], strides = [1, 1]} : vector<8x96xf32> to vector<8x32xf32>
    %167 = math.tanh %165 : vector<8x32xf32>
    %168 = arith.mulf %166, %167 : vector<8x32xf32>
    %c24_46 = arith.constant 24 : index
    %c0_47 = arith.constant 0 : index
    %169 = vector.load %arg9[%c24_46, %c0_47] : memref<64x64xf32, #tpu.memory_space<vmem>>, vector<8x32xf32>
    tpu.vector_store %arg9[%c24_46, %c0_47], %160 {strides = array<i32>} : memref<64x64xf32, #tpu.memory_space<vmem>>, vector<8x32xf32>,
    %c32_48 = arith.constant 32 : index
    %c32_49 = arith.constant 32 : index
    %170 = vector.load %arg9[%c32_48, %c32_49] : memref<64x64xf32, #tpu.memory_space<vmem>>, vector<8x32xf32>
    tpu.vector_store %arg9[%c32_48, %c32_49], %168 {strides = array<i32>} : memref<64x64xf32, #tpu.memory_space<vmem>>, vector<8x32xf32>,
    %c32_50 = arith.constant 32 : index
    %c0_51 = arith.constant 0 : index
    %171 = vector.load %arg8[%c32_50, %c0_51] : memref<64x256xf32, #tpu.memory_space<vmem>>, vector<8x128xf32>
    %cst_52 = arith.constant dense<0.000000e+00> : vector<8x128xf32>
    %172 = tpu.matmul %160, %8, %cst_52 {dimension_numbers = #tpu.dot_dimension_numbers<[1], [0], [0], [1], [0, 0, 1, 1], [], []>} : vector<8x32xf32>, vector<32x128xf32>, vector<8x128xf32> -> vector<8x128xf32>
    %173 = arith.addf %171, %172 : vector<8x128xf32>
    %c24_53 = arith.constant 24 : index
    %c128_54 = arith.constant 128 : index
    %174 = vector.load %arg8[%c24_53, %c128_54] : memref<64x256xf32, #tpu.memory_space<vmem>>, vector<8x128xf32>
    %cst_55 = arith.constant dense<0.000000e+00> : vector<8x128xf32>
    %175 = tpu.matmul %168, %9, %cst_55 {dimension_numbers = #tpu.dot_dimension_numbers<[1], [0], [0], [1], [0, 0, 1, 1], [], []>} : vector<8x32xf32>, vector<32x128xf32>, vector<8x128xf32> -> vector<8x128xf32>
    %176 = arith.addf %174, %175 : vector<8x128xf32>
    %177 = vector.extract_strided_slice %173 {offsets = [0, 0], sizes = [8, 96], strides = [1, 1]} : vector<8x128xf32> to vector<8x96xf32>
    %178 = arith.negf %177 : vector<8x96xf32>
    %179 = math.exp %178 : vector<8x96xf32>
    %cst_56 = arith.constant 1.000000e+00 : f32
    %180 = vector.broadcast %cst_56 : f32 to vector<8x96xf32>
    %181 = arith.addf %180, %179 : vector<8x96xf32>
    %182 = arith.divf %180, %181 : vector<8x96xf32>
    %183 = vector.extract_strided_slice %176 {offsets = [0, 0], sizes = [8, 96], strides = [1, 1]} : vector<8x128xf32> to vector<8x96xf32>
    %184 = arith.negf %183 : vector<8x96xf32>
    %185 = math.exp %184 : vector<8x96xf32>
    %cst_57 = arith.constant 1.000000e+00 : f32
    %186 = vector.broadcast %cst_57 : f32 to vector<8x96xf32>
    %187 = arith.addf %186, %185 : vector<8x96xf32>
    %188 = arith.divf %186, %187 : vector<8x96xf32>
    %189 = vector.extract_strided_slice %173 {offsets = [0, 96], sizes = [8, 32], strides = [1, 1]} : vector<8x128xf32> to vector<8x32xf32>
    %190 = math.tanh %189 : vector<8x32xf32>
    %191 = vector.extract_strided_slice %176 {offsets = [0, 96], sizes = [8, 32], strides = [1, 1]} : vector<8x128xf32> to vector<8x32xf32>
    %192 = math.tanh %191 : vector<8x32xf32>
    %193 = vector.extract_strided_slice %182 {offsets = [0, 32], sizes = [8, 32], strides = [1, 1]} : vector<8x96xf32> to vector<8x32xf32>
    %194 = arith.mulf %193, %157 : vector<8x32xf32>
    %195 = vector.extract_strided_slice %182 {offsets = [0, 0], sizes = [8, 32], strides = [1, 1]} : vector<8x96xf32> to vector<8x32xf32>
    %196 = arith.mulf %195, %190 : vector<8x32xf32>
    %197 = arith.addf %194, %196 : vector<8x32xf32>
    %198 = vector.extract_strided_slice %182 {offsets = [0, 64], sizes = [8, 32], strides = [1, 1]} : vector<8x96xf32> to vector<8x32xf32>
    %199 = math.tanh %197 : vector<8x32xf32>
    %200 = arith.mulf %198, %199 : vector<8x32xf32>
    %201 = vector.extract_strided_slice %188 {offsets = [0, 32], sizes = [8, 32], strides = [1, 1]} : vector<8x96xf32> to vector<8x32xf32>
    %202 = arith.mulf %201, %165 : vector<8x32xf32>
    %203 = vector.extract_strided_slice %188 {offsets = [0, 0], sizes = [8, 32], strides = [1, 1]} : vector<8x96xf32> to vector<8x32xf32>
    %204 = arith.mulf %203, %192 : vector<8x32xf32>
    %205 = arith.addf %202, %204 : vector<8x32xf32>
    %206 = vector.extract_strided_slice %188 {offsets = [0, 64], sizes = [8, 32], strides = [1, 1]} : vector<8x96xf32> to vector<8x32xf32>
    %207 = math.tanh %205 : vector<8x32xf32>
    %208 = arith.mulf %206, %207 : vector<8x32xf32>
    %c32_58 = arith.constant 32 : index
    %c0_59 = arith.constant 0 : index
    %209 = vector.load %arg9[%c32_58, %c0_59] : memref<64x64xf32, #tpu.memory_space<vmem>>, vector<8x32xf32>
    tpu.vector_store %arg9[%c32_58, %c0_59], %200 {strides = array<i32>} : memref<64x64xf32, #tpu.memory_space<vmem>>, vector<8x32xf32>,
    %c24_60 = arith.constant 24 : index
    %c32_61 = arith.constant 32 : index
    %210 = vector.load %arg9[%c24_60, %c32_61] : memref<64x64xf32, #tpu.memory_space<vmem>>, vector<8x32xf32>
    tpu.vector_store %arg9[%c24_60, %c32_61], %208 {strides = array<i32>} : memref<64x64xf32, #tpu.memory_space<vmem>>, vector<8x32xf32>,
    %c40_62 = arith.constant 40 : index
    %c0_63 = arith.constant 0 : index
    %211 = vector.load %arg8[%c40_62, %c0_63] : memref<64x256xf32, #tpu.memory_space<vmem>>, vector<8x128xf32>
    %cst_64 = arith.constant dense<0.000000e+00> : vector<8x128xf32>
    %212 = tpu.matmul %200, %8, %cst_64 {dimension_numbers = #tpu.dot_dimension_numbers<[1], [0], [0], [1], [0, 0, 1, 1], [], []>} : vector<8x32xf32>, vector<32x128xf32>, vector<8x128xf32> -> vector<8x128xf32>
    %213 = arith.addf %211, %212 : vector<8x128xf32>
    %c16_65 = arith.constant 16 : index
    %c128_66 = arith.constant 128 : index
    %214 = vector.load %arg8[%c16_65, %c128_66] : memref<64x256xf32, #tpu.memory_space<vmem>>, vector<8x128xf32>
    %cst_67 = arith.constant dense<0.000000e+00> : vector<8x128xf32>
    %215 = tpu.matmul %208, %9, %cst_67 {dimension_numbers = #tpu.dot_dimension_numbers<[1], [0], [0], [1], [0, 0, 1, 1], [], []>} : vector<8x32xf32>, vector<32x128xf32>, vector<8x128xf32> -> vector<8x128xf32>
    %216 = arith.addf %214, %215 : vector<8x128xf32>
    %217 = vector.extract_strided_slice %213 {offsets = [0, 0], sizes = [8, 96], strides = [1, 1]} : vector<8x128xf32> to vector<8x96xf32>
    %218 = arith.negf %217 : vector<8x96xf32>
    %219 = math.exp %218 : vector<8x96xf32>
    %cst_68 = arith.constant 1.000000e+00 : f32
    %220 = vector.broadcast %cst_68 : f32 to vector<8x96xf32>
    %221 = arith.addf %220, %219 : vector<8x96xf32>
    %222 = arith.divf %220, %221 : vector<8x96xf32>
    %223 = vector.extract_strided_slice %216 {offsets = [0, 0], sizes = [8, 96], strides = [1, 1]} : vector<8x128xf32> to vector<8x96xf32>
    %224 = arith.negf %223 : vector<8x96xf32>
    %225 = math.exp %224 : vector<8x96xf32>
    %cst_69 = arith.constant 1.000000e+00 : f32
    %226 = vector.broadcast %cst_69 : f32 to vector<8x96xf32>
    %227 = arith.addf %226, %225 : vector<8x96xf32>
    %228 = arith.divf %226, %227 : vector<8x96xf32>
    %229 = vector.extract_strided_slice %213 {offsets = [0, 96], sizes = [8, 32], strides = [1, 1]} : vector<8x128xf32> to vector<8x32xf32>
    %230 = math.tanh %229 : vector<8x32xf32>
    %231 = vector.extract_strided_slice %216 {offsets = [0, 96], sizes = [8, 32], strides = [1, 1]} : vector<8x128xf32> to vector<8x32xf32>
    %232 = math.tanh %231 : vector<8x32xf32>
    %233 = vector.extract_strided_slice %222 {offsets = [0, 32], sizes = [8, 32], strides = [1, 1]} : vector<8x96xf32> to vector<8x32xf32>
    %234 = arith.mulf %233, %197 : vector<8x32xf32>
    %235 = vector.extract_strided_slice %222 {offsets = [0, 0], sizes = [8, 32], strides = [1, 1]} : vector<8x96xf32> to vector<8x32xf32>
    %236 = arith.mulf %235, %230 : vector<8x32xf32>
    %237 = arith.addf %234, %236 : vector<8x32xf32>
    %238 = vector.extract_strided_slice %222 {offsets = [0, 64], sizes = [8, 32], strides = [1, 1]} : vector<8x96xf32> to vector<8x32xf32>
    %239 = math.tanh %237 : vector<8x32xf32>
    %240 = arith.mulf %238, %239 : vector<8x32xf32>
    %241 = vector.extract_strided_slice %228 {offsets = [0, 32], sizes = [8, 32], strides = [1, 1]} : vector<8x96xf32> to vector<8x32xf32>
    %242 = arith.mulf %241, %205 : vector<8x32xf32>
    %243 = vector.extract_strided_slice %228 {offsets = [0, 0], sizes = [8, 32], strides = [1, 1]} : vector<8x96xf32> to vector<8x32xf32>
    %244 = arith.mulf %243, %232 : vector<8x32xf32>
    %245 = arith.addf %242, %244 : vector<8x32xf32>
    %246 = vector.extract_strided_slice %228 {offsets = [0, 64], sizes = [8, 32], strides = [1, 1]} : vector<8x96xf32> to vector<8x32xf32>
    %247 = math.tanh %245 : vector<8x32xf32>
    %248 = arith.mulf %246, %247 : vector<8x32xf32>
    %c40_70 = arith.constant 40 : index
    %c0_71 = arith.constant 0 : index
    %249 = vector.load %arg9[%c40_70, %c0_71] : memref<64x64xf32, #tpu.memory_space<vmem>>, vector<8x32xf32>
    tpu.vector_store %arg9[%c40_70, %c0_71], %240 {strides = array<i32>} : memref<64x64xf32, #tpu.memory_space<vmem>>, vector<8x32xf32>,
    %c16_72 = arith.constant 16 : index
    %c32_73 = arith.constant 32 : index
    %250 = vector.load %arg9[%c16_72, %c32_73] : memref<64x64xf32, #tpu.memory_space<vmem>>, vector<8x32xf32>
    tpu.vector_store %arg9[%c16_72, %c32_73], %248 {strides = array<i32>} : memref<64x64xf32, #tpu.memory_space<vmem>>, vector<8x32xf32>,
    %c48_74 = arith.constant 48 : index
    %c0_75 = arith.constant 0 : index
    %251 = vector.load %arg8[%c48_74, %c0_75] : memref<64x256xf32, #tpu.memory_space<vmem>>, vector<8x128xf32>
    %cst_76 = arith.constant dense<0.000000e+00> : vector<8x128xf32>
    %252 = tpu.matmul %240, %8, %cst_76 {dimension_numbers = #tpu.dot_dimension_numbers<[1], [0], [0], [1], [0, 0, 1, 1], [], []>} : vector<8x32xf32>, vector<32x128xf32>, vector<8x128xf32> -> vector<8x128xf32>
    %253 = arith.addf %251, %252 : vector<8x128xf32>
    %c8_77 = arith.constant 8 : index
    %c128_78 = arith.constant 128 : index
    %254 = vector.load %arg8[%c8_77, %c128_78] : memref<64x256xf32, #tpu.memory_space<vmem>>, vector<8x128xf32>
    %cst_79 = arith.constant dense<0.000000e+00> : vector<8x128xf32>
    %255 = tpu.matmul %248, %9, %cst_79 {dimension_numbers = #tpu.dot_dimension_numbers<[1], [0], [0], [1], [0, 0, 1, 1], [], []>} : vector<8x32xf32>, vector<32x128xf32>, vector<8x128xf32> -> vector<8x128xf32>
    %256 = arith.addf %254, %255 : vector<8x128xf32>
    %257 = vector.extract_strided_slice %253 {offsets = [0, 0], sizes = [8, 96], strides = [1, 1]} : vector<8x128xf32> to vector<8x96xf32>
    %258 = arith.negf %257 : vector<8x96xf32>
    %259 = math.exp %258 : vector<8x96xf32>
    %cst_80 = arith.constant 1.000000e+00 : f32
    %260 = vector.broadcast %cst_80 : f32 to vector<8x96xf32>
    %261 = arith.addf %260, %259 : vector<8x96xf32>
    %262 = arith.divf %260, %261 : vector<8x96xf32>
    %263 = vector.extract_strided_slice %256 {offsets = [0, 0], sizes = [8, 96], strides = [1, 1]} : vector<8x128xf32> to vector<8x96xf32>
    %264 = arith.negf %263 : vector<8x96xf32>
    %265 = math.exp %264 : vector<8x96xf32>
    %cst_81 = arith.constant 1.000000e+00 : f32
    %266 = vector.broadcast %cst_81 : f32 to vector<8x96xf32>
    %267 = arith.addf %266, %265 : vector<8x96xf32>
    %268 = arith.divf %266, %267 : vector<8x96xf32>
    %269 = vector.extract_strided_slice %253 {offsets = [0, 96], sizes = [8, 32], strides = [1, 1]} : vector<8x128xf32> to vector<8x32xf32>
    %270 = math.tanh %269 : vector<8x32xf32>
    %271 = vector.extract_strided_slice %256 {offsets = [0, 96], sizes = [8, 32], strides = [1, 1]} : vector<8x128xf32> to vector<8x32xf32>
    %272 = math.tanh %271 : vector<8x32xf32>
    %273 = vector.extract_strided_slice %262 {offsets = [0, 32], sizes = [8, 32], strides = [1, 1]} : vector<8x96xf32> to vector<8x32xf32>
    %274 = arith.mulf %273, %237 : vector<8x32xf32>
    %275 = vector.extract_strided_slice %262 {offsets = [0, 0], sizes = [8, 32], strides = [1, 1]} : vector<8x96xf32> to vector<8x32xf32>
    %276 = arith.mulf %275, %270 : vector<8x32xf32>
    %277 = arith.addf %274, %276 : vector<8x32xf32>
    %278 = vector.extract_strided_slice %262 {offsets = [0, 64], sizes = [8, 32], strides = [1, 1]} : vector<8x96xf32> to vector<8x32xf32>
    %279 = math.tanh %277 : vector<8x32xf32>
    %280 = arith.mulf %278, %279 : vector<8x32xf32>
    %281 = vector.extract_strided_slice %268 {offsets = [0, 32], sizes = [8, 32], strides = [1, 1]} : vector<8x96xf32> to vector<8x32xf32>
    %282 = arith.mulf %281, %245 : vector<8x32xf32>
    %283 = vector.extract_strided_slice %268 {offsets = [0, 0], sizes = [8, 32], strides = [1, 1]} : vector<8x96xf32> to vector<8x32xf32>
    %284 = arith.mulf %283, %272 : vector<8x32xf32>
    %285 = arith.addf %282, %284 : vector<8x32xf32>
    %286 = vector.extract_strided_slice %268 {offsets = [0, 64], sizes = [8, 32], strides = [1, 1]} : vector<8x96xf32> to vector<8x32xf32>
    %287 = math.tanh %285 : vector<8x32xf32>
    %288 = arith.mulf %286, %287 : vector<8x32xf32>
    %c48_82 = arith.constant 48 : index
    %c0_83 = arith.constant 0 : index
    %289 = vector.load %arg9[%c48_82, %c0_83] : memref<64x64xf32, #tpu.memory_space<vmem>>, vector<8x32xf32>
    tpu.vector_store %arg9[%c48_82, %c0_83], %280 {strides = array<i32>} : memref<64x64xf32, #tpu.memory_space<vmem>>, vector<8x32xf32>,
    %c8_84 = arith.constant 8 : index
    %c32_85 = arith.constant 32 : index
    %290 = vector.load %arg9[%c8_84, %c32_85] : memref<64x64xf32, #tpu.memory_space<vmem>>, vector<8x32xf32>
    tpu.vector_store %arg9[%c8_84, %c32_85], %288 {strides = array<i32>} : memref<64x64xf32, #tpu.memory_space<vmem>>, vector<8x32xf32>,
    %c56_86 = arith.constant 56 : index
    %c0_87 = arith.constant 0 : index
    %291 = vector.load %arg8[%c56_86, %c0_87] : memref<64x256xf32, #tpu.memory_space<vmem>>, vector<8x128xf32>
    %cst_88 = arith.constant dense<0.000000e+00> : vector<8x128xf32>
    %292 = tpu.matmul %280, %8, %cst_88 {dimension_numbers = #tpu.dot_dimension_numbers<[1], [0], [0], [1], [0, 0, 1, 1], [], []>} : vector<8x32xf32>, vector<32x128xf32>, vector<8x128xf32> -> vector<8x128xf32>
    %293 = arith.addf %291, %292 : vector<8x128xf32>
    %c0_89 = arith.constant 0 : index
    %c128_90 = arith.constant 128 : index
    %294 = vector.load %arg8[%c0_89, %c128_90] : memref<64x256xf32, #tpu.memory_space<vmem>>, vector<8x128xf32>
    %cst_91 = arith.constant dense<0.000000e+00> : vector<8x128xf32>
    %295 = tpu.matmul %288, %9, %cst_91 {dimension_numbers = #tpu.dot_dimension_numbers<[1], [0], [0], [1], [0, 0, 1, 1], [], []>} : vector<8x32xf32>, vector<32x128xf32>, vector<8x128xf32> -> vector<8x128xf32>
    %296 = arith.addf %294, %295 : vector<8x128xf32>
    %297 = vector.extract_strided_slice %293 {offsets = [0, 0], sizes = [8, 96], strides = [1, 1]} : vector<8x128xf32> to vector<8x96xf32>
    %298 = arith.negf %297 : vector<8x96xf32>
    %299 = math.exp %298 : vector<8x96xf32>
    %cst_92 = arith.constant 1.000000e+00 : f32
    %300 = vector.broadcast %cst_92 : f32 to vector<8x96xf32>
    %301 = arith.addf %300, %299 : vector<8x96xf32>
    %302 = arith.divf %300, %301 : vector<8x96xf32>
    %303 = vector.extract_strided_slice %296 {offsets = [0, 0], sizes = [8, 96], strides = [1, 1]} : vector<8x128xf32> to vector<8x96xf32>
    %304 = arith.negf %303 : vector<8x96xf32>
    %305 = math.exp %304 : vector<8x96xf32>
    %cst_93 = arith.constant 1.000000e+00 : f32
    %306 = vector.broadcast %cst_93 : f32 to vector<8x96xf32>
    %307 = arith.addf %306, %305 : vector<8x96xf32>
    %308 = arith.divf %306, %307 : vector<8x96xf32>
    %309 = vector.extract_strided_slice %293 {offsets = [0, 96], sizes = [8, 32], strides = [1, 1]} : vector<8x128xf32> to vector<8x32xf32>
    %310 = math.tanh %309 : vector<8x32xf32>
    %311 = vector.extract_strided_slice %296 {offsets = [0, 96], sizes = [8, 32], strides = [1, 1]} : vector<8x128xf32> to vector<8x32xf32>
    %312 = math.tanh %311 : vector<8x32xf32>
    %313 = vector.extract_strided_slice %302 {offsets = [0, 32], sizes = [8, 32], strides = [1, 1]} : vector<8x96xf32> to vector<8x32xf32>
    %314 = arith.mulf %313, %277 : vector<8x32xf32>
    %315 = vector.extract_strided_slice %302 {offsets = [0, 0], sizes = [8, 32], strides = [1, 1]} : vector<8x96xf32> to vector<8x32xf32>
    %316 = arith.mulf %315, %310 : vector<8x32xf32>
    %317 = arith.addf %314, %316 : vector<8x32xf32>
    %318 = vector.extract_strided_slice %302 {offsets = [0, 64], sizes = [8, 32], strides = [1, 1]} : vector<8x96xf32> to vector<8x32xf32>
    %319 = math.tanh %317 : vector<8x32xf32>
    %320 = arith.mulf %318, %319 : vector<8x32xf32>
    %321 = vector.extract_strided_slice %308 {offsets = [0, 32], sizes = [8, 32], strides = [1, 1]} : vector<8x96xf32> to vector<8x32xf32>
    %322 = arith.mulf %321, %285 : vector<8x32xf32>
    %323 = vector.extract_strided_slice %308 {offsets = [0, 0], sizes = [8, 32], strides = [1, 1]} : vector<8x96xf32> to vector<8x32xf32>
    %324 = arith.mulf %323, %312 : vector<8x32xf32>
    %325 = arith.addf %322, %324 : vector<8x32xf32>
    %326 = vector.extract_strided_slice %308 {offsets = [0, 64], sizes = [8, 32], strides = [1, 1]} : vector<8x96xf32> to vector<8x32xf32>
    %327 = math.tanh %325 : vector<8x32xf32>
    %328 = arith.mulf %326, %327 : vector<8x32xf32>
    %c56_94 = arith.constant 56 : index
    %c0_95 = arith.constant 0 : index
    %329 = vector.load %arg9[%c56_94, %c0_95] : memref<64x64xf32, #tpu.memory_space<vmem>>, vector<8x32xf32>
    tpu.vector_store %arg9[%c56_94, %c0_95], %320 {strides = array<i32>} : memref<64x64xf32, #tpu.memory_space<vmem>>, vector<8x32xf32>,
    %c0_96 = arith.constant 0 : index
    %c32_97 = arith.constant 32 : index
    %330 = vector.load %arg9[%c0_96, %c32_97] : memref<64x64xf32, #tpu.memory_space<vmem>>, vector<8x32xf32>
    tpu.vector_store %arg9[%c0_96, %c32_97], %328 {strides = array<i32>} : memref<64x64xf32, #tpu.memory_space<vmem>>, vector<8x32xf32>,
    %c0_98 = arith.constant 0 : index
    %c0_99 = arith.constant 0 : index
    %331 = vector.load %arg4[%c0_98, %c0_99] : memref<64x256xf32, #tpu.memory_space<vmem>>, vector<64x256xf32>
    %c0_100 = arith.constant 0 : index
    %c0_101 = arith.constant 0 : index
    %332 = vector.load %arg5[%c0_100, %c0_101] : memref<32x256xf32, #tpu.memory_space<vmem>>, vector<32x256xf32>
    %c0_102 = arith.constant 0 : index
    %c0_103 = arith.constant 0 : index
    %333 = vector.load %arg6[%c0_102, %c0_103] : memref<1x256xf32, #tpu.memory_space<vmem>>, vector<1x256xf32>
    %c0_104 = arith.constant 0 : index
    %c0_105 = arith.constant 0 : index
    %334 = vector.load %arg9[%c0_104, %c0_105] : memref<64x64xf32, #tpu.memory_space<vmem>>, vector<64x64xf32>
    %cst_106 = arith.constant dense<0.000000e+00> : vector<64x256xf32>
    %335 = tpu.matmul %334, %331, %cst_106 {dimension_numbers = #tpu.dot_dimension_numbers<[1], [0], [0], [1], [0, 0, 1, 1], [], []>} : vector<64x64xf32>, vector<64x256xf32>, vector<64x256xf32> -> vector<64x256xf32>
    %336 = vector.broadcast %333 : vector<1x256xf32> to vector<64x256xf32>
    %337 = arith.addf %335, %336 : vector<64x256xf32>
    %c0_107 = arith.constant 0 : index
    %c0_108 = arith.constant 0 : index
    %338 = vector.load %arg8[%c0_107, %c0_108] : memref<64x256xf32, #tpu.memory_space<vmem>>, vector<64x256xf32>
    tpu.vector_store %arg8[%c0_107, %c0_108], %337 {strides = array<i32>} : memref<64x256xf32, #tpu.memory_space<vmem>>, vector<64x256xf32>,
    %339 = vector.extract_strided_slice %332 {offsets = [0, 0], sizes = [32, 128], strides = [1, 1]} : vector<32x256xf32> to vector<32x128xf32>
    %340 = vector.extract_strided_slice %332 {offsets = [0, 128], sizes = [32, 128], strides = [1, 1]} : vector<32x256xf32> to vector<32x128xf32>
    %cst_109 = arith.constant 0.000000e+00 : f32
    %341 = vector.broadcast %cst_109 : f32 to vector<8x32xf32>
    %c0_110 = arith.constant 0 : index
    %c0_111 = arith.constant 0 : index
    %342 = vector.load %arg8[%c0_110, %c0_111] : memref<64x256xf32, #tpu.memory_space<vmem>>, vector<8x128xf32>
    %cst_112 = arith.constant dense<0.000000e+00> : vector<8x128xf32>
    %343 = tpu.matmul %341, %339, %cst_112 {dimension_numbers = #tpu.dot_dimension_numbers<[1], [0], [0], [1], [0, 0, 1, 1], [], []>} : vector<8x32xf32>, vector<32x128xf32>, vector<8x128xf32> -> vector<8x128xf32>
    %344 = arith.addf %342, %343 : vector<8x128xf32>
    %c56_113 = arith.constant 56 : index
    %c128_114 = arith.constant 128 : index
    %345 = vector.load %arg8[%c56_113, %c128_114] : memref<64x256xf32, #tpu.memory_space<vmem>>, vector<8x128xf32>
    %cst_115 = arith.constant dense<0.000000e+00> : vector<8x128xf32>
    %346 = tpu.matmul %341, %340, %cst_115 {dimension_numbers = #tpu.dot_dimension_numbers<[1], [0], [0], [1], [0, 0, 1, 1], [], []>} : vector<8x32xf32>, vector<32x128xf32>, vector<8x128xf32> -> vector<8x128xf32>
    %347 = arith.addf %345, %346 : vector<8x128xf32>
    %348 = vector.extract_strided_slice %344 {offsets = [0, 0], sizes = [8, 96], strides = [1, 1]} : vector<8x128xf32> to vector<8x96xf32>
    %349 = arith.negf %348 : vector<8x96xf32>
    %350 = math.exp %349 : vector<8x96xf32>
    %cst_116 = arith.constant 1.000000e+00 : f32
    %351 = vector.broadcast %cst_116 : f32 to vector<8x96xf32>
    %352 = arith.addf %351, %350 : vector<8x96xf32>
    %353 = arith.divf %351, %352 : vector<8x96xf32>
    %354 = vector.extract_strided_slice %347 {offsets = [0, 0], sizes = [8, 96], strides = [1, 1]} : vector<8x128xf32> to vector<8x96xf32>
    %355 = arith.negf %354 : vector<8x96xf32>
    %356 = math.exp %355 : vector<8x96xf32>
    %cst_117 = arith.constant 1.000000e+00 : f32
    %357 = vector.broadcast %cst_117 : f32 to vector<8x96xf32>
    %358 = arith.addf %357, %356 : vector<8x96xf32>
    %359 = arith.divf %357, %358 : vector<8x96xf32>
    %360 = vector.extract_strided_slice %344 {offsets = [0, 96], sizes = [8, 32], strides = [1, 1]} : vector<8x128xf32> to vector<8x32xf32>
    %361 = math.tanh %360 : vector<8x32xf32>
    %362 = vector.extract_strided_slice %347 {offsets = [0, 96], sizes = [8, 32], strides = [1, 1]} : vector<8x128xf32> to vector<8x32xf32>
    %363 = math.tanh %362 : vector<8x32xf32>
    %364 = vector.extract_strided_slice %353 {offsets = [0, 32], sizes = [8, 32], strides = [1, 1]} : vector<8x96xf32> to vector<8x32xf32>
    %365 = arith.mulf %364, %341 : vector<8x32xf32>
    %366 = vector.extract_strided_slice %353 {offsets = [0, 0], sizes = [8, 32], strides = [1, 1]} : vector<8x96xf32> to vector<8x32xf32>
    %367 = arith.mulf %366, %361 : vector<8x32xf32>
    %368 = arith.addf %365, %367 : vector<8x32xf32>
    %369 = vector.extract_strided_slice %353 {offsets = [0, 64], sizes = [8, 32], strides = [1, 1]} : vector<8x96xf32> to vector<8x32xf32>
    %370 = math.tanh %368 : vector<8x32xf32>
    %371 = arith.mulf %369, %370 : vector<8x32xf32>
    %372 = vector.extract_strided_slice %359 {offsets = [0, 32], sizes = [8, 32], strides = [1, 1]} : vector<8x96xf32> to vector<8x32xf32>
    %373 = arith.mulf %372, %341 : vector<8x32xf32>
    %374 = vector.extract_strided_slice %359 {offsets = [0, 0], sizes = [8, 32], strides = [1, 1]} : vector<8x96xf32> to vector<8x32xf32>
    %375 = arith.mulf %374, %363 : vector<8x32xf32>
    %376 = arith.addf %373, %375 : vector<8x32xf32>
    %377 = vector.extract_strided_slice %359 {offsets = [0, 64], sizes = [8, 32], strides = [1, 1]} : vector<8x96xf32> to vector<8x32xf32>
    %378 = math.tanh %376 : vector<8x32xf32>
    %379 = arith.mulf %377, %378 : vector<8x32xf32>
    %c0_118 = arith.constant 0 : index
    %c0_119 = arith.constant 0 : index
    %380 = vector.load %arg9[%c0_118, %c0_119] : memref<64x64xf32, #tpu.memory_space<vmem>>, vector<8x32xf32>
    tpu.vector_store %arg9[%c0_118, %c0_119], %371 {strides = array<i32>} : memref<64x64xf32, #tpu.memory_space<vmem>>, vector<8x32xf32>,
    %c56_120 = arith.constant 56 : index
    %c32_121 = arith.constant 32 : index
    %381 = vector.load %arg9[%c56_120, %c32_121] : memref<64x64xf32, #tpu.memory_space<vmem>>, vector<8x32xf32>
    tpu.vector_store %arg9[%c56_120, %c32_121], %379 {strides = array<i32>} : memref<64x64xf32, #tpu.memory_space<vmem>>, vector<8x32xf32>,
    %c8_122 = arith.constant 8 : index
    %c0_123 = arith.constant 0 : index
    %382 = vector.load %arg8[%c8_122, %c0_123] : memref<64x256xf32, #tpu.memory_space<vmem>>, vector<8x128xf32>
    %cst_124 = arith.constant dense<0.000000e+00> : vector<8x128xf32>
    %383 = tpu.matmul %371, %339, %cst_124 {dimension_numbers = #tpu.dot_dimension_numbers<[1], [0], [0], [1], [0, 0, 1, 1], [], []>} : vector<8x32xf32>, vector<32x128xf32>, vector<8x128xf32> -> vector<8x128xf32>
    %384 = arith.addf %382, %383 : vector<8x128xf32>
    %c48_125 = arith.constant 48 : index
    %c128_126 = arith.constant 128 : index
    %385 = vector.load %arg8[%c48_125, %c128_126] : memref<64x256xf32, #tpu.memory_space<vmem>>, vector<8x128xf32>
    %cst_127 = arith.constant dense<0.000000e+00> : vector<8x128xf32>
    %386 = tpu.matmul %379, %340, %cst_127 {dimension_numbers = #tpu.dot_dimension_numbers<[1], [0], [0], [1], [0, 0, 1, 1], [], []>} : vector<8x32xf32>, vector<32x128xf32>, vector<8x128xf32> -> vector<8x128xf32>
    %387 = arith.addf %385, %386 : vector<8x128xf32>
    %388 = vector.extract_strided_slice %384 {offsets = [0, 0], sizes = [8, 96], strides = [1, 1]} : vector<8x128xf32> to vector<8x96xf32>
    %389 = arith.negf %388 : vector<8x96xf32>
    %390 = math.exp %389 : vector<8x96xf32>
    %cst_128 = arith.constant 1.000000e+00 : f32
    %391 = vector.broadcast %cst_128 : f32 to vector<8x96xf32>
    %392 = arith.addf %391, %390 : vector<8x96xf32>
    %393 = arith.divf %391, %392 : vector<8x96xf32>
    %394 = vector.extract_strided_slice %387 {offsets = [0, 0], sizes = [8, 96], strides = [1, 1]} : vector<8x128xf32> to vector<8x96xf32>
    %395 = arith.negf %394 : vector<8x96xf32>
    %396 = math.exp %395 : vector<8x96xf32>
    %cst_129 = arith.constant 1.000000e+00 : f32
    %397 = vector.broadcast %cst_129 : f32 to vector<8x96xf32>
    %398 = arith.addf %397, %396 : vector<8x96xf32>
    %399 = arith.divf %397, %398 : vector<8x96xf32>
    %400 = vector.extract_strided_slice %384 {offsets = [0, 96], sizes = [8, 32], strides = [1, 1]} : vector<8x128xf32> to vector<8x32xf32>
    %401 = math.tanh %400 : vector<8x32xf32>
    %402 = vector.extract_strided_slice %387 {offsets = [0, 96], sizes = [8, 32], strides = [1, 1]} : vector<8x128xf32> to vector<8x32xf32>
    %403 = math.tanh %402 : vector<8x32xf32>
    %404 = vector.extract_strided_slice %393 {offsets = [0, 32], sizes = [8, 32], strides = [1, 1]} : vector<8x96xf32> to vector<8x32xf32>
    %405 = arith.mulf %404, %368 : vector<8x32xf32>
    %406 = vector.extract_strided_slice %393 {offsets = [0, 0], sizes = [8, 32], strides = [1, 1]} : vector<8x96xf32> to vector<8x32xf32>
    %407 = arith.mulf %406, %401 : vector<8x32xf32>
    %408 = arith.addf %405, %407 : vector<8x32xf32>
    %409 = vector.extract_strided_slice %393 {offsets = [0, 64], sizes = [8, 32], strides = [1, 1]} : vector<8x96xf32> to vector<8x32xf32>
    %410 = math.tanh %408 : vector<8x32xf32>
    %411 = arith.mulf %409, %410 : vector<8x32xf32>
    %412 = vector.extract_strided_slice %399 {offsets = [0, 32], sizes = [8, 32], strides = [1, 1]} : vector<8x96xf32> to vector<8x32xf32>
    %413 = arith.mulf %412, %376 : vector<8x32xf32>
    %414 = vector.extract_strided_slice %399 {offsets = [0, 0], sizes = [8, 32], strides = [1, 1]} : vector<8x96xf32> to vector<8x32xf32>
    %415 = arith.mulf %414, %403 : vector<8x32xf32>
    %416 = arith.addf %413, %415 : vector<8x32xf32>
    %417 = vector.extract_strided_slice %399 {offsets = [0, 64], sizes = [8, 32], strides = [1, 1]} : vector<8x96xf32> to vector<8x32xf32>
    %418 = math.tanh %416 : vector<8x32xf32>
    %419 = arith.mulf %417, %418 : vector<8x32xf32>
    %c8_130 = arith.constant 8 : index
    %c0_131 = arith.constant 0 : index
    %420 = vector.load %arg9[%c8_130, %c0_131] : memref<64x64xf32, #tpu.memory_space<vmem>>, vector<8x32xf32>
    tpu.vector_store %arg9[%c8_130, %c0_131], %411 {strides = array<i32>} : memref<64x64xf32, #tpu.memory_space<vmem>>, vector<8x32xf32>,
    %c48_132 = arith.constant 48 : index
    %c32_133 = arith.constant 32 : index
    %421 = vector.load %arg9[%c48_132, %c32_133] : memref<64x64xf32, #tpu.memory_space<vmem>>, vector<8x32xf32>
    tpu.vector_store %arg9[%c48_132, %c32_133], %419 {strides = array<i32>} : memref<64x64xf32, #tpu.memory_space<vmem>>, vector<8x32xf32>,
    %c16_134 = arith.constant 16 : index
    %c0_135 = arith.constant 0 : index
    %422 = vector.load %arg8[%c16_134, %c0_135] : memref<64x256xf32, #tpu.memory_space<vmem>>, vector<8x128xf32>
    %cst_136 = arith.constant dense<0.000000e+00> : vector<8x128xf32>
    %423 = tpu.matmul %411, %339, %cst_136 {dimension_numbers = #tpu.dot_dimension_numbers<[1], [0], [0], [1], [0, 0, 1, 1], [], []>} : vector<8x32xf32>, vector<32x128xf32>, vector<8x128xf32> -> vector<8x128xf32>
    %424 = arith.addf %422, %423 : vector<8x128xf32>
    %c40_137 = arith.constant 40 : index
    %c128_138 = arith.constant 128 : index
    %425 = vector.load %arg8[%c40_137, %c128_138] : memref<64x256xf32, #tpu.memory_space<vmem>>, vector<8x128xf32>
    %cst_139 = arith.constant dense<0.000000e+00> : vector<8x128xf32>
    %426 = tpu.matmul %419, %340, %cst_139 {dimension_numbers = #tpu.dot_dimension_numbers<[1], [0], [0], [1], [0, 0, 1, 1], [], []>} : vector<8x32xf32>, vector<32x128xf32>, vector<8x128xf32> -> vector<8x128xf32>
    %427 = arith.addf %425, %426 : vector<8x128xf32>
    %428 = vector.extract_strided_slice %424 {offsets = [0, 0], sizes = [8, 96], strides = [1, 1]} : vector<8x128xf32> to vector<8x96xf32>
    %429 = arith.negf %428 : vector<8x96xf32>
    %430 = math.exp %429 : vector<8x96xf32>
    %cst_140 = arith.constant 1.000000e+00 : f32
    %431 = vector.broadcast %cst_140 : f32 to vector<8x96xf32>
    %432 = arith.addf %431, %430 : vector<8x96xf32>
    %433 = arith.divf %431, %432 : vector<8x96xf32>
    %434 = vector.extract_strided_slice %427 {offsets = [0, 0], sizes = [8, 96], strides = [1, 1]} : vector<8x128xf32> to vector<8x96xf32>
    %435 = arith.negf %434 : vector<8x96xf32>
    %436 = math.exp %435 : vector<8x96xf32>
    %cst_141 = arith.constant 1.000000e+00 : f32
    %437 = vector.broadcast %cst_141 : f32 to vector<8x96xf32>
    %438 = arith.addf %437, %436 : vector<8x96xf32>
    %439 = arith.divf %437, %438 : vector<8x96xf32>
    %440 = vector.extract_strided_slice %424 {offsets = [0, 96], sizes = [8, 32], strides = [1, 1]} : vector<8x128xf32> to vector<8x32xf32>
    %441 = math.tanh %440 : vector<8x32xf32>
    %442 = vector.extract_strided_slice %427 {offsets = [0, 96], sizes = [8, 32], strides = [1, 1]} : vector<8x128xf32> to vector<8x32xf32>
    %443 = math.tanh %442 : vector<8x32xf32>
    %444 = vector.extract_strided_slice %433 {offsets = [0, 32], sizes = [8, 32], strides = [1, 1]} : vector<8x96xf32> to vector<8x32xf32>
    %445 = arith.mulf %444, %408 : vector<8x32xf32>
    %446 = vector.extract_strided_slice %433 {offsets = [0, 0], sizes = [8, 32], strides = [1, 1]} : vector<8x96xf32> to vector<8x32xf32>
    %447 = arith.mulf %446, %441 : vector<8x32xf32>
    %448 = arith.addf %445, %447 : vector<8x32xf32>
    %449 = vector.extract_strided_slice %433 {offsets = [0, 64], sizes = [8, 32], strides = [1, 1]} : vector<8x96xf32> to vector<8x32xf32>
    %450 = math.tanh %448 : vector<8x32xf32>
    %451 = arith.mulf %449, %450 : vector<8x32xf32>
    %452 = vector.extract_strided_slice %439 {offsets = [0, 32], sizes = [8, 32], strides = [1, 1]} : vector<8x96xf32> to vector<8x32xf32>
    %453 = arith.mulf %452, %416 : vector<8x32xf32>
    %454 = vector.extract_strided_slice %439 {offsets = [0, 0], sizes = [8, 32], strides = [1, 1]} : vector<8x96xf32> to vector<8x32xf32>
    %455 = arith.mulf %454, %443 : vector<8x32xf32>
    %456 = arith.addf %453, %455 : vector<8x32xf32>
    %457 = vector.extract_strided_slice %439 {offsets = [0, 64], sizes = [8, 32], strides = [1, 1]} : vector<8x96xf32> to vector<8x32xf32>
    %458 = math.tanh %456 : vector<8x32xf32>
    %459 = arith.mulf %457, %458 : vector<8x32xf32>
    %c16_142 = arith.constant 16 : index
    %c0_143 = arith.constant 0 : index
    %460 = vector.load %arg9[%c16_142, %c0_143] : memref<64x64xf32, #tpu.memory_space<vmem>>, vector<8x32xf32>
    tpu.vector_store %arg9[%c16_142, %c0_143], %451 {strides = array<i32>} : memref<64x64xf32, #tpu.memory_space<vmem>>, vector<8x32xf32>,
    %c40_144 = arith.constant 40 : index
    %c32_145 = arith.constant 32 : index
    %461 = vector.load %arg9[%c40_144, %c32_145] : memref<64x64xf32, #tpu.memory_space<vmem>>, vector<8x32xf32>
    tpu.vector_store %arg9[%c40_144, %c32_145], %459 {strides = array<i32>} : memref<64x64xf32, #tpu.memory_space<vmem>>, vector<8x32xf32>,
    %c24_146 = arith.constant 24 : index
    %c0_147 = arith.constant 0 : index
    %462 = vector.load %arg8[%c24_146, %c0_147] : memref<64x256xf32, #tpu.memory_space<vmem>>, vector<8x128xf32>
    %cst_148 = arith.constant dense<0.000000e+00> : vector<8x128xf32>
    %463 = tpu.matmul %451, %339, %cst_148 {dimension_numbers = #tpu.dot_dimension_numbers<[1], [0], [0], [1], [0, 0, 1, 1], [], []>} : vector<8x32xf32>, vector<32x128xf32>, vector<8x128xf32> -> vector<8x128xf32>
    %464 = arith.addf %462, %463 : vector<8x128xf32>
    %c32_149 = arith.constant 32 : index
    %c128_150 = arith.constant 128 : index
    %465 = vector.load %arg8[%c32_149, %c128_150] : memref<64x256xf32, #tpu.memory_space<vmem>>, vector<8x128xf32>
    %cst_151 = arith.constant dense<0.000000e+00> : vector<8x128xf32>
    %466 = tpu.matmul %459, %340, %cst_151 {dimension_numbers = #tpu.dot_dimension_numbers<[1], [0], [0], [1], [0, 0, 1, 1], [], []>} : vector<8x32xf32>, vector<32x128xf32>, vector<8x128xf32> -> vector<8x128xf32>
    %467 = arith.addf %465, %466 : vector<8x128xf32>
    %468 = vector.extract_strided_slice %464 {offsets = [0, 0], sizes = [8, 96], strides = [1, 1]} : vector<8x128xf32> to vector<8x96xf32>
    %469 = arith.negf %468 : vector<8x96xf32>
    %470 = math.exp %469 : vector<8x96xf32>
    %cst_152 = arith.constant 1.000000e+00 : f32
    %471 = vector.broadcast %cst_152 : f32 to vector<8x96xf32>
    %472 = arith.addf %471, %470 : vector<8x96xf32>
    %473 = arith.divf %471, %472 : vector<8x96xf32>
    %474 = vector.extract_strided_slice %467 {offsets = [0, 0], sizes = [8, 96], strides = [1, 1]} : vector<8x128xf32> to vector<8x96xf32>
    %475 = arith.negf %474 : vector<8x96xf32>
    %476 = math.exp %475 : vector<8x96xf32>
    %cst_153 = arith.constant 1.000000e+00 : f32
    %477 = vector.broadcast %cst_153 : f32 to vector<8x96xf32>
    %478 = arith.addf %477, %476 : vector<8x96xf32>
    %479 = arith.divf %477, %478 : vector<8x96xf32>
    %480 = vector.extract_strided_slice %464 {offsets = [0, 96], sizes = [8, 32], strides = [1, 1]} : vector<8x128xf32> to vector<8x32xf32>
    %481 = math.tanh %480 : vector<8x32xf32>
    %482 = vector.extract_strided_slice %467 {offsets = [0, 96], sizes = [8, 32], strides = [1, 1]} : vector<8x128xf32> to vector<8x32xf32>
    %483 = math.tanh %482 : vector<8x32xf32>
    %484 = vector.extract_strided_slice %473 {offsets = [0, 32], sizes = [8, 32], strides = [1, 1]} : vector<8x96xf32> to vector<8x32xf32>
    %485 = arith.mulf %484, %448 : vector<8x32xf32>
    %486 = vector.extract_strided_slice %473 {offsets = [0, 0], sizes = [8, 32], strides = [1, 1]} : vector<8x96xf32> to vector<8x32xf32>
    %487 = arith.mulf %486, %481 : vector<8x32xf32>
    %488 = arith.addf %485, %487 : vector<8x32xf32>
    %489 = vector.extract_strided_slice %473 {offsets = [0, 64], sizes = [8, 32], strides = [1, 1]} : vector<8x96xf32> to vector<8x32xf32>
    %490 = math.tanh %488 : vector<8x32xf32>
    %491 = arith.mulf %489, %490 : vector<8x32xf32>
    %492 = vector.extract_strided_slice %479 {offsets = [0, 32], sizes = [8, 32], strides = [1, 1]} : vector<8x96xf32> to vector<8x32xf32>
    %493 = arith.mulf %492, %456 : vector<8x32xf32>
    %494 = vector.extract_strided_slice %479 {offsets = [0, 0], sizes = [8, 32], strides = [1, 1]} : vector<8x96xf32> to vector<8x32xf32>
    %495 = arith.mulf %494, %483 : vector<8x32xf32>
    %496 = arith.addf %493, %495 : vector<8x32xf32>
    %497 = vector.extract_strided_slice %479 {offsets = [0, 64], sizes = [8, 32], strides = [1, 1]} : vector<8x96xf32> to vector<8x32xf32>
    %498 = math.tanh %496 : vector<8x32xf32>
    %499 = arith.mulf %497, %498 : vector<8x32xf32>
    %c24_154 = arith.constant 24 : index
    %c0_155 = arith.constant 0 : index
    %500 = vector.load %arg9[%c24_154, %c0_155] : memref<64x64xf32, #tpu.memory_space<vmem>>, vector<8x32xf32>
    tpu.vector_store %arg9[%c24_154, %c0_155], %491 {strides = array<i32>} : memref<64x64xf32, #tpu.memory_space<vmem>>, vector<8x32xf32>,
    %c32_156 = arith.constant 32 : index
    %c32_157 = arith.constant 32 : index
    %501 = vector.load %arg9[%c32_156, %c32_157] : memref<64x64xf32, #tpu.memory_space<vmem>>, vector<8x32xf32>
    tpu.vector_store %arg9[%c32_156, %c32_157], %499 {strides = array<i32>} : memref<64x64xf32, #tpu.memory_space<vmem>>, vector<8x32xf32>,
    %c32_158 = arith.constant 32 : index
    %c0_159 = arith.constant 0 : index
    %502 = vector.load %arg8[%c32_158, %c0_159] : memref<64x256xf32, #tpu.memory_space<vmem>>, vector<8x128xf32>
    %cst_160 = arith.constant dense<0.000000e+00> : vector<8x128xf32>
    %503 = tpu.matmul %491, %339, %cst_160 {dimension_numbers = #tpu.dot_dimension_numbers<[1], [0], [0], [1], [0, 0, 1, 1], [], []>} : vector<8x32xf32>, vector<32x128xf32>, vector<8x128xf32> -> vector<8x128xf32>
    %504 = arith.addf %502, %503 : vector<8x128xf32>
    %c24_161 = arith.constant 24 : index
    %c128_162 = arith.constant 128 : index
    %505 = vector.load %arg8[%c24_161, %c128_162] : memref<64x256xf32, #tpu.memory_space<vmem>>, vector<8x128xf32>
    %cst_163 = arith.constant dense<0.000000e+00> : vector<8x128xf32>
    %506 = tpu.matmul %499, %340, %cst_163 {dimension_numbers = #tpu.dot_dimension_numbers<[1], [0], [0], [1], [0, 0, 1, 1], [], []>} : vector<8x32xf32>, vector<32x128xf32>, vector<8x128xf32> -> vector<8x128xf32>
    %507 = arith.addf %505, %506 : vector<8x128xf32>
    %508 = vector.extract_strided_slice %504 {offsets = [0, 0], sizes = [8, 96], strides = [1, 1]} : vector<8x128xf32> to vector<8x96xf32>
    %509 = arith.negf %508 : vector<8x96xf32>
    %510 = math.exp %509 : vector<8x96xf32>
    %cst_164 = arith.constant 1.000000e+00 : f32
    %511 = vector.broadcast %cst_164 : f32 to vector<8x96xf32>
    %512 = arith.addf %511, %510 : vector<8x96xf32>
    %513 = arith.divf %511, %512 : vector<8x96xf32>
    %514 = vector.extract_strided_slice %507 {offsets = [0, 0], sizes = [8, 96], strides = [1, 1]} : vector<8x128xf32> to vector<8x96xf32>
    %515 = arith.negf %514 : vector<8x96xf32>
    %516 = math.exp %515 : vector<8x96xf32>
    %cst_165 = arith.constant 1.000000e+00 : f32
    %517 = vector.broadcast %cst_165 : f32 to vector<8x96xf32>
    %518 = arith.addf %517, %516 : vector<8x96xf32>
    %519 = arith.divf %517, %518 : vector<8x96xf32>
    %520 = vector.extract_strided_slice %504 {offsets = [0, 96], sizes = [8, 32], strides = [1, 1]} : vector<8x128xf32> to vector<8x32xf32>
    %521 = math.tanh %520 : vector<8x32xf32>
    %522 = vector.extract_strided_slice %507 {offsets = [0, 96], sizes = [8, 32], strides = [1, 1]} : vector<8x128xf32> to vector<8x32xf32>
    %523 = math.tanh %522 : vector<8x32xf32>
    %524 = vector.extract_strided_slice %513 {offsets = [0, 32], sizes = [8, 32], strides = [1, 1]} : vector<8x96xf32> to vector<8x32xf32>
    %525 = arith.mulf %524, %488 : vector<8x32xf32>
    %526 = vector.extract_strided_slice %513 {offsets = [0, 0], sizes = [8, 32], strides = [1, 1]} : vector<8x96xf32> to vector<8x32xf32>
    %527 = arith.mulf %526, %521 : vector<8x32xf32>
    %528 = arith.addf %525, %527 : vector<8x32xf32>
    %529 = vector.extract_strided_slice %513 {offsets = [0, 64], sizes = [8, 32], strides = [1, 1]} : vector<8x96xf32> to vector<8x32xf32>
    %530 = math.tanh %528 : vector<8x32xf32>
    %531 = arith.mulf %529, %530 : vector<8x32xf32>
    %532 = vector.extract_strided_slice %519 {offsets = [0, 32], sizes = [8, 32], strides = [1, 1]} : vector<8x96xf32> to vector<8x32xf32>
    %533 = arith.mulf %532, %496 : vector<8x32xf32>
    %534 = vector.extract_strided_slice %519 {offsets = [0, 0], sizes = [8, 32], strides = [1, 1]} : vector<8x96xf32> to vector<8x32xf32>
    %535 = arith.mulf %534, %523 : vector<8x32xf32>
    %536 = arith.addf %533, %535 : vector<8x32xf32>
    %537 = vector.extract_strided_slice %519 {offsets = [0, 64], sizes = [8, 32], strides = [1, 1]} : vector<8x96xf32> to vector<8x32xf32>
    %538 = math.tanh %536 : vector<8x32xf32>
    %539 = arith.mulf %537, %538 : vector<8x32xf32>
    %c32_166 = arith.constant 32 : index
    %c0_167 = arith.constant 0 : index
    %540 = vector.load %arg9[%c32_166, %c0_167] : memref<64x64xf32, #tpu.memory_space<vmem>>, vector<8x32xf32>
    tpu.vector_store %arg9[%c32_166, %c0_167], %531 {strides = array<i32>} : memref<64x64xf32, #tpu.memory_space<vmem>>, vector<8x32xf32>,
    %c24_168 = arith.constant 24 : index
    %c32_169 = arith.constant 32 : index
    %541 = vector.load %arg9[%c24_168, %c32_169] : memref<64x64xf32, #tpu.memory_space<vmem>>, vector<8x32xf32>
    tpu.vector_store %arg9[%c24_168, %c32_169], %539 {strides = array<i32>} : memref<64x64xf32, #tpu.memory_space<vmem>>, vector<8x32xf32>,
    %c40_170 = arith.constant 40 : index
    %c0_171 = arith.constant 0 : index
    %542 = vector.load %arg8[%c40_170, %c0_171] : memref<64x256xf32, #tpu.memory_space<vmem>>, vector<8x128xf32>
    %cst_172 = arith.constant dense<0.000000e+00> : vector<8x128xf32>
    %543 = tpu.matmul %531, %339, %cst_172 {dimension_numbers = #tpu.dot_dimension_numbers<[1], [0], [0], [1], [0, 0, 1, 1], [], []>} : vector<8x32xf32>, vector<32x128xf32>, vector<8x128xf32> -> vector<8x128xf32>
    %544 = arith.addf %542, %543 : vector<8x128xf32>
    %c16_173 = arith.constant 16 : index
    %c128_174 = arith.constant 128 : index
    %545 = vector.load %arg8[%c16_173, %c128_174] : memref<64x256xf32, #tpu.memory_space<vmem>>, vector<8x128xf32>
    %cst_175 = arith.constant dense<0.000000e+00> : vector<8x128xf32>
    %546 = tpu.matmul %539, %340, %cst_175 {dimension_numbers = #tpu.dot_dimension_numbers<[1], [0], [0], [1], [0, 0, 1, 1], [], []>} : vector<8x32xf32>, vector<32x128xf32>, vector<8x128xf32> -> vector<8x128xf32>
    %547 = arith.addf %545, %546 : vector<8x128xf32>
    %548 = vector.extract_strided_slice %544 {offsets = [0, 0], sizes = [8, 96], strides = [1, 1]} : vector<8x128xf32> to vector<8x96xf32>
    %549 = arith.negf %548 : vector<8x96xf32>
    %550 = math.exp %549 : vector<8x96xf32>
    %cst_176 = arith.constant 1.000000e+00 : f32
    %551 = vector.broadcast %cst_176 : f32 to vector<8x96xf32>
    %552 = arith.addf %551, %550 : vector<8x96xf32>
    %553 = arith.divf %551, %552 : vector<8x96xf32>
    %554 = vector.extract_strided_slice %547 {offsets = [0, 0], sizes = [8, 96], strides = [1, 1]} : vector<8x128xf32> to vector<8x96xf32>
    %555 = arith.negf %554 : vector<8x96xf32>
    %556 = math.exp %555 : vector<8x96xf32>
    %cst_177 = arith.constant 1.000000e+00 : f32
    %557 = vector.broadcast %cst_177 : f32 to vector<8x96xf32>
    %558 = arith.addf %557, %556 : vector<8x96xf32>
    %559 = arith.divf %557, %558 : vector<8x96xf32>
    %560 = vector.extract_strided_slice %544 {offsets = [0, 96], sizes = [8, 32], strides = [1, 1]} : vector<8x128xf32> to vector<8x32xf32>
    %561 = math.tanh %560 : vector<8x32xf32>
    %562 = vector.extract_strided_slice %547 {offsets = [0, 96], sizes = [8, 32], strides = [1, 1]} : vector<8x128xf32> to vector<8x32xf32>
    %563 = math.tanh %562 : vector<8x32xf32>
    %564 = vector.extract_strided_slice %553 {offsets = [0, 32], sizes = [8, 32], strides = [1, 1]} : vector<8x96xf32> to vector<8x32xf32>
    %565 = arith.mulf %564, %528 : vector<8x32xf32>
    %566 = vector.extract_strided_slice %553 {offsets = [0, 0], sizes = [8, 32], strides = [1, 1]} : vector<8x96xf32> to vector<8x32xf32>
    %567 = arith.mulf %566, %561 : vector<8x32xf32>
    %568 = arith.addf %565, %567 : vector<8x32xf32>
    %569 = vector.extract_strided_slice %553 {offsets = [0, 64], sizes = [8, 32], strides = [1, 1]} : vector<8x96xf32> to vector<8x32xf32>
    %570 = math.tanh %568 : vector<8x32xf32>
    %571 = arith.mulf %569, %570 : vector<8x32xf32>
    %572 = vector.extract_strided_slice %559 {offsets = [0, 32], sizes = [8, 32], strides = [1, 1]} : vector<8x96xf32> to vector<8x32xf32>
    %573 = arith.mulf %572, %536 : vector<8x32xf32>
    %574 = vector.extract_strided_slice %559 {offsets = [0, 0], sizes = [8, 32], strides = [1, 1]} : vector<8x96xf32> to vector<8x32xf32>
    %575 = arith.mulf %574, %563 : vector<8x32xf32>
    %576 = arith.addf %573, %575 : vector<8x32xf32>
    %577 = vector.extract_strided_slice %559 {offsets = [0, 64], sizes = [8, 32], strides = [1, 1]} : vector<8x96xf32> to vector<8x32xf32>
    %578 = math.tanh %576 : vector<8x32xf32>
    %579 = arith.mulf %577, %578 : vector<8x32xf32>
    %c40_178 = arith.constant 40 : index
    %c0_179 = arith.constant 0 : index
    %580 = vector.load %arg9[%c40_178, %c0_179] : memref<64x64xf32, #tpu.memory_space<vmem>>, vector<8x32xf32>
    tpu.vector_store %arg9[%c40_178, %c0_179], %571 {strides = array<i32>} : memref<64x64xf32, #tpu.memory_space<vmem>>, vector<8x32xf32>,
    %c16_180 = arith.constant 16 : index
    %c32_181 = arith.constant 32 : index
    %581 = vector.load %arg9[%c16_180, %c32_181] : memref<64x64xf32, #tpu.memory_space<vmem>>, vector<8x32xf32>
    tpu.vector_store %arg9[%c16_180, %c32_181], %579 {strides = array<i32>} : memref<64x64xf32, #tpu.memory_space<vmem>>, vector<8x32xf32>,
    %c48_182 = arith.constant 48 : index
    %c0_183 = arith.constant 0 : index
    %582 = vector.load %arg8[%c48_182, %c0_183] : memref<64x256xf32, #tpu.memory_space<vmem>>, vector<8x128xf32>
    %cst_184 = arith.constant dense<0.000000e+00> : vector<8x128xf32>
    %583 = tpu.matmul %571, %339, %cst_184 {dimension_numbers = #tpu.dot_dimension_numbers<[1], [0], [0], [1], [0, 0, 1, 1], [], []>} : vector<8x32xf32>, vector<32x128xf32>, vector<8x128xf32> -> vector<8x128xf32>
    %584 = arith.addf %582, %583 : vector<8x128xf32>
    %c8_185 = arith.constant 8 : index
    %c128_186 = arith.constant 128 : index
    %585 = vector.load %arg8[%c8_185, %c128_186] : memref<64x256xf32, #tpu.memory_space<vmem>>, vector<8x128xf32>
    %cst_187 = arith.constant dense<0.000000e+00> : vector<8x128xf32>
    %586 = tpu.matmul %579, %340, %cst_187 {dimension_numbers = #tpu.dot_dimension_numbers<[1], [0], [0], [1], [0, 0, 1, 1], [], []>} : vector<8x32xf32>, vector<32x128xf32>, vector<8x128xf32> -> vector<8x128xf32>
    %587 = arith.addf %585, %586 : vector<8x128xf32>
    %588 = vector.extract_strided_slice %584 {offsets = [0, 0], sizes = [8, 96], strides = [1, 1]} : vector<8x128xf32> to vector<8x96xf32>
    %589 = arith.negf %588 : vector<8x96xf32>
    %590 = math.exp %589 : vector<8x96xf32>
    %cst_188 = arith.constant 1.000000e+00 : f32
    %591 = vector.broadcast %cst_188 : f32 to vector<8x96xf32>
    %592 = arith.addf %591, %590 : vector<8x96xf32>
    %593 = arith.divf %591, %592 : vector<8x96xf32>
    %594 = vector.extract_strided_slice %587 {offsets = [0, 0], sizes = [8, 96], strides = [1, 1]} : vector<8x128xf32> to vector<8x96xf32>
    %595 = arith.negf %594 : vector<8x96xf32>
    %596 = math.exp %595 : vector<8x96xf32>
    %cst_189 = arith.constant 1.000000e+00 : f32
    %597 = vector.broadcast %cst_189 : f32 to vector<8x96xf32>
    %598 = arith.addf %597, %596 : vector<8x96xf32>
    %599 = arith.divf %597, %598 : vector<8x96xf32>
    %600 = vector.extract_strided_slice %584 {offsets = [0, 96], sizes = [8, 32], strides = [1, 1]} : vector<8x128xf32> to vector<8x32xf32>
    %601 = math.tanh %600 : vector<8x32xf32>
    %602 = vector.extract_strided_slice %587 {offsets = [0, 96], sizes = [8, 32], strides = [1, 1]} : vector<8x128xf32> to vector<8x32xf32>
    %603 = math.tanh %602 : vector<8x32xf32>
    %604 = vector.extract_strided_slice %593 {offsets = [0, 32], sizes = [8, 32], strides = [1, 1]} : vector<8x96xf32> to vector<8x32xf32>
    %605 = arith.mulf %604, %568 : vector<8x32xf32>
    %606 = vector.extract_strided_slice %593 {offsets = [0, 0], sizes = [8, 32], strides = [1, 1]} : vector<8x96xf32> to vector<8x32xf32>
    %607 = arith.mulf %606, %601 : vector<8x32xf32>
    %608 = arith.addf %605, %607 : vector<8x32xf32>
    %609 = vector.extract_strided_slice %593 {offsets = [0, 64], sizes = [8, 32], strides = [1, 1]} : vector<8x96xf32> to vector<8x32xf32>
    %610 = math.tanh %608 : vector<8x32xf32>
    %611 = arith.mulf %609, %610 : vector<8x32xf32>
    %612 = vector.extract_strided_slice %599 {offsets = [0, 32], sizes = [8, 32], strides = [1, 1]} : vector<8x96xf32> to vector<8x32xf32>
    %613 = arith.mulf %612, %576 : vector<8x32xf32>
    %614 = vector.extract_strided_slice %599 {offsets = [0, 0], sizes = [8, 32], strides = [1, 1]} : vector<8x96xf32> to vector<8x32xf32>
    %615 = arith.mulf %614, %603 : vector<8x32xf32>
    %616 = arith.addf %613, %615 : vector<8x32xf32>
    %617 = vector.extract_strided_slice %599 {offsets = [0, 64], sizes = [8, 32], strides = [1, 1]} : vector<8x96xf32> to vector<8x32xf32>
    %618 = math.tanh %616 : vector<8x32xf32>
    %619 = arith.mulf %617, %618 : vector<8x32xf32>
    %c48_190 = arith.constant 48 : index
    %c0_191 = arith.constant 0 : index
    %620 = vector.load %arg9[%c48_190, %c0_191] : memref<64x64xf32, #tpu.memory_space<vmem>>, vector<8x32xf32>
    tpu.vector_store %arg9[%c48_190, %c0_191], %611 {strides = array<i32>} : memref<64x64xf32, #tpu.memory_space<vmem>>, vector<8x32xf32>,
    %c8_192 = arith.constant 8 : index
    %c32_193 = arith.constant 32 : index
    %621 = vector.load %arg9[%c8_192, %c32_193] : memref<64x64xf32, #tpu.memory_space<vmem>>, vector<8x32xf32>
    tpu.vector_store %arg9[%c8_192, %c32_193], %619 {strides = array<i32>} : memref<64x64xf32, #tpu.memory_space<vmem>>, vector<8x32xf32>,
    %c56_194 = arith.constant 56 : index
    %c0_195 = arith.constant 0 : index
    %622 = vector.load %arg8[%c56_194, %c0_195] : memref<64x256xf32, #tpu.memory_space<vmem>>, vector<8x128xf32>
    %cst_196 = arith.constant dense<0.000000e+00> : vector<8x128xf32>
    %623 = tpu.matmul %611, %339, %cst_196 {dimension_numbers = #tpu.dot_dimension_numbers<[1], [0], [0], [1], [0, 0, 1, 1], [], []>} : vector<8x32xf32>, vector<32x128xf32>, vector<8x128xf32> -> vector<8x128xf32>
    %624 = arith.addf %622, %623 : vector<8x128xf32>
    %c0_197 = arith.constant 0 : index
    %c128_198 = arith.constant 128 : index
    %625 = vector.load %arg8[%c0_197, %c128_198] : memref<64x256xf32, #tpu.memory_space<vmem>>, vector<8x128xf32>
    %cst_199 = arith.constant dense<0.000000e+00> : vector<8x128xf32>
    %626 = tpu.matmul %619, %340, %cst_199 {dimension_numbers = #tpu.dot_dimension_numbers<[1], [0], [0], [1], [0, 0, 1, 1], [], []>} : vector<8x32xf32>, vector<32x128xf32>, vector<8x128xf32> -> vector<8x128xf32>
    %627 = arith.addf %625, %626 : vector<8x128xf32>
    %628 = vector.extract_strided_slice %624 {offsets = [0, 0], sizes = [8, 96], strides = [1, 1]} : vector<8x128xf32> to vector<8x96xf32>
    %629 = arith.negf %628 : vector<8x96xf32>
    %630 = math.exp %629 : vector<8x96xf32>
    %cst_200 = arith.constant 1.000000e+00 : f32
    %631 = vector.broadcast %cst_200 : f32 to vector<8x96xf32>
    %632 = arith.addf %631, %630 : vector<8x96xf32>
    %633 = arith.divf %631, %632 : vector<8x96xf32>
    %634 = vector.extract_strided_slice %627 {offsets = [0, 0], sizes = [8, 96], strides = [1, 1]} : vector<8x128xf32> to vector<8x96xf32>
    %635 = arith.negf %634 : vector<8x96xf32>
    %636 = math.exp %635 : vector<8x96xf32>
    %cst_201 = arith.constant 1.000000e+00 : f32
    %637 = vector.broadcast %cst_201 : f32 to vector<8x96xf32>
    %638 = arith.addf %637, %636 : vector<8x96xf32>
    %639 = arith.divf %637, %638 : vector<8x96xf32>
    %640 = vector.extract_strided_slice %624 {offsets = [0, 96], sizes = [8, 32], strides = [1, 1]} : vector<8x128xf32> to vector<8x32xf32>
    %641 = math.tanh %640 : vector<8x32xf32>
    %642 = vector.extract_strided_slice %627 {offsets = [0, 96], sizes = [8, 32], strides = [1, 1]} : vector<8x128xf32> to vector<8x32xf32>
    %643 = math.tanh %642 : vector<8x32xf32>
    %644 = vector.extract_strided_slice %633 {offsets = [0, 32], sizes = [8, 32], strides = [1, 1]} : vector<8x96xf32> to vector<8x32xf32>
    %645 = arith.mulf %644, %608 : vector<8x32xf32>
    %646 = vector.extract_strided_slice %633 {offsets = [0, 0], sizes = [8, 32], strides = [1, 1]} : vector<8x96xf32> to vector<8x32xf32>
    %647 = arith.mulf %646, %641 : vector<8x32xf32>
    %648 = arith.addf %645, %647 : vector<8x32xf32>
    %649 = vector.extract_strided_slice %633 {offsets = [0, 64], sizes = [8, 32], strides = [1, 1]} : vector<8x96xf32> to vector<8x32xf32>
    %650 = math.tanh %648 : vector<8x32xf32>
    %651 = arith.mulf %649, %650 : vector<8x32xf32>
    %652 = vector.extract_strided_slice %639 {offsets = [0, 32], sizes = [8, 32], strides = [1, 1]} : vector<8x96xf32> to vector<8x32xf32>
    %653 = arith.mulf %652, %616 : vector<8x32xf32>
    %654 = vector.extract_strided_slice %639 {offsets = [0, 0], sizes = [8, 32], strides = [1, 1]} : vector<8x96xf32> to vector<8x32xf32>
    %655 = arith.mulf %654, %643 : vector<8x32xf32>
    %656 = arith.addf %653, %655 : vector<8x32xf32>
    %657 = vector.extract_strided_slice %639 {offsets = [0, 64], sizes = [8, 32], strides = [1, 1]} : vector<8x96xf32> to vector<8x32xf32>
    %658 = math.tanh %656 : vector<8x32xf32>
    %659 = arith.mulf %657, %658 : vector<8x32xf32>
    %c56_202 = arith.constant 56 : index
    %c0_203 = arith.constant 0 : index
    %660 = vector.load %arg9[%c56_202, %c0_203] : memref<64x64xf32, #tpu.memory_space<vmem>>, vector<8x32xf32>
    tpu.vector_store %arg9[%c56_202, %c0_203], %651 {strides = array<i32>} : memref<64x64xf32, #tpu.memory_space<vmem>>, vector<8x32xf32>,
    %c0_204 = arith.constant 0 : index
    %c32_205 = arith.constant 32 : index
    %661 = vector.load %arg9[%c0_204, %c32_205] : memref<64x64xf32, #tpu.memory_space<vmem>>, vector<8x32xf32>
    tpu.vector_store %arg9[%c0_204, %c32_205], %659 {strides = array<i32>} : memref<64x64xf32, #tpu.memory_space<vmem>>, vector<8x32xf32>,
    %c0_206 = arith.constant 0 : index
    %c0_207 = arith.constant 0 : index
    %662 = vector.load %arg7[%c0_206, %c0_207] : memref<8x64xf32, #tpu.memory_space<vmem>>, vector<8x32xf32>
    tpu.vector_store %arg7[%c0_206, %c0_207], %651 {strides = array<i32>} : memref<8x64xf32, #tpu.memory_space<vmem>>, vector<8x32xf32>,
    %c0_208 = arith.constant 0 : index
    %c32_209 = arith.constant 32 : index
    %663 = vector.load %arg7[%c0_208, %c32_209] : memref<8x64xf32, #tpu.memory_space<vmem>>, vector<8x32xf32>
    tpu.vector_store %arg7[%c0_208, %c32_209], %659 {strides = array<i32>} : memref<8x64xf32, #tpu.memory_space<vmem>>, vector<8x32xf32>,
    return
  }
}

module attributes {stable_mosaic.version = 11 : i64} {
  func.func @_dec_lstm_kernel(%arg0: memref<64x16xf32, #tpu.memory_space<vmem>>, %arg1: memref<16x128xf32, #tpu.memory_space<vmem>>, %arg2: memref<32x128xf32, #tpu.memory_space<vmem>>, %arg3: memref<1x128xf32, #tpu.memory_space<vmem>>, %arg4: memref<32x128xf32, #tpu.memory_space<vmem>>, %arg5: memref<32x128xf32, #tpu.memory_space<vmem>>, %arg6: memref<1x128xf32, #tpu.memory_space<vmem>>, %arg7: memref<64x32xf32, #tpu.memory_space<vmem>>, %arg8: memref<64x128xf32, #tpu.memory_space<vmem>>) attributes {dimension_semantics = [], scalar_prefetch = 0 : i64, scratch_operands = 1 : i64, tpu.core_type = #tpu.core_type<tc>} {
    %c0 = arith.constant 0 : index
    %c0_0 = arith.constant 0 : index
    %0 = vector.load %arg1[%c0, %c0_0] : memref<16x128xf32, #tpu.memory_space<vmem>>, vector<16x128xf32>
    %c0_1 = arith.constant 0 : index
    %c0_2 = arith.constant 0 : index
    %1 = vector.load %arg2[%c0_1, %c0_2] : memref<32x128xf32, #tpu.memory_space<vmem>>, vector<32x128xf32>
    %c0_3 = arith.constant 0 : index
    %c0_4 = arith.constant 0 : index
    %2 = vector.load %arg3[%c0_3, %c0_4] : memref<1x128xf32, #tpu.memory_space<vmem>>, vector<1x128xf32>
    %c0_5 = arith.constant 0 : index
    %c0_6 = arith.constant 0 : index
    %3 = vector.load %arg0[%c0_5, %c0_6] : memref<64x16xf32, #tpu.memory_space<vmem>>, vector<64x16xf32>
    %cst = arith.constant dense<0.000000e+00> : vector<64x128xf32>
    %4 = tpu.matmul %3, %0, %cst {dimension_numbers = #tpu.dot_dimension_numbers<[1], [0], [0], [1], [0, 0, 1, 1], [], []>} : vector<64x16xf32>, vector<16x128xf32>, vector<64x128xf32> -> vector<64x128xf32>
    %5 = vector.broadcast %2 : vector<1x128xf32> to vector<64x128xf32>
    %6 = arith.addf %4, %5 : vector<64x128xf32>
    %c0_7 = arith.constant 0 : index
    %c0_8 = arith.constant 0 : index
    %7 = vector.load %arg8[%c0_7, %c0_8] : memref<64x128xf32, #tpu.memory_space<vmem>>, vector<64x128xf32>
    tpu.vector_store %arg8[%c0_7, %c0_8], %6 {strides = array<i32>} : memref<64x128xf32, #tpu.memory_space<vmem>>, vector<64x128xf32>,
    %cst_9 = arith.constant 0.000000e+00 : f32
    %8 = vector.broadcast %cst_9 : f32 to vector<8x32xf32>
    %c0_10 = arith.constant 0 : index
    %c0_11 = arith.constant 0 : index
    %9 = vector.load %arg8[%c0_10, %c0_11] : memref<64x128xf32, #tpu.memory_space<vmem>>, vector<8x128xf32>
    %cst_12 = arith.constant dense<0.000000e+00> : vector<8x128xf32>
    %10 = tpu.matmul %8, %1, %cst_12 {dimension_numbers = #tpu.dot_dimension_numbers<[1], [0], [0], [1], [0, 0, 1, 1], [], []>} : vector<8x32xf32>, vector<32x128xf32>, vector<8x128xf32> -> vector<8x128xf32>
    %11 = arith.addf %9, %10 : vector<8x128xf32>
    %12 = vector.extract_strided_slice %11 {offsets = [0, 0], sizes = [8, 96], strides = [1, 1]} : vector<8x128xf32> to vector<8x96xf32>
    %13 = arith.negf %12 : vector<8x96xf32>
    %14 = math.exp %13 : vector<8x96xf32>
    %cst_13 = arith.constant 1.000000e+00 : f32
    %15 = vector.broadcast %cst_13 : f32 to vector<8x96xf32>
    %16 = arith.addf %15, %14 : vector<8x96xf32>
    %17 = arith.divf %15, %16 : vector<8x96xf32>
    %18 = vector.extract_strided_slice %11 {offsets = [0, 96], sizes = [8, 32], strides = [1, 1]} : vector<8x128xf32> to vector<8x32xf32>
    %19 = math.tanh %18 : vector<8x32xf32>
    %20 = vector.extract_strided_slice %17 {offsets = [0, 32], sizes = [8, 32], strides = [1, 1]} : vector<8x96xf32> to vector<8x32xf32>
    %21 = arith.mulf %20, %8 : vector<8x32xf32>
    %22 = vector.extract_strided_slice %17 {offsets = [0, 0], sizes = [8, 32], strides = [1, 1]} : vector<8x96xf32> to vector<8x32xf32>
    %23 = arith.mulf %22, %19 : vector<8x32xf32>
    %24 = arith.addf %21, %23 : vector<8x32xf32>
    %25 = vector.extract_strided_slice %17 {offsets = [0, 64], sizes = [8, 32], strides = [1, 1]} : vector<8x96xf32> to vector<8x32xf32>
    %26 = math.tanh %24 : vector<8x32xf32>
    %27 = arith.mulf %25, %26 : vector<8x32xf32>
    %c0_14 = arith.constant 0 : index
    %c0_15 = arith.constant 0 : index
    %28 = vector.load %arg7[%c0_14, %c0_15] : memref<64x32xf32, #tpu.memory_space<vmem>>, vector<8x32xf32>
    tpu.vector_store %arg7[%c0_14, %c0_15], %27 {strides = array<i32>} : memref<64x32xf32, #tpu.memory_space<vmem>>, vector<8x32xf32>,
    %c8 = arith.constant 8 : index
    %c0_16 = arith.constant 0 : index
    %29 = vector.load %arg8[%c8, %c0_16] : memref<64x128xf32, #tpu.memory_space<vmem>>, vector<8x128xf32>
    %cst_17 = arith.constant dense<0.000000e+00> : vector<8x128xf32>
    %30 = tpu.matmul %27, %1, %cst_17 {dimension_numbers = #tpu.dot_dimension_numbers<[1], [0], [0], [1], [0, 0, 1, 1], [], []>} : vector<8x32xf32>, vector<32x128xf32>, vector<8x128xf32> -> vector<8x128xf32>
    %31 = arith.addf %29, %30 : vector<8x128xf32>
    %32 = vector.extract_strided_slice %31 {offsets = [0, 0], sizes = [8, 96], strides = [1, 1]} : vector<8x128xf32> to vector<8x96xf32>
    %33 = arith.negf %32 : vector<8x96xf32>
    %34 = math.exp %33 : vector<8x96xf32>
    %cst_18 = arith.constant 1.000000e+00 : f32
    %35 = vector.broadcast %cst_18 : f32 to vector<8x96xf32>
    %36 = arith.addf %35, %34 : vector<8x96xf32>
    %37 = arith.divf %35, %36 : vector<8x96xf32>
    %38 = vector.extract_strided_slice %31 {offsets = [0, 96], sizes = [8, 32], strides = [1, 1]} : vector<8x128xf32> to vector<8x32xf32>
    %39 = math.tanh %38 : vector<8x32xf32>
    %40 = vector.extract_strided_slice %37 {offsets = [0, 32], sizes = [8, 32], strides = [1, 1]} : vector<8x96xf32> to vector<8x32xf32>
    %41 = arith.mulf %40, %24 : vector<8x32xf32>
    %42 = vector.extract_strided_slice %37 {offsets = [0, 0], sizes = [8, 32], strides = [1, 1]} : vector<8x96xf32> to vector<8x32xf32>
    %43 = arith.mulf %42, %39 : vector<8x32xf32>
    %44 = arith.addf %41, %43 : vector<8x32xf32>
    %45 = vector.extract_strided_slice %37 {offsets = [0, 64], sizes = [8, 32], strides = [1, 1]} : vector<8x96xf32> to vector<8x32xf32>
    %46 = math.tanh %44 : vector<8x32xf32>
    %47 = arith.mulf %45, %46 : vector<8x32xf32>
    %c8_19 = arith.constant 8 : index
    %c0_20 = arith.constant 0 : index
    %48 = vector.load %arg7[%c8_19, %c0_20] : memref<64x32xf32, #tpu.memory_space<vmem>>, vector<8x32xf32>
    tpu.vector_store %arg7[%c8_19, %c0_20], %47 {strides = array<i32>} : memref<64x32xf32, #tpu.memory_space<vmem>>, vector<8x32xf32>,
    %c16 = arith.constant 16 : index
    %c0_21 = arith.constant 0 : index
    %49 = vector.load %arg8[%c16, %c0_21] : memref<64x128xf32, #tpu.memory_space<vmem>>, vector<8x128xf32>
    %cst_22 = arith.constant dense<0.000000e+00> : vector<8x128xf32>
    %50 = tpu.matmul %47, %1, %cst_22 {dimension_numbers = #tpu.dot_dimension_numbers<[1], [0], [0], [1], [0, 0, 1, 1], [], []>} : vector<8x32xf32>, vector<32x128xf32>, vector<8x128xf32> -> vector<8x128xf32>
    %51 = arith.addf %49, %50 : vector<8x128xf32>
    %52 = vector.extract_strided_slice %51 {offsets = [0, 0], sizes = [8, 96], strides = [1, 1]} : vector<8x128xf32> to vector<8x96xf32>
    %53 = arith.negf %52 : vector<8x96xf32>
    %54 = math.exp %53 : vector<8x96xf32>
    %cst_23 = arith.constant 1.000000e+00 : f32
    %55 = vector.broadcast %cst_23 : f32 to vector<8x96xf32>
    %56 = arith.addf %55, %54 : vector<8x96xf32>
    %57 = arith.divf %55, %56 : vector<8x96xf32>
    %58 = vector.extract_strided_slice %51 {offsets = [0, 96], sizes = [8, 32], strides = [1, 1]} : vector<8x128xf32> to vector<8x32xf32>
    %59 = math.tanh %58 : vector<8x32xf32>
    %60 = vector.extract_strided_slice %57 {offsets = [0, 32], sizes = [8, 32], strides = [1, 1]} : vector<8x96xf32> to vector<8x32xf32>
    %61 = arith.mulf %60, %44 : vector<8x32xf32>
    %62 = vector.extract_strided_slice %57 {offsets = [0, 0], sizes = [8, 32], strides = [1, 1]} : vector<8x96xf32> to vector<8x32xf32>
    %63 = arith.mulf %62, %59 : vector<8x32xf32>
    %64 = arith.addf %61, %63 : vector<8x32xf32>
    %65 = vector.extract_strided_slice %57 {offsets = [0, 64], sizes = [8, 32], strides = [1, 1]} : vector<8x96xf32> to vector<8x32xf32>
    %66 = math.tanh %64 : vector<8x32xf32>
    %67 = arith.mulf %65, %66 : vector<8x32xf32>
    %c16_24 = arith.constant 16 : index
    %c0_25 = arith.constant 0 : index
    %68 = vector.load %arg7[%c16_24, %c0_25] : memref<64x32xf32, #tpu.memory_space<vmem>>, vector<8x32xf32>
    tpu.vector_store %arg7[%c16_24, %c0_25], %67 {strides = array<i32>} : memref<64x32xf32, #tpu.memory_space<vmem>>, vector<8x32xf32>,
    %c24 = arith.constant 24 : index
    %c0_26 = arith.constant 0 : index
    %69 = vector.load %arg8[%c24, %c0_26] : memref<64x128xf32, #tpu.memory_space<vmem>>, vector<8x128xf32>
    %cst_27 = arith.constant dense<0.000000e+00> : vector<8x128xf32>
    %70 = tpu.matmul %67, %1, %cst_27 {dimension_numbers = #tpu.dot_dimension_numbers<[1], [0], [0], [1], [0, 0, 1, 1], [], []>} : vector<8x32xf32>, vector<32x128xf32>, vector<8x128xf32> -> vector<8x128xf32>
    %71 = arith.addf %69, %70 : vector<8x128xf32>
    %72 = vector.extract_strided_slice %71 {offsets = [0, 0], sizes = [8, 96], strides = [1, 1]} : vector<8x128xf32> to vector<8x96xf32>
    %73 = arith.negf %72 : vector<8x96xf32>
    %74 = math.exp %73 : vector<8x96xf32>
    %cst_28 = arith.constant 1.000000e+00 : f32
    %75 = vector.broadcast %cst_28 : f32 to vector<8x96xf32>
    %76 = arith.addf %75, %74 : vector<8x96xf32>
    %77 = arith.divf %75, %76 : vector<8x96xf32>
    %78 = vector.extract_strided_slice %71 {offsets = [0, 96], sizes = [8, 32], strides = [1, 1]} : vector<8x128xf32> to vector<8x32xf32>
    %79 = math.tanh %78 : vector<8x32xf32>
    %80 = vector.extract_strided_slice %77 {offsets = [0, 32], sizes = [8, 32], strides = [1, 1]} : vector<8x96xf32> to vector<8x32xf32>
    %81 = arith.mulf %80, %64 : vector<8x32xf32>
    %82 = vector.extract_strided_slice %77 {offsets = [0, 0], sizes = [8, 32], strides = [1, 1]} : vector<8x96xf32> to vector<8x32xf32>
    %83 = arith.mulf %82, %79 : vector<8x32xf32>
    %84 = arith.addf %81, %83 : vector<8x32xf32>
    %85 = vector.extract_strided_slice %77 {offsets = [0, 64], sizes = [8, 32], strides = [1, 1]} : vector<8x96xf32> to vector<8x32xf32>
    %86 = math.tanh %84 : vector<8x32xf32>
    %87 = arith.mulf %85, %86 : vector<8x32xf32>
    %c24_29 = arith.constant 24 : index
    %c0_30 = arith.constant 0 : index
    %88 = vector.load %arg7[%c24_29, %c0_30] : memref<64x32xf32, #tpu.memory_space<vmem>>, vector<8x32xf32>
    tpu.vector_store %arg7[%c24_29, %c0_30], %87 {strides = array<i32>} : memref<64x32xf32, #tpu.memory_space<vmem>>, vector<8x32xf32>,
    %c32 = arith.constant 32 : index
    %c0_31 = arith.constant 0 : index
    %89 = vector.load %arg8[%c32, %c0_31] : memref<64x128xf32, #tpu.memory_space<vmem>>, vector<8x128xf32>
    %cst_32 = arith.constant dense<0.000000e+00> : vector<8x128xf32>
    %90 = tpu.matmul %87, %1, %cst_32 {dimension_numbers = #tpu.dot_dimension_numbers<[1], [0], [0], [1], [0, 0, 1, 1], [], []>} : vector<8x32xf32>, vector<32x128xf32>, vector<8x128xf32> -> vector<8x128xf32>
    %91 = arith.addf %89, %90 : vector<8x128xf32>
    %92 = vector.extract_strided_slice %91 {offsets = [0, 0], sizes = [8, 96], strides = [1, 1]} : vector<8x128xf32> to vector<8x96xf32>
    %93 = arith.negf %92 : vector<8x96xf32>
    %94 = math.exp %93 : vector<8x96xf32>
    %cst_33 = arith.constant 1.000000e+00 : f32
    %95 = vector.broadcast %cst_33 : f32 to vector<8x96xf32>
    %96 = arith.addf %95, %94 : vector<8x96xf32>
    %97 = arith.divf %95, %96 : vector<8x96xf32>
    %98 = vector.extract_strided_slice %91 {offsets = [0, 96], sizes = [8, 32], strides = [1, 1]} : vector<8x128xf32> to vector<8x32xf32>
    %99 = math.tanh %98 : vector<8x32xf32>
    %100 = vector.extract_strided_slice %97 {offsets = [0, 32], sizes = [8, 32], strides = [1, 1]} : vector<8x96xf32> to vector<8x32xf32>
    %101 = arith.mulf %100, %84 : vector<8x32xf32>
    %102 = vector.extract_strided_slice %97 {offsets = [0, 0], sizes = [8, 32], strides = [1, 1]} : vector<8x96xf32> to vector<8x32xf32>
    %103 = arith.mulf %102, %99 : vector<8x32xf32>
    %104 = arith.addf %101, %103 : vector<8x32xf32>
    %105 = vector.extract_strided_slice %97 {offsets = [0, 64], sizes = [8, 32], strides = [1, 1]} : vector<8x96xf32> to vector<8x32xf32>
    %106 = math.tanh %104 : vector<8x32xf32>
    %107 = arith.mulf %105, %106 : vector<8x32xf32>
    %c32_34 = arith.constant 32 : index
    %c0_35 = arith.constant 0 : index
    %108 = vector.load %arg7[%c32_34, %c0_35] : memref<64x32xf32, #tpu.memory_space<vmem>>, vector<8x32xf32>
    tpu.vector_store %arg7[%c32_34, %c0_35], %107 {strides = array<i32>} : memref<64x32xf32, #tpu.memory_space<vmem>>, vector<8x32xf32>,
    %c40 = arith.constant 40 : index
    %c0_36 = arith.constant 0 : index
    %109 = vector.load %arg8[%c40, %c0_36] : memref<64x128xf32, #tpu.memory_space<vmem>>, vector<8x128xf32>
    %cst_37 = arith.constant dense<0.000000e+00> : vector<8x128xf32>
    %110 = tpu.matmul %107, %1, %cst_37 {dimension_numbers = #tpu.dot_dimension_numbers<[1], [0], [0], [1], [0, 0, 1, 1], [], []>} : vector<8x32xf32>, vector<32x128xf32>, vector<8x128xf32> -> vector<8x128xf32>
    %111 = arith.addf %109, %110 : vector<8x128xf32>
    %112 = vector.extract_strided_slice %111 {offsets = [0, 0], sizes = [8, 96], strides = [1, 1]} : vector<8x128xf32> to vector<8x96xf32>
    %113 = arith.negf %112 : vector<8x96xf32>
    %114 = math.exp %113 : vector<8x96xf32>
    %cst_38 = arith.constant 1.000000e+00 : f32
    %115 = vector.broadcast %cst_38 : f32 to vector<8x96xf32>
    %116 = arith.addf %115, %114 : vector<8x96xf32>
    %117 = arith.divf %115, %116 : vector<8x96xf32>
    %118 = vector.extract_strided_slice %111 {offsets = [0, 96], sizes = [8, 32], strides = [1, 1]} : vector<8x128xf32> to vector<8x32xf32>
    %119 = math.tanh %118 : vector<8x32xf32>
    %120 = vector.extract_strided_slice %117 {offsets = [0, 32], sizes = [8, 32], strides = [1, 1]} : vector<8x96xf32> to vector<8x32xf32>
    %121 = arith.mulf %120, %104 : vector<8x32xf32>
    %122 = vector.extract_strided_slice %117 {offsets = [0, 0], sizes = [8, 32], strides = [1, 1]} : vector<8x96xf32> to vector<8x32xf32>
    %123 = arith.mulf %122, %119 : vector<8x32xf32>
    %124 = arith.addf %121, %123 : vector<8x32xf32>
    %125 = vector.extract_strided_slice %117 {offsets = [0, 64], sizes = [8, 32], strides = [1, 1]} : vector<8x96xf32> to vector<8x32xf32>
    %126 = math.tanh %124 : vector<8x32xf32>
    %127 = arith.mulf %125, %126 : vector<8x32xf32>
    %c40_39 = arith.constant 40 : index
    %c0_40 = arith.constant 0 : index
    %128 = vector.load %arg7[%c40_39, %c0_40] : memref<64x32xf32, #tpu.memory_space<vmem>>, vector<8x32xf32>
    tpu.vector_store %arg7[%c40_39, %c0_40], %127 {strides = array<i32>} : memref<64x32xf32, #tpu.memory_space<vmem>>, vector<8x32xf32>,
    %c48 = arith.constant 48 : index
    %c0_41 = arith.constant 0 : index
    %129 = vector.load %arg8[%c48, %c0_41] : memref<64x128xf32, #tpu.memory_space<vmem>>, vector<8x128xf32>
    %cst_42 = arith.constant dense<0.000000e+00> : vector<8x128xf32>
    %130 = tpu.matmul %127, %1, %cst_42 {dimension_numbers = #tpu.dot_dimension_numbers<[1], [0], [0], [1], [0, 0, 1, 1], [], []>} : vector<8x32xf32>, vector<32x128xf32>, vector<8x128xf32> -> vector<8x128xf32>
    %131 = arith.addf %129, %130 : vector<8x128xf32>
    %132 = vector.extract_strided_slice %131 {offsets = [0, 0], sizes = [8, 96], strides = [1, 1]} : vector<8x128xf32> to vector<8x96xf32>
    %133 = arith.negf %132 : vector<8x96xf32>
    %134 = math.exp %133 : vector<8x96xf32>
    %cst_43 = arith.constant 1.000000e+00 : f32
    %135 = vector.broadcast %cst_43 : f32 to vector<8x96xf32>
    %136 = arith.addf %135, %134 : vector<8x96xf32>
    %137 = arith.divf %135, %136 : vector<8x96xf32>
    %138 = vector.extract_strided_slice %131 {offsets = [0, 96], sizes = [8, 32], strides = [1, 1]} : vector<8x128xf32> to vector<8x32xf32>
    %139 = math.tanh %138 : vector<8x32xf32>
    %140 = vector.extract_strided_slice %137 {offsets = [0, 32], sizes = [8, 32], strides = [1, 1]} : vector<8x96xf32> to vector<8x32xf32>
    %141 = arith.mulf %140, %124 : vector<8x32xf32>
    %142 = vector.extract_strided_slice %137 {offsets = [0, 0], sizes = [8, 32], strides = [1, 1]} : vector<8x96xf32> to vector<8x32xf32>
    %143 = arith.mulf %142, %139 : vector<8x32xf32>
    %144 = arith.addf %141, %143 : vector<8x32xf32>
    %145 = vector.extract_strided_slice %137 {offsets = [0, 64], sizes = [8, 32], strides = [1, 1]} : vector<8x96xf32> to vector<8x32xf32>
    %146 = math.tanh %144 : vector<8x32xf32>
    %147 = arith.mulf %145, %146 : vector<8x32xf32>
    %c48_44 = arith.constant 48 : index
    %c0_45 = arith.constant 0 : index
    %148 = vector.load %arg7[%c48_44, %c0_45] : memref<64x32xf32, #tpu.memory_space<vmem>>, vector<8x32xf32>
    tpu.vector_store %arg7[%c48_44, %c0_45], %147 {strides = array<i32>} : memref<64x32xf32, #tpu.memory_space<vmem>>, vector<8x32xf32>,
    %c56 = arith.constant 56 : index
    %c0_46 = arith.constant 0 : index
    %149 = vector.load %arg8[%c56, %c0_46] : memref<64x128xf32, #tpu.memory_space<vmem>>, vector<8x128xf32>
    %cst_47 = arith.constant dense<0.000000e+00> : vector<8x128xf32>
    %150 = tpu.matmul %147, %1, %cst_47 {dimension_numbers = #tpu.dot_dimension_numbers<[1], [0], [0], [1], [0, 0, 1, 1], [], []>} : vector<8x32xf32>, vector<32x128xf32>, vector<8x128xf32> -> vector<8x128xf32>
    %151 = arith.addf %149, %150 : vector<8x128xf32>
    %152 = vector.extract_strided_slice %151 {offsets = [0, 0], sizes = [8, 96], strides = [1, 1]} : vector<8x128xf32> to vector<8x96xf32>
    %153 = arith.negf %152 : vector<8x96xf32>
    %154 = math.exp %153 : vector<8x96xf32>
    %cst_48 = arith.constant 1.000000e+00 : f32
    %155 = vector.broadcast %cst_48 : f32 to vector<8x96xf32>
    %156 = arith.addf %155, %154 : vector<8x96xf32>
    %157 = arith.divf %155, %156 : vector<8x96xf32>
    %158 = vector.extract_strided_slice %151 {offsets = [0, 96], sizes = [8, 32], strides = [1, 1]} : vector<8x128xf32> to vector<8x32xf32>
    %159 = math.tanh %158 : vector<8x32xf32>
    %160 = vector.extract_strided_slice %157 {offsets = [0, 32], sizes = [8, 32], strides = [1, 1]} : vector<8x96xf32> to vector<8x32xf32>
    %161 = arith.mulf %160, %144 : vector<8x32xf32>
    %162 = vector.extract_strided_slice %157 {offsets = [0, 0], sizes = [8, 32], strides = [1, 1]} : vector<8x96xf32> to vector<8x32xf32>
    %163 = arith.mulf %162, %159 : vector<8x32xf32>
    %164 = arith.addf %161, %163 : vector<8x32xf32>
    %165 = vector.extract_strided_slice %157 {offsets = [0, 64], sizes = [8, 32], strides = [1, 1]} : vector<8x96xf32> to vector<8x32xf32>
    %166 = math.tanh %164 : vector<8x32xf32>
    %167 = arith.mulf %165, %166 : vector<8x32xf32>
    %c56_49 = arith.constant 56 : index
    %c0_50 = arith.constant 0 : index
    %168 = vector.load %arg7[%c56_49, %c0_50] : memref<64x32xf32, #tpu.memory_space<vmem>>, vector<8x32xf32>
    tpu.vector_store %arg7[%c56_49, %c0_50], %167 {strides = array<i32>} : memref<64x32xf32, #tpu.memory_space<vmem>>, vector<8x32xf32>,
    %c0_51 = arith.constant 0 : index
    %c0_52 = arith.constant 0 : index
    %169 = vector.load %arg4[%c0_51, %c0_52] : memref<32x128xf32, #tpu.memory_space<vmem>>, vector<32x128xf32>
    %c0_53 = arith.constant 0 : index
    %c0_54 = arith.constant 0 : index
    %170 = vector.load %arg5[%c0_53, %c0_54] : memref<32x128xf32, #tpu.memory_space<vmem>>, vector<32x128xf32>
    %c0_55 = arith.constant 0 : index
    %c0_56 = arith.constant 0 : index
    %171 = vector.load %arg6[%c0_55, %c0_56] : memref<1x128xf32, #tpu.memory_space<vmem>>, vector<1x128xf32>
    %c0_57 = arith.constant 0 : index
    %c0_58 = arith.constant 0 : index
    %172 = vector.load %arg7[%c0_57, %c0_58] : memref<64x32xf32, #tpu.memory_space<vmem>>, vector<64x32xf32>
    %cst_59 = arith.constant dense<0.000000e+00> : vector<64x128xf32>
    %173 = tpu.matmul %172, %169, %cst_59 {dimension_numbers = #tpu.dot_dimension_numbers<[1], [0], [0], [1], [0, 0, 1, 1], [], []>} : vector<64x32xf32>, vector<32x128xf32>, vector<64x128xf32> -> vector<64x128xf32>
    %174 = vector.broadcast %171 : vector<1x128xf32> to vector<64x128xf32>
    %175 = arith.addf %173, %174 : vector<64x128xf32>
    %c0_60 = arith.constant 0 : index
    %c0_61 = arith.constant 0 : index
    %176 = vector.load %arg8[%c0_60, %c0_61] : memref<64x128xf32, #tpu.memory_space<vmem>>, vector<64x128xf32>
    tpu.vector_store %arg8[%c0_60, %c0_61], %175 {strides = array<i32>} : memref<64x128xf32, #tpu.memory_space<vmem>>, vector<64x128xf32>,
    %cst_62 = arith.constant 0.000000e+00 : f32
    %177 = vector.broadcast %cst_62 : f32 to vector<8x32xf32>
    %c0_63 = arith.constant 0 : index
    %c0_64 = arith.constant 0 : index
    %178 = vector.load %arg8[%c0_63, %c0_64] : memref<64x128xf32, #tpu.memory_space<vmem>>, vector<8x128xf32>
    %cst_65 = arith.constant dense<0.000000e+00> : vector<8x128xf32>
    %179 = tpu.matmul %177, %170, %cst_65 {dimension_numbers = #tpu.dot_dimension_numbers<[1], [0], [0], [1], [0, 0, 1, 1], [], []>} : vector<8x32xf32>, vector<32x128xf32>, vector<8x128xf32> -> vector<8x128xf32>
    %180 = arith.addf %178, %179 : vector<8x128xf32>
    %181 = vector.extract_strided_slice %180 {offsets = [0, 0], sizes = [8, 96], strides = [1, 1]} : vector<8x128xf32> to vector<8x96xf32>
    %182 = arith.negf %181 : vector<8x96xf32>
    %183 = math.exp %182 : vector<8x96xf32>
    %cst_66 = arith.constant 1.000000e+00 : f32
    %184 = vector.broadcast %cst_66 : f32 to vector<8x96xf32>
    %185 = arith.addf %184, %183 : vector<8x96xf32>
    %186 = arith.divf %184, %185 : vector<8x96xf32>
    %187 = vector.extract_strided_slice %180 {offsets = [0, 96], sizes = [8, 32], strides = [1, 1]} : vector<8x128xf32> to vector<8x32xf32>
    %188 = math.tanh %187 : vector<8x32xf32>
    %189 = vector.extract_strided_slice %186 {offsets = [0, 32], sizes = [8, 32], strides = [1, 1]} : vector<8x96xf32> to vector<8x32xf32>
    %190 = arith.mulf %189, %177 : vector<8x32xf32>
    %191 = vector.extract_strided_slice %186 {offsets = [0, 0], sizes = [8, 32], strides = [1, 1]} : vector<8x96xf32> to vector<8x32xf32>
    %192 = arith.mulf %191, %188 : vector<8x32xf32>
    %193 = arith.addf %190, %192 : vector<8x32xf32>
    %194 = vector.extract_strided_slice %186 {offsets = [0, 64], sizes = [8, 32], strides = [1, 1]} : vector<8x96xf32> to vector<8x32xf32>
    %195 = math.tanh %193 : vector<8x32xf32>
    %196 = arith.mulf %194, %195 : vector<8x32xf32>
    %c0_67 = arith.constant 0 : index
    %c0_68 = arith.constant 0 : index
    %197 = vector.load %arg7[%c0_67, %c0_68] : memref<64x32xf32, #tpu.memory_space<vmem>>, vector<8x32xf32>
    tpu.vector_store %arg7[%c0_67, %c0_68], %196 {strides = array<i32>} : memref<64x32xf32, #tpu.memory_space<vmem>>, vector<8x32xf32>,
    %c8_69 = arith.constant 8 : index
    %c0_70 = arith.constant 0 : index
    %198 = vector.load %arg8[%c8_69, %c0_70] : memref<64x128xf32, #tpu.memory_space<vmem>>, vector<8x128xf32>
    %cst_71 = arith.constant dense<0.000000e+00> : vector<8x128xf32>
    %199 = tpu.matmul %196, %170, %cst_71 {dimension_numbers = #tpu.dot_dimension_numbers<[1], [0], [0], [1], [0, 0, 1, 1], [], []>} : vector<8x32xf32>, vector<32x128xf32>, vector<8x128xf32> -> vector<8x128xf32>
    %200 = arith.addf %198, %199 : vector<8x128xf32>
    %201 = vector.extract_strided_slice %200 {offsets = [0, 0], sizes = [8, 96], strides = [1, 1]} : vector<8x128xf32> to vector<8x96xf32>
    %202 = arith.negf %201 : vector<8x96xf32>
    %203 = math.exp %202 : vector<8x96xf32>
    %cst_72 = arith.constant 1.000000e+00 : f32
    %204 = vector.broadcast %cst_72 : f32 to vector<8x96xf32>
    %205 = arith.addf %204, %203 : vector<8x96xf32>
    %206 = arith.divf %204, %205 : vector<8x96xf32>
    %207 = vector.extract_strided_slice %200 {offsets = [0, 96], sizes = [8, 32], strides = [1, 1]} : vector<8x128xf32> to vector<8x32xf32>
    %208 = math.tanh %207 : vector<8x32xf32>
    %209 = vector.extract_strided_slice %206 {offsets = [0, 32], sizes = [8, 32], strides = [1, 1]} : vector<8x96xf32> to vector<8x32xf32>
    %210 = arith.mulf %209, %193 : vector<8x32xf32>
    %211 = vector.extract_strided_slice %206 {offsets = [0, 0], sizes = [8, 32], strides = [1, 1]} : vector<8x96xf32> to vector<8x32xf32>
    %212 = arith.mulf %211, %208 : vector<8x32xf32>
    %213 = arith.addf %210, %212 : vector<8x32xf32>
    %214 = vector.extract_strided_slice %206 {offsets = [0, 64], sizes = [8, 32], strides = [1, 1]} : vector<8x96xf32> to vector<8x32xf32>
    %215 = math.tanh %213 : vector<8x32xf32>
    %216 = arith.mulf %214, %215 : vector<8x32xf32>
    %c8_73 = arith.constant 8 : index
    %c0_74 = arith.constant 0 : index
    %217 = vector.load %arg7[%c8_73, %c0_74] : memref<64x32xf32, #tpu.memory_space<vmem>>, vector<8x32xf32>
    tpu.vector_store %arg7[%c8_73, %c0_74], %216 {strides = array<i32>} : memref<64x32xf32, #tpu.memory_space<vmem>>, vector<8x32xf32>,
    %c16_75 = arith.constant 16 : index
    %c0_76 = arith.constant 0 : index
    %218 = vector.load %arg8[%c16_75, %c0_76] : memref<64x128xf32, #tpu.memory_space<vmem>>, vector<8x128xf32>
    %cst_77 = arith.constant dense<0.000000e+00> : vector<8x128xf32>
    %219 = tpu.matmul %216, %170, %cst_77 {dimension_numbers = #tpu.dot_dimension_numbers<[1], [0], [0], [1], [0, 0, 1, 1], [], []>} : vector<8x32xf32>, vector<32x128xf32>, vector<8x128xf32> -> vector<8x128xf32>
    %220 = arith.addf %218, %219 : vector<8x128xf32>
    %221 = vector.extract_strided_slice %220 {offsets = [0, 0], sizes = [8, 96], strides = [1, 1]} : vector<8x128xf32> to vector<8x96xf32>
    %222 = arith.negf %221 : vector<8x96xf32>
    %223 = math.exp %222 : vector<8x96xf32>
    %cst_78 = arith.constant 1.000000e+00 : f32
    %224 = vector.broadcast %cst_78 : f32 to vector<8x96xf32>
    %225 = arith.addf %224, %223 : vector<8x96xf32>
    %226 = arith.divf %224, %225 : vector<8x96xf32>
    %227 = vector.extract_strided_slice %220 {offsets = [0, 96], sizes = [8, 32], strides = [1, 1]} : vector<8x128xf32> to vector<8x32xf32>
    %228 = math.tanh %227 : vector<8x32xf32>
    %229 = vector.extract_strided_slice %226 {offsets = [0, 32], sizes = [8, 32], strides = [1, 1]} : vector<8x96xf32> to vector<8x32xf32>
    %230 = arith.mulf %229, %213 : vector<8x32xf32>
    %231 = vector.extract_strided_slice %226 {offsets = [0, 0], sizes = [8, 32], strides = [1, 1]} : vector<8x96xf32> to vector<8x32xf32>
    %232 = arith.mulf %231, %228 : vector<8x32xf32>
    %233 = arith.addf %230, %232 : vector<8x32xf32>
    %234 = vector.extract_strided_slice %226 {offsets = [0, 64], sizes = [8, 32], strides = [1, 1]} : vector<8x96xf32> to vector<8x32xf32>
    %235 = math.tanh %233 : vector<8x32xf32>
    %236 = arith.mulf %234, %235 : vector<8x32xf32>
    %c16_79 = arith.constant 16 : index
    %c0_80 = arith.constant 0 : index
    %237 = vector.load %arg7[%c16_79, %c0_80] : memref<64x32xf32, #tpu.memory_space<vmem>>, vector<8x32xf32>
    tpu.vector_store %arg7[%c16_79, %c0_80], %236 {strides = array<i32>} : memref<64x32xf32, #tpu.memory_space<vmem>>, vector<8x32xf32>,
    %c24_81 = arith.constant 24 : index
    %c0_82 = arith.constant 0 : index
    %238 = vector.load %arg8[%c24_81, %c0_82] : memref<64x128xf32, #tpu.memory_space<vmem>>, vector<8x128xf32>
    %cst_83 = arith.constant dense<0.000000e+00> : vector<8x128xf32>
    %239 = tpu.matmul %236, %170, %cst_83 {dimension_numbers = #tpu.dot_dimension_numbers<[1], [0], [0], [1], [0, 0, 1, 1], [], []>} : vector<8x32xf32>, vector<32x128xf32>, vector<8x128xf32> -> vector<8x128xf32>
    %240 = arith.addf %238, %239 : vector<8x128xf32>
    %241 = vector.extract_strided_slice %240 {offsets = [0, 0], sizes = [8, 96], strides = [1, 1]} : vector<8x128xf32> to vector<8x96xf32>
    %242 = arith.negf %241 : vector<8x96xf32>
    %243 = math.exp %242 : vector<8x96xf32>
    %cst_84 = arith.constant 1.000000e+00 : f32
    %244 = vector.broadcast %cst_84 : f32 to vector<8x96xf32>
    %245 = arith.addf %244, %243 : vector<8x96xf32>
    %246 = arith.divf %244, %245 : vector<8x96xf32>
    %247 = vector.extract_strided_slice %240 {offsets = [0, 96], sizes = [8, 32], strides = [1, 1]} : vector<8x128xf32> to vector<8x32xf32>
    %248 = math.tanh %247 : vector<8x32xf32>
    %249 = vector.extract_strided_slice %246 {offsets = [0, 32], sizes = [8, 32], strides = [1, 1]} : vector<8x96xf32> to vector<8x32xf32>
    %250 = arith.mulf %249, %233 : vector<8x32xf32>
    %251 = vector.extract_strided_slice %246 {offsets = [0, 0], sizes = [8, 32], strides = [1, 1]} : vector<8x96xf32> to vector<8x32xf32>
    %252 = arith.mulf %251, %248 : vector<8x32xf32>
    %253 = arith.addf %250, %252 : vector<8x32xf32>
    %254 = vector.extract_strided_slice %246 {offsets = [0, 64], sizes = [8, 32], strides = [1, 1]} : vector<8x96xf32> to vector<8x32xf32>
    %255 = math.tanh %253 : vector<8x32xf32>
    %256 = arith.mulf %254, %255 : vector<8x32xf32>
    %c24_85 = arith.constant 24 : index
    %c0_86 = arith.constant 0 : index
    %257 = vector.load %arg7[%c24_85, %c0_86] : memref<64x32xf32, #tpu.memory_space<vmem>>, vector<8x32xf32>
    tpu.vector_store %arg7[%c24_85, %c0_86], %256 {strides = array<i32>} : memref<64x32xf32, #tpu.memory_space<vmem>>, vector<8x32xf32>,
    %c32_87 = arith.constant 32 : index
    %c0_88 = arith.constant 0 : index
    %258 = vector.load %arg8[%c32_87, %c0_88] : memref<64x128xf32, #tpu.memory_space<vmem>>, vector<8x128xf32>
    %cst_89 = arith.constant dense<0.000000e+00> : vector<8x128xf32>
    %259 = tpu.matmul %256, %170, %cst_89 {dimension_numbers = #tpu.dot_dimension_numbers<[1], [0], [0], [1], [0, 0, 1, 1], [], []>} : vector<8x32xf32>, vector<32x128xf32>, vector<8x128xf32> -> vector<8x128xf32>
    %260 = arith.addf %258, %259 : vector<8x128xf32>
    %261 = vector.extract_strided_slice %260 {offsets = [0, 0], sizes = [8, 96], strides = [1, 1]} : vector<8x128xf32> to vector<8x96xf32>
    %262 = arith.negf %261 : vector<8x96xf32>
    %263 = math.exp %262 : vector<8x96xf32>
    %cst_90 = arith.constant 1.000000e+00 : f32
    %264 = vector.broadcast %cst_90 : f32 to vector<8x96xf32>
    %265 = arith.addf %264, %263 : vector<8x96xf32>
    %266 = arith.divf %264, %265 : vector<8x96xf32>
    %267 = vector.extract_strided_slice %260 {offsets = [0, 96], sizes = [8, 32], strides = [1, 1]} : vector<8x128xf32> to vector<8x32xf32>
    %268 = math.tanh %267 : vector<8x32xf32>
    %269 = vector.extract_strided_slice %266 {offsets = [0, 32], sizes = [8, 32], strides = [1, 1]} : vector<8x96xf32> to vector<8x32xf32>
    %270 = arith.mulf %269, %253 : vector<8x32xf32>
    %271 = vector.extract_strided_slice %266 {offsets = [0, 0], sizes = [8, 32], strides = [1, 1]} : vector<8x96xf32> to vector<8x32xf32>
    %272 = arith.mulf %271, %268 : vector<8x32xf32>
    %273 = arith.addf %270, %272 : vector<8x32xf32>
    %274 = vector.extract_strided_slice %266 {offsets = [0, 64], sizes = [8, 32], strides = [1, 1]} : vector<8x96xf32> to vector<8x32xf32>
    %275 = math.tanh %273 : vector<8x32xf32>
    %276 = arith.mulf %274, %275 : vector<8x32xf32>
    %c32_91 = arith.constant 32 : index
    %c0_92 = arith.constant 0 : index
    %277 = vector.load %arg7[%c32_91, %c0_92] : memref<64x32xf32, #tpu.memory_space<vmem>>, vector<8x32xf32>
    tpu.vector_store %arg7[%c32_91, %c0_92], %276 {strides = array<i32>} : memref<64x32xf32, #tpu.memory_space<vmem>>, vector<8x32xf32>,
    %c40_93 = arith.constant 40 : index
    %c0_94 = arith.constant 0 : index
    %278 = vector.load %arg8[%c40_93, %c0_94] : memref<64x128xf32, #tpu.memory_space<vmem>>, vector<8x128xf32>
    %cst_95 = arith.constant dense<0.000000e+00> : vector<8x128xf32>
    %279 = tpu.matmul %276, %170, %cst_95 {dimension_numbers = #tpu.dot_dimension_numbers<[1], [0], [0], [1], [0, 0, 1, 1], [], []>} : vector<8x32xf32>, vector<32x128xf32>, vector<8x128xf32> -> vector<8x128xf32>
    %280 = arith.addf %278, %279 : vector<8x128xf32>
    %281 = vector.extract_strided_slice %280 {offsets = [0, 0], sizes = [8, 96], strides = [1, 1]} : vector<8x128xf32> to vector<8x96xf32>
    %282 = arith.negf %281 : vector<8x96xf32>
    %283 = math.exp %282 : vector<8x96xf32>
    %cst_96 = arith.constant 1.000000e+00 : f32
    %284 = vector.broadcast %cst_96 : f32 to vector<8x96xf32>
    %285 = arith.addf %284, %283 : vector<8x96xf32>
    %286 = arith.divf %284, %285 : vector<8x96xf32>
    %287 = vector.extract_strided_slice %280 {offsets = [0, 96], sizes = [8, 32], strides = [1, 1]} : vector<8x128xf32> to vector<8x32xf32>
    %288 = math.tanh %287 : vector<8x32xf32>
    %289 = vector.extract_strided_slice %286 {offsets = [0, 32], sizes = [8, 32], strides = [1, 1]} : vector<8x96xf32> to vector<8x32xf32>
    %290 = arith.mulf %289, %273 : vector<8x32xf32>
    %291 = vector.extract_strided_slice %286 {offsets = [0, 0], sizes = [8, 32], strides = [1, 1]} : vector<8x96xf32> to vector<8x32xf32>
    %292 = arith.mulf %291, %288 : vector<8x32xf32>
    %293 = arith.addf %290, %292 : vector<8x32xf32>
    %294 = vector.extract_strided_slice %286 {offsets = [0, 64], sizes = [8, 32], strides = [1, 1]} : vector<8x96xf32> to vector<8x32xf32>
    %295 = math.tanh %293 : vector<8x32xf32>
    %296 = arith.mulf %294, %295 : vector<8x32xf32>
    %c40_97 = arith.constant 40 : index
    %c0_98 = arith.constant 0 : index
    %297 = vector.load %arg7[%c40_97, %c0_98] : memref<64x32xf32, #tpu.memory_space<vmem>>, vector<8x32xf32>
    tpu.vector_store %arg7[%c40_97, %c0_98], %296 {strides = array<i32>} : memref<64x32xf32, #tpu.memory_space<vmem>>, vector<8x32xf32>,
    %c48_99 = arith.constant 48 : index
    %c0_100 = arith.constant 0 : index
    %298 = vector.load %arg8[%c48_99, %c0_100] : memref<64x128xf32, #tpu.memory_space<vmem>>, vector<8x128xf32>
    %cst_101 = arith.constant dense<0.000000e+00> : vector<8x128xf32>
    %299 = tpu.matmul %296, %170, %cst_101 {dimension_numbers = #tpu.dot_dimension_numbers<[1], [0], [0], [1], [0, 0, 1, 1], [], []>} : vector<8x32xf32>, vector<32x128xf32>, vector<8x128xf32> -> vector<8x128xf32>
    %300 = arith.addf %298, %299 : vector<8x128xf32>
    %301 = vector.extract_strided_slice %300 {offsets = [0, 0], sizes = [8, 96], strides = [1, 1]} : vector<8x128xf32> to vector<8x96xf32>
    %302 = arith.negf %301 : vector<8x96xf32>
    %303 = math.exp %302 : vector<8x96xf32>
    %cst_102 = arith.constant 1.000000e+00 : f32
    %304 = vector.broadcast %cst_102 : f32 to vector<8x96xf32>
    %305 = arith.addf %304, %303 : vector<8x96xf32>
    %306 = arith.divf %304, %305 : vector<8x96xf32>
    %307 = vector.extract_strided_slice %300 {offsets = [0, 96], sizes = [8, 32], strides = [1, 1]} : vector<8x128xf32> to vector<8x32xf32>
    %308 = math.tanh %307 : vector<8x32xf32>
    %309 = vector.extract_strided_slice %306 {offsets = [0, 32], sizes = [8, 32], strides = [1, 1]} : vector<8x96xf32> to vector<8x32xf32>
    %310 = arith.mulf %309, %293 : vector<8x32xf32>
    %311 = vector.extract_strided_slice %306 {offsets = [0, 0], sizes = [8, 32], strides = [1, 1]} : vector<8x96xf32> to vector<8x32xf32>
    %312 = arith.mulf %311, %308 : vector<8x32xf32>
    %313 = arith.addf %310, %312 : vector<8x32xf32>
    %314 = vector.extract_strided_slice %306 {offsets = [0, 64], sizes = [8, 32], strides = [1, 1]} : vector<8x96xf32> to vector<8x32xf32>
    %315 = math.tanh %313 : vector<8x32xf32>
    %316 = arith.mulf %314, %315 : vector<8x32xf32>
    %c48_103 = arith.constant 48 : index
    %c0_104 = arith.constant 0 : index
    %317 = vector.load %arg7[%c48_103, %c0_104] : memref<64x32xf32, #tpu.memory_space<vmem>>, vector<8x32xf32>
    tpu.vector_store %arg7[%c48_103, %c0_104], %316 {strides = array<i32>} : memref<64x32xf32, #tpu.memory_space<vmem>>, vector<8x32xf32>,
    %c56_105 = arith.constant 56 : index
    %c0_106 = arith.constant 0 : index
    %318 = vector.load %arg8[%c56_105, %c0_106] : memref<64x128xf32, #tpu.memory_space<vmem>>, vector<8x128xf32>
    %cst_107 = arith.constant dense<0.000000e+00> : vector<8x128xf32>
    %319 = tpu.matmul %316, %170, %cst_107 {dimension_numbers = #tpu.dot_dimension_numbers<[1], [0], [0], [1], [0, 0, 1, 1], [], []>} : vector<8x32xf32>, vector<32x128xf32>, vector<8x128xf32> -> vector<8x128xf32>
    %320 = arith.addf %318, %319 : vector<8x128xf32>
    %321 = vector.extract_strided_slice %320 {offsets = [0, 0], sizes = [8, 96], strides = [1, 1]} : vector<8x128xf32> to vector<8x96xf32>
    %322 = arith.negf %321 : vector<8x96xf32>
    %323 = math.exp %322 : vector<8x96xf32>
    %cst_108 = arith.constant 1.000000e+00 : f32
    %324 = vector.broadcast %cst_108 : f32 to vector<8x96xf32>
    %325 = arith.addf %324, %323 : vector<8x96xf32>
    %326 = arith.divf %324, %325 : vector<8x96xf32>
    %327 = vector.extract_strided_slice %320 {offsets = [0, 96], sizes = [8, 32], strides = [1, 1]} : vector<8x128xf32> to vector<8x32xf32>
    %328 = math.tanh %327 : vector<8x32xf32>
    %329 = vector.extract_strided_slice %326 {offsets = [0, 32], sizes = [8, 32], strides = [1, 1]} : vector<8x96xf32> to vector<8x32xf32>
    %330 = arith.mulf %329, %313 : vector<8x32xf32>
    %331 = vector.extract_strided_slice %326 {offsets = [0, 0], sizes = [8, 32], strides = [1, 1]} : vector<8x96xf32> to vector<8x32xf32>
    %332 = arith.mulf %331, %328 : vector<8x32xf32>
    %333 = arith.addf %330, %332 : vector<8x32xf32>
    %334 = vector.extract_strided_slice %326 {offsets = [0, 64], sizes = [8, 32], strides = [1, 1]} : vector<8x96xf32> to vector<8x32xf32>
    %335 = math.tanh %333 : vector<8x32xf32>
    %336 = arith.mulf %334, %335 : vector<8x32xf32>
    %c56_109 = arith.constant 56 : index
    %c0_110 = arith.constant 0 : index
    %337 = vector.load %arg7[%c56_109, %c0_110] : memref<64x32xf32, #tpu.memory_space<vmem>>, vector<8x32xf32>
    tpu.vector_store %arg7[%c56_109, %c0_110], %336 {strides = array<i32>} : memref<64x32xf32, #tpu.memory_space<vmem>>, vector<8x32xf32>,
    return
  }
}

</mosaic_0001>

<llo_original>
// kernel: dae_forward.3
$region0: #{dae_forward.3}
  #allocation0 [shape = 'u32[]', space=smem, size = 0x4, offset = 0x4, fixed_abs, tag = 'smem constant byte address 0x4 - core index']
  #allocation1 [shape = 'u32[72,128]{1,0:T(1,128)}', space=vmem, size = 0x9000, scoped, tag = 'internal scratch']
  #allocation2 [shape = 'f32[64,128]{1,0:T(8,128)}', space=vmem, size = 0x8000, scoped, tag = 'scratch operand']
  %s0 = inlined_call_operand.vmem [shape: f32[64,16], index: 0, kind: input, shape index: {}]
  %s1 = inlined_call_operand.vmem [shape: f32[16,128], index: 1, kind: input, shape index: {}]
  %s2 = inlined_call_operand.vmem [shape: f32[32,128], index: 2, kind: input, shape index: {}]
  %s3 = inlined_call_operand.vmem [shape: f32[1,128], index: 3, kind: input, shape index: {}]
  %s4 = inlined_call_operand.vmem [shape: f32[32,128], index: 4, kind: input, shape index: {}]
  %s5 = inlined_call_operand.vmem [shape: f32[32,128], index: 5, kind: input, shape index: {}]
  %s6 = inlined_call_operand.vmem [shape: f32[1,128], index: 6, kind: input, shape index: {}]
  %s7 = inlined_call_operand.vmem [shape: f32[64,32], index: 7, kind: output, shape index: {}]
  %s8 = sld [smem:[#allocation0]]
  $region38: #{dae_forward.3} parent=0
    _
  %s10 = ssub.s32 1, %s8
  %s11 = scalar_select 0, %s10, %s8
  // Predicated region
  $region2: #{dae_forward.3} parent=0 // pred_check
    _
  $region3: #{dae_forward.3} parent=0 // pred_check_branch
    %13 = sbr.rel (0) target = $region5
  $region4: #{dae_forward.3} parent=0 // pred_region
    _
  $region5: #{dae_forward.3} parent=0 // pred_fallthru
    _
  // Predicated region
  $region6: #{dae_forward.3} parent=0 // pred_check
    _
  $region7: #{dae_forward.3} parent=0 // pred_check_branch
    %15 = sbr.rel (0) target = $region9
  $region8: #{dae_forward.3} parent=0 // pred_region
    _
  $region9: #{dae_forward.3} parent=0 // pred_fallthru
    _
  // Predicated region
  $region10: #{dae_forward.3} parent=0 // pred_check
    _
  $region11: #{dae_forward.3} parent=0 // pred_check_branch
    %17 = sbr.rel (0) target = $region13
  $region12: #{dae_forward.3} parent=0 // pred_region
    _
  $region13: #{dae_forward.3} parent=0 // pred_fallthru
    _
  // Predicated region
  $region14: #{dae_forward.3} parent=0 // pred_check
    _
  $region15: #{dae_forward.3} parent=0 // pred_check_branch
    %19 = sbr.rel (0) target = $region17
  $region16: #{dae_forward.3} parent=0 // pred_region
    _
  $region17: #{dae_forward.3} parent=0 // pred_fallthru
    _
  // Predicated region
  $region18: #{dae_forward.3} parent=0 // pred_check
    _
  $region19: #{dae_forward.3} parent=0 // pred_check_branch
    %21 = sbr.rel (0) target = $region21
  $region20: #{dae_forward.3} parent=0 // pred_region
    _
  $region21: #{dae_forward.3} parent=0 // pred_fallthru
    _
  // Predicated region
  $region22: #{dae_forward.3} parent=0 // pred_check
    _
  $region23: #{dae_forward.3} parent=0 // pred_check_branch
    %23 = sbr.rel (0) target = $region25
  $region24: #{dae_forward.3} parent=0 // pred_region
    _
  $region25: #{dae_forward.3} parent=0 // pred_fallthru
    _
  // Predicated region
  $region26: #{dae_forward.3} parent=0 // pred_check
    _
  $region27: #{dae_forward.3} parent=0 // pred_check_branch
    %25 = sbr.rel (0) target = $region29
  $region28: #{dae_forward.3} parent=0 // pred_region
    _
  $region29: #{dae_forward.3} parent=0 // pred_fallthru
    _
  %v26 = vld [vmem:[%s1] sm:$0xff]
  %v27 = vld [vmem:[%s1 + $0x8] sm:$0xff]
  %v28 = vld [vmem:[%s2] sm:$0xff]
  %v29 = vld [vmem:[%s2 + $0x8] sm:$0xff]
  %v30 = vld [vmem:[%s2 + $0x10] sm:$0xff]
  %v31 = vld [vmem:[%s2 + $0x18] sm:$0xff]
  %v32 = vld [vmem:[%s3] sm:$0x1]
  %v33 = vld [vmem:[%s0] sm:$0xff]
  %v34 = vld [vmem:[%s0 + $0x8] sm:$0xff]
  %v35 = vld [vmem:[%s0 + $0x10] sm:$0xff]
  %v36 = vld [vmem:[%s0 + $0x18] sm:$0xff]
  %v37 = vld [vmem:[%s0 + $0x20] sm:$0xff]
  %v38 = vld [vmem:[%s0 + $0x28] sm:$0xff]
  %v39 = vld [vmem:[%s0 + $0x30] sm:$0xff]
  %v40 = vld [vmem:[%s0 + $0x38] sm:$0xff]
  %v42 = vperm.slane %v32, 0
  %vm44 = vcmask 130048
  %v46 = vsel %vm44, %v33, 0
  %v49 = vsel %vm44, %v34, 0
  %v52 = vsel %vm44, %v35, 0
  %v55 = vsel %vm44, %v36, 0
  %v58 = vsel %vm44, %v37, 0
  %v61 = vsel %vm44, %v38, 0
  %v64 = vsel %vm44, %v39, 0
  %v67 = vsel %vm44, %v40, 0
  %69 = vmatpush.msra.mxu0 0.0
  %70 = vmatpush.msra.mxu0 0.0
  %71 = vmatpush.msra.mxu0 0.0
  %72 = vmatpush.msra.mxu0 0.0
  %73 = vmatpush.msra.mxu0 0.0
  %74 = vmatpush.msra.mxu0 0.0
  %75 = vmatpush.msra.mxu0 0.0
  %76 = vmatpush.msra.mxu0 0.0
  %77 = vmatpush.msra.mxu0 0.0
  %78 = vmatpush.msra.mxu0 0.0
  %79 = vmatpush.msra.mxu0 0.0
  %80 = vmatpush.msra.mxu0 0.0
  %81 = vmatpush.msra.mxu0 0.0
  %82 = vmatpush.msra.mxu0 0.0
  %83 = vmatpush.msra.mxu0 %v27
  %84 = vmatpush.msra.mxu0 %v26
  %85 = vmatmul.f32.gmra.mxu0 %v46
  %v86 = vpop.f32.mrf.mxu0
  %v87 = vadd.f32 %v42, %v86
  %88 = vmatmul.f32.gmra.mxu0 %v49
  %v89 = vpop.f32.mrf.mxu0
  %v90 = vadd.f32 %v42, %v89
  %91 = vmatmul.f32.gmra.mxu0 %v52
  %v92 = vpop.f32.mrf.mxu0
  %v93 = vadd.f32 %v42, %v92
  %94 = vmatmul.f32.gmra.mxu0 %v55
  %v95 = vpop.f32.mrf.mxu0
  %v96 = vadd.f32 %v42, %v95
  %97 = vmatmul.f32.gmra.mxu0 %v58
  %v98 = vpop.f32.mrf.mxu0
  %v99 = vadd.f32 %v42, %v98
  %100 = vmatmul.f32.gmra.mxu0 %v61
  %v101 = vpop.f32.mrf.mxu0
  %v102 = vadd.f32 %v42, %v101
  %103 = vmatmul.f32.gmra.mxu0 %v64
  %v104 = vpop.f32.mrf.mxu0
  %v105 = vadd.f32 %v42, %v104
  %106 = vmatmul.f32.gmra.mxu0 %v67
  %v107 = vpop.f32.mrf.mxu0
  %v108 = vadd.f32 %v42, %v107
  %109 = vdwg.mxu0
  %110 = vst [vmem:[#allocation2] sm:$0xff] %v87
  %111 = vst [vmem:[#allocation2 + $0x8] sm:$0xff] %v90
  %112 = vst [vmem:[#allocation2 + $0x10] sm:$0xff] %v93
  %113 = vst [vmem:[#allocation2 + $0x18] sm:$0xff] %v96
  %114 = vst [vmem:[#allocation2 + $0x20] sm:$0xff] %v99
  %115 = vst [vmem:[#allocation2 + $0x28] sm:$0xff] %v102
  %116 = vst [vmem:[#allocation2 + $0x30] sm:$0xff] %v105
  %117 = vst [vmem:[#allocation2 + $0x38] sm:$0xff] %v108
  %v118 = vld [vmem:[#allocation2] sm:$0xff]
  %vm119 = vcmask 261120
  %v121 = vsel %vm119, 0.0, 0
  %123 = vmatpush.msra.mxu0 0.0
  %124 = vmatpush.msra.mxu0 0.0
  %125 = vmatpush.msra.mxu0 0.0
  %126 = vmatpush.msra.mxu0 0.0
  %127 = vmatpush.msra.mxu0 0.0
  %128 = vmatpush.msra.mxu0 0.0
  %129 = vmatpush.msra.mxu0 0.0
  %130 = vmatpush.msra.mxu0 0.0
  %131 = vmatpush.msra.mxu0 0.0
  %132 = vmatpush.msra.mxu0 0.0
  %133 = vmatpush.msra.mxu0 0.0
  %134 = vmatpush.msra.mxu0 0.0
  %135 = vmatpush.msra.mxu0 %v31
  %136 = vmatpush.msra.mxu0 %v30
  %137 = vmatpush.msra.mxu0 %v29
  %138 = vmatpush.msra.mxu0 %v28
  %139 = vmatmul.f32.gmra.mxu0 %v121
  %v140 = vpop.f32.mrf.mxu0
  %v141 = vadd.f32 0.0, %v140
  %142 = vdwg.mxu0
  %v143 = vadd.f32 %v118, %v141
  %v144 = vxor.u32 %v143, 2147483648
  %v145 = vmul.f32 %v144, 1.442695
  %v146 = vpow.pop %v145
  %v147 = vadd.f32 %v146, 1.0
  %v148 = vrcp.pop %v147
  %v149 = vmul.f32 %v147, %v148
  %v150 = vsub.f32 1.0, %v149
  %v151 = vmul.f32 %v148, %v150
  %v152 = vadd.f32 %v148, %v151
  %vm153 = vweird.f32 %v147
  %vm154 = vweird.f32 %v148
  %vm155 = vmor %vm153, %vm154
  %v156 = vsel %vm155, %v148, %v152
  %v157 = vand.u32 2147483647, %v147
  %vm158 = vcmp.eq.f32.partialorder %v157, 8.507059e+37
  %v159 = vand.u32 %v147, 2147483648
  %v160 = vor.u32 1.1754944e-38, %v159
  %v161 = vsel %vm158, %v160, %v156
  %v162 = vmul.f32 1.0, %v161
  %v163 = vtanh.pop %v143
  %v164 = vmul.f32 %v162, 0.0
  %166 = vrot.lane.b32.xlu0 %v163, 32
  %v167 = vpop.permute.xlu0 %166
  %v169 = vmul.f32 %v162, %v167
  %171 = vrot.lane.b32.xlu0 %v169, 32
  %v172 = vpop.permute.xlu0 %171
  %v174 = vadd.f32 %v164, %v172
  %v175 = vtanh.pop %v174
  %177 = vrot.lane.b32.xlu0 %v175, 32
  %v178 = vpop.permute.xlu0 %177
  %v180 = vmul.f32 %v162, %v178
  %182 = vrot.lane.b32.xlu0 %v180, 64
  %v183 = vpop.permute.xlu0 %182
  %185 = vst.msk [vmem:[%s7] sm:$0xff] %vm119, %v183
  %v186 = vld [vmem:[#allocation2 + $0x8] sm:$0xff]
  %v187 = vsel %vm119, %v183, 0
  %189 = vmatpush.msra.mxu0 0.0
  %190 = vmatpush.msra.mxu0 0.0
  %191 = vmatpush.msra.mxu0 0.0
  %192 = vmatpush.msra.mxu0 0.0
  %193 = vmatpush.msra.mxu0 0.0
  %194 = vmatpush.msra.mxu0 0.0
  %195 = vmatpush.msra.mxu0 0.0
  %196 = vmatpush.msra.mxu0 0.0
  %197 = vmatpush.msra.mxu0 0.0
  %198 = vmatpush.msra.mxu0 0.0
  %199 = vmatpush.msra.mxu0 0.0
  %200 = vmatpush.msra.mxu0 0.0
  %201 = vmatpush.msra.mxu0 %v31
  %202 = vmatpush.msra.mxu0 %v30
  %203 = vmatpush.msra.mxu0 %v29
  %204 = vmatpush.msra.mxu0 %v28
  %205 = vmatmul.f32.gmra.mxu0 %v187
  %v206 = vpop.f32.mrf.mxu0
  %v207 = vadd.f32 0.0, %v206
  %208 = vdwg.mxu0
  %v209 = vadd.f32 %v186, %v207
  %v210 = vxor.u32 %v209, 2147483648
  %v211 = vmul.f32 %v210, 1.442695
  %v212 = vpow.pop %v211
  %v213 = vadd.f32 %v212, 1.0
  %v214 = vrcp.pop %v213
  %v215 = vmul.f32 %v213, %v214
  %v216 = vsub.f32 1.0, %v215
  %v217 = vmul.f32 %v214, %v216
  %v218 = vadd.f32 %v214, %v217
  %vm219 = vweird.f32 %v213
  %vm220 = vweird.f32 %v214
  %vm221 = vmor %vm219, %vm220
  %v222 = vsel %vm221, %v214, %v218
  %v223 = vand.u32 2147483647, %v213
  %vm224 = vcmp.eq.f32.partialorder %v223, 8.507059e+37
  %v225 = vand.u32 %v213, 2147483648
  %v226 = vor.u32 1.1754944e-38, %v225
  %v227 = vsel %vm224, %v226, %v222
  %v228 = vmul.f32 1.0, %v227
  %v229 = vtanh.pop %v209
  %v230 = vmul.f32 %v228, %v174
  %232 = vrot.lane.b32.xlu0 %v229, 32
  %v233 = vpop.permute.xlu0 %232
  %v235 = vmul.f32 %v228, %v233
  %237 = vrot.lane.b32.xlu0 %v235, 32
  %v238 = vpop.permute.xlu0 %237
  %v240 = vadd.f32 %v230, %v238
  %v241 = vtanh.pop %v240
  %243 = vrot.lane.b32.xlu0 %v241, 32
  %v244 = vpop.permute.xlu0 %243
  %v246 = vmul.f32 %v228, %v244
  %248 = vrot.lane.b32.xlu0 %v246, 64
  %v249 = vpop.permute.xlu0 %248
  %251 = vst.msk [vmem:[%s7 + $0x8] sm:$0xff] %vm119, %v249
  %v252 = vld [vmem:[#allocation2 + $0x10] sm:$0xff]
  %v253 = vsel %vm119, %v249, 0
  %255 = vmatpush.msra.mxu0 0.0
  %256 = vmatpush.msra.mxu0 0.0
  %257 = vmatpush.msra.mxu0 0.0
  %258 = vmatpush.msra.mxu0 0.0
  %259 = vmatpush.msra.mxu0 0.0
  %260 = vmatpush.msra.mxu0 0.0
  %261 = vmatpush.msra.mxu0 0.0
  %262 = vmatpush.msra.mxu0 0.0
  %263 = vmatpush.msra.mxu0 0.0
  %264 = vmatpush.msra.mxu0 0.0
  %265 = vmatpush.msra.mxu0 0.0
  %266 = vmatpush.msra.mxu0 0.0
  %267 = vmatpush.msra.mxu0 %v31
  %268 = vmatpush.msra.mxu0 %v30
  %269 = vmatpush.msra.mxu0 %v29
  %270 = vmatpush.msra.mxu0 %v28
  %271 = vmatmul.f32.gmra.mxu0 %v253
  %v272 = vpop.f32.mrf.mxu0
  %v273 = vadd.f32 0.0, %v272
  %274 = vdwg.mxu0
  %v275 = vadd.f32 %v252, %v273
  %v276 = vxor.u32 %v275, 2147483648
  %v277 = vmul.f32 %v276, 1.442695
  %v278 = vpow.pop %v277
  %v279 = vadd.f32 %v278, 1.0
  %v280 = vrcp.pop %v279
  %v281 = vmul.f32 %v279, %v280
  %v282 = vsub.f32 1.0, %v281
  %v283 = vmul.f32 %v280, %v282
  %v284 = vadd.f32 %v280, %v283
  %vm285 = vweird.f32 %v279
  %vm286 = vweird.f32 %v280
  %vm287 = vmor %vm285, %vm286
  %v288 = vsel %vm287, %v280, %v284
  %v289 = vand.u32 2147483647, %v279
  %vm290 = vcmp.eq.f32.partialorder %v289, 8.507059e+37
  %v291 = vand.u32 %v279, 2147483648
  %v292 = vor.u32 1.1754944e-38, %v291
  %v293 = vsel %vm290, %v292, %v288
  %v294 = vmul.f32 1.0, %v293
  %v295 = vtanh.pop %v275
  %v296 = vmul.f32 %v294, %v240
  %298 = vrot.lane.b32.xlu0 %v295, 32
  %v299 = vpop.permute.xlu0 %298
  %v301 = vmul.f32 %v294, %v299
  %303 = vrot.lane.b32.xlu0 %v301, 32
  %v304 = vpop.permute.xlu0 %303
  %v306 = vadd.f32 %v296, %v304
  %v307 = vtanh.pop %v306
  %309 = vrot.lane.b32.xlu0 %v307, 32
  %v310 = vpop.permute.xlu0 %309
  %v312 = vmul.f32 %v294, %v310
  %314 = vrot.lane.b32.xlu0 %v312, 64
  %v315 = vpop.permute.xlu0 %314
  %317 = vst.msk [vmem:[%s7 + $0x10] sm:$0xff] %vm119, %v315
  %v318 = vld [vmem:[#allocation2 + $0x18] sm:$0xff]
  %v319 = vsel %vm119, %v315, 0
  %321 = vmatpush.msra.mxu0 0.0
  %322 = vmatpush.msra.mxu0 0.0
  %323 = vmatpush.msra.mxu0 0.0
  %324 = vmatpush.msra.mxu0 0.0
  %325 = vmatpush.msra.mxu0 0.0
  %326 = vmatpush.msra.mxu0 0.0
  %327 = vmatpush.msra.mxu0 0.0
  %328 = vmatpush.msra.mxu0 0.0
  %329 = vmatpush.msra.mxu0 0.0
  %330 = vmatpush.msra.mxu0 0.0
  %331 = vmatpush.msra.mxu0 0.0
  %332 = vmatpush.msra.mxu0 0.0
  %333 = vmatpush.msra.mxu0 %v31
  %334 = vmatpush.msra.mxu0 %v30
  %335 = vmatpush.msra.mxu0 %v29
  %336 = vmatpush.msra.mxu0 %v28
  %337 = vmatmul.f32.gmra.mxu0 %v319
  %v338 = vpop.f32.mrf.mxu0
  %v339 = vadd.f32 0.0, %v338
  %340 = vdwg.mxu0
  %v341 = vadd.f32 %v318, %v339
  %v342 = vxor.u32 %v341, 2147483648
  %v343 = vmul.f32 %v342, 1.442695
  %v344 = vpow.pop %v343
  %v345 = vadd.f32 %v344, 1.0
  %v346 = vrcp.pop %v345
  %v347 = vmul.f32 %v345, %v346
  %v348 = vsub.f32 1.0, %v347
  %v349 = vmul.f32 %v346, %v348
  %v350 = vadd.f32 %v346, %v349
  %vm351 = vweird.f32 %v345
  %vm352 = vweird.f32 %v346
  %vm353 = vmor %vm351, %vm352
  %v354 = vsel %vm353, %v346, %v350
  %v355 = vand.u32 2147483647, %v345
  %vm356 = vcmp.eq.f32.partialorder %v355, 8.507059e+37
  %v357 = vand.u32 %v345, 2147483648
  %v358 = vor.u32 1.1754944e-38, %v357
  %v359 = vsel %vm356, %v358, %v354
  %v360 = vmul.f32 1.0, %v359
  %v361 = vtanh.pop %v341
  %v362 = vmul.f32 %v360, %v306
  %364 = vrot.lane.b32.xlu0 %v361, 32
  %v365 = vpop.permute.xlu0 %364
  %v367 = vmul.f32 %v360, %v365
  %369 = vrot.lane.b32.xlu0 %v367, 32
  %v370 = vpop.permute.xlu0 %369
  %v372 = vadd.f32 %v362, %v370
  %v373 = vtanh.pop %v372
  %375 = vrot.lane.b32.xlu0 %v373, 32
  %v376 = vpop.permute.xlu0 %375
  %v378 = vmul.f32 %v360, %v376
  %380 = vrot.lane.b32.xlu0 %v378, 64
  %v381 = vpop.permute.xlu0 %380
  %383 = vst.msk [vmem:[%s7 + $0x18] sm:$0xff] %vm119, %v381
  %v384 = vld [vmem:[#allocation2 + $0x20] sm:$0xff]
  %v385 = vsel %vm119, %v381, 0
  %387 = vmatpush.msra.mxu0 0.0
  %388 = vmatpush.msra.mxu0 0.0
  %389 = vmatpush.msra.mxu0 0.0
  %390 = vmatpush.msra.mxu0 0.0
  %391 = vmatpush.msra.mxu0 0.0
  %392 = vmatpush.msra.mxu0 0.0
  %393 = vmatpush.msra.mxu0 0.0
  %394 = vmatpush.msra.mxu0 0.0
  %395 = vmatpush.msra.mxu0 0.0
  %396 = vmatpush.msra.mxu0 0.0
  %397 = vmatpush.msra.mxu0 0.0
  %398 = vmatpush.msra.mxu0 0.0
  %399 = vmatpush.msra.mxu0 %v31
  %400 = vmatpush.msra.mxu0 %v30
  %401 = vmatpush.msra.mxu0 %v29
  %402 = vmatpush.msra.mxu0 %v28
  %403 = vmatmul.f32.gmra.mxu0 %v385
  %v404 = vpop.f32.mrf.mxu0
  %v405 = vadd.f32 0.0, %v404
  %406 = vdwg.mxu0
  %v407 = vadd.f32 %v384, %v405
  %v408 = vxor.u32 %v407, 2147483648
  %v409 = vmul.f32 %v408, 1.442695
  %v410 = vpow.pop %v409
  %v411 = vadd.f32 %v410, 1.0
  %v412 = vrcp.pop %v411
  %v413 = vmul.f32 %v411, %v412
  %v414 = vsub.f32 1.0, %v413
  %v415 = vmul.f32 %v412, %v414
  %v416 = vadd.f32 %v412, %v415
  %vm417 = vweird.f32 %v411
  %vm418 = vweird.f32 %v412
  %vm419 = vmor %vm417, %vm418
  %v420 = vsel %vm419, %v412, %v416
  %v421 = vand.u32 2147483647, %v411
  %vm422 = vcmp.eq.f32.partialorder %v421, 8.507059e+37
  %v423 = vand.u32 %v411, 2147483648
  %v424 = vor.u32 1.1754944e-38, %v423
  %v425 = vsel %vm422, %v424, %v420
  %v426 = vmul.f32 1.0, %v425
  %v427 = vtanh.pop %v407
  %v428 = vmul.f32 %v426, %v372
  %430 = vrot.lane.b32.xlu0 %v427, 32
  %v431 = vpop.permute.xlu0 %430
  %v433 = vmul.f32 %v426, %v431
  %435 = vrot.lane.b32.xlu0 %v433, 32
  %v436 = vpop.permute.xlu0 %435
  %v438 = vadd.f32 %v428, %v436
  %v439 = vtanh.pop %v438
  %441 = vrot.lane.b32.xlu0 %v439, 32
  %v442 = vpop.permute.xlu0 %441
  %v444 = vmul.f32 %v426, %v442
  %446 = vrot.lane.b32.xlu0 %v444, 64
  %v447 = vpop.permute.xlu0 %446
  %449 = vst.msk [vmem:[%s7 + $0x20] sm:$0xff] %vm119, %v447
  %v450 = vld [vmem:[#allocation2 + $0x28] sm:$0xff]
  %v451 = vsel %vm119, %v447, 0
  %453 = vmatpush.msra.mxu0 0.0
  %454 = vmatpush.msra.mxu0 0.0
  %455 = vmatpush.msra.mxu0 0.0
  %456 = vmatpush.msra.mxu0 0.0
  %457 = vmatpush.msra.mxu0 0.0
  %458 = vmatpush.msra.mxu0 0.0
  %459 = vmatpush.msra.mxu0 0.0
  %460 = vmatpush.msra.mxu0 0.0
  %461 = vmatpush.msra.mxu0 0.0
  %462 = vmatpush.msra.mxu0 0.0
  %463 = vmatpush.msra.mxu0 0.0
  %464 = vmatpush.msra.mxu0 0.0
  %465 = vmatpush.msra.mxu0 %v31
  %466 = vmatpush.msra.mxu0 %v30
  %467 = vmatpush.msra.mxu0 %v29
  %468 = vmatpush.msra.mxu0 %v28
  %469 = vmatmul.f32.gmra.mxu0 %v451
  %v470 = vpop.f32.mrf.mxu0
  %v471 = vadd.f32 0.0, %v470
  %472 = vdwg.mxu0
  %v473 = vadd.f32 %v450, %v471
  %v474 = vxor.u32 %v473, 2147483648
  %v475 = vmul.f32 %v474, 1.442695
  %v476 = vpow.pop %v475
  %v477 = vadd.f32 %v476, 1.0
  %v478 = vrcp.pop %v477
  %v479 = vmul.f32 %v477, %v478
  %v480 = vsub.f32 1.0, %v479
  %v481 = vmul.f32 %v478, %v480
  %v482 = vadd.f32 %v478, %v481
  %vm483 = vweird.f32 %v477
  %vm484 = vweird.f32 %v478
  %vm485 = vmor %vm483, %vm484
  %v486 = vsel %vm485, %v478, %v482
  %v487 = vand.u32 2147483647, %v477
  %vm488 = vcmp.eq.f32.partialorder %v487, 8.507059e+37
  %v489 = vand.u32 %v477, 2147483648
  %v490 = vor.u32 1.1754944e-38, %v489
  %v491 = vsel %vm488, %v490, %v486
  %v492 = vmul.f32 1.0, %v491
  %v493 = vtanh.pop %v473
  %v494 = vmul.f32 %v492, %v438
  %496 = vrot.lane.b32.xlu0 %v493, 32
  %v497 = vpop.permute.xlu0 %496
  %v499 = vmul.f32 %v492, %v497
  %501 = vrot.lane.b32.xlu0 %v499, 32
  %v502 = vpop.permute.xlu0 %501
  %v504 = vadd.f32 %v494, %v502
  %v505 = vtanh.pop %v504
  %507 = vrot.lane.b32.xlu0 %v505, 32
  %v508 = vpop.permute.xlu0 %507
  %v510 = vmul.f32 %v492, %v508
  %512 = vrot.lane.b32.xlu0 %v510, 64
  %v513 = vpop.permute.xlu0 %512
  %515 = vst.msk [vmem:[%s7 + $0x28] sm:$0xff] %vm119, %v513
  %v516 = vld [vmem:[#allocation2 + $0x30] sm:$0xff]
  %v517 = vsel %vm119, %v513, 0
  %519 = vmatpush.msra.mxu0 0.0
  %520 = vmatpush.msra.mxu0 0.0
  %521 = vmatpush.msra.mxu0 0.0
  %522 = vmatpush.msra.mxu0 0.0
  %523 = vmatpush.msra.mxu0 0.0
  %524 = vmatpush.msra.mxu0 0.0
  %525 = vmatpush.msra.mxu0 0.0
  %526 = vmatpush.msra.mxu0 0.0
  %527 = vmatpush.msra.mxu0 0.0
  %528 = vmatpush.msra.mxu0 0.0
  %529 = vmatpush.msra.mxu0 0.0
  %530 = vmatpush.msra.mxu0 0.0
  %531 = vmatpush.msra.mxu0 %v31
  %532 = vmatpush.msra.mxu0 %v30
  %533 = vmatpush.msra.mxu0 %v29
  %534 = vmatpush.msra.mxu0 %v28
  %535 = vmatmul.f32.gmra.mxu0 %v517
  %v536 = vpop.f32.mrf.mxu0
  %v537 = vadd.f32 0.0, %v536
  %538 = vdwg.mxu0
  %v539 = vadd.f32 %v516, %v537
  %v540 = vxor.u32 %v539, 2147483648
  %v541 = vmul.f32 %v540, 1.442695
  %v542 = vpow.pop %v541
  %v543 = vadd.f32 %v542, 1.0
  %v544 = vrcp.pop %v543
  %v545 = vmul.f32 %v543, %v544
  %v546 = vsub.f32 1.0, %v545
  %v547 = vmul.f32 %v544, %v546
  %v548 = vadd.f32 %v544, %v547
  %vm549 = vweird.f32 %v543
  %vm550 = vweird.f32 %v544
  %vm551 = vmor %vm549, %vm550
  %v552 = vsel %vm551, %v544, %v548
  %v553 = vand.u32 2147483647, %v543
  %vm554 = vcmp.eq.f32.partialorder %v553, 8.507059e+37
  %v555 = vand.u32 %v543, 2147483648
  %v556 = vor.u32 1.1754944e-38, %v555
  %v557 = vsel %vm554, %v556, %v552
  %v558 = vmul.f32 1.0, %v557
  %v559 = vtanh.pop %v539
  %v560 = vmul.f32 %v558, %v504
  %562 = vrot.lane.b32.xlu0 %v559, 32
  %v563 = vpop.permute.xlu0 %562
  %v565 = vmul.f32 %v558, %v563
  %567 = vrot.lane.b32.xlu0 %v565, 32
  %v568 = vpop.permute.xlu0 %567
  %v570 = vadd.f32 %v560, %v568
  %v571 = vtanh.pop %v570
  %573 = vrot.lane.b32.xlu0 %v571, 32
  %v574 = vpop.permute.xlu0 %573
  %v576 = vmul.f32 %v558, %v574
  %578 = vrot.lane.b32.xlu0 %v576, 64
  %v579 = vpop.permute.xlu0 %578
  %581 = vst.msk [vmem:[%s7 + $0x30] sm:$0xff] %vm119, %v579
  %v582 = vld [vmem:[#allocation2 + $0x38] sm:$0xff]
  %v583 = vsel %vm119, %v579, 0
  %585 = vmatpush.msra.mxu0 0.0
  %586 = vmatpush.msra.mxu0 0.0
  %587 = vmatpush.msra.mxu0 0.0
  %588 = vmatpush.msra.mxu0 0.0
  %589 = vmatpush.msra.mxu0 0.0
  %590 = vmatpush.msra.mxu0 0.0
  %591 = vmatpush.msra.mxu0 0.0
  %592 = vmatpush.msra.mxu0 0.0
  %593 = vmatpush.msra.mxu0 0.0
  %594 = vmatpush.msra.mxu0 0.0
  %595 = vmatpush.msra.mxu0 0.0
  %596 = vmatpush.msra.mxu0 0.0
  %597 = vmatpush.msra.mxu0 %v31
  %598 = vmatpush.msra.mxu0 %v30
  %599 = vmatpush.msra.mxu0 %v29
  %600 = vmatpush.msra.mxu0 %v28
  %601 = vmatmul.f32.gmra.mxu0 %v583
  %v602 = vpop.f32.mrf.mxu0
  %v603 = vadd.f32 0.0, %v602
  %604 = vdwg.mxu0
  %v605 = vadd.f32 %v582, %v603
  %v606 = vxor.u32 %v605, 2147483648
  %v607 = vmul.f32 %v606, 1.442695
  %v608 = vpow.pop %v607
  %v609 = vadd.f32 %v608, 1.0
  %v610 = vrcp.pop %v609
  %v611 = vmul.f32 %v609, %v610
  %v612 = vsub.f32 1.0, %v611
  %v613 = vmul.f32 %v610, %v612
  %v614 = vadd.f32 %v610, %v613
  %vm615 = vweird.f32 %v609
  %vm616 = vweird.f32 %v610
  %vm617 = vmor %vm615, %vm616
  %v618 = vsel %vm617, %v610, %v614
  %v619 = vand.u32 2147483647, %v609
  %vm620 = vcmp.eq.f32.partialorder %v619, 8.507059e+37
  %v621 = vand.u32 %v609, 2147483648
  %v622 = vor.u32 1.1754944e-38, %v621
  %v623 = vsel %vm620, %v622, %v618
  %v624 = vmul.f32 1.0, %v623
  %v625 = vtanh.pop %v605
  %v626 = vmul.f32 %v624, %v570
  %628 = vrot.lane.b32.xlu0 %v625, 32
  %v629 = vpop.permute.xlu0 %628
  %v631 = vmul.f32 %v624, %v629
  %633 = vrot.lane.b32.xlu0 %v631, 32
  %v634 = vpop.permute.xlu0 %633
  %v636 = vadd.f32 %v626, %v634
  %v637 = vtanh.pop %v636
  %639 = vrot.lane.b32.xlu0 %v637, 32
  %v640 = vpop.permute.xlu0 %639
  %v642 = vmul.f32 %v624, %v640
  %644 = vrot.lane.b32.xlu0 %v642, 64
  %v645 = vpop.permute.xlu0 %644
  %647 = vst.msk [vmem:[%s7 + $0x38] sm:$0xff] %vm119, %v645
  %v648 = vld [vmem:[%s4] sm:$0xff]
  %v649 = vld [vmem:[%s4 + $0x8] sm:$0xff]
  %v650 = vld [vmem:[%s4 + $0x10] sm:$0xff]
  %v651 = vld [vmem:[%s4 + $0x18] sm:$0xff]
  %v652 = vld [vmem:[%s5] sm:$0xff]
  %v653 = vld [vmem:[%s5 + $0x8] sm:$0xff]
  %v654 = vld [vmem:[%s5 + $0x10] sm:$0xff]
  %v655 = vld [vmem:[%s5 + $0x18] sm:$0xff]
  %v656 = vld [vmem:[%s6] sm:$0x1]
  %v657 = vld [vmem:[%s7] sm:$0xff]
  %v658 = vld [vmem:[%s7 + $0x8] sm:$0xff]
  %v659 = vld [vmem:[%s7 + $0x10] sm:$0xff]
  %v660 = vld [vmem:[%s7 + $0x18] sm:$0xff]
  %v661 = vld [vmem:[%s7 + $0x20] sm:$0xff]
  %v662 = vld [vmem:[%s7 + $0x28] sm:$0xff]
  %v663 = vld [vmem:[%s7 + $0x30] sm:$0xff]
  %v664 = vld [vmem:[%s7 + $0x38] sm:$0xff]
  %v666 = vperm.slane %v656, 0
  %v669 = vsel %vm119, %v657, 0
  %v672 = vsel %vm119, %v658, 0
  %v675 = vsel %vm119, %v659, 0
  %v678 = vsel %vm119, %v660, 0
  %v681 = vsel %vm119, %v661, 0
  %v684 = vsel %vm119, %v662, 0
  %v687 = vsel %vm119, %v663, 0
  %v690 = vsel %vm119, %v664, 0
  %692 = vmatpush.msra.mxu0 0.0
  %693 = vmatpush.msra.mxu0 0.0
  %694 = vmatpush.msra.mxu0 0.0
  %695 = vmatpush.msra.mxu0 0.0
  %696 = vmatpush.msra.mxu0 0.0
  %697 = vmatpush.msra.mxu0 0.0
  %698 = vmatpush.msra.mxu0 0.0
  %699 = vmatpush.msra.mxu0 0.0
  %700 = vmatpush.msra.mxu0 0.0
  %701 = vmatpush.msra.mxu0 0.0
  %702 = vmatpush.msra.mxu0 0.0
  %703 = vmatpush.msra.mxu0 0.0
  %704 = vmatpush.msra.mxu0 %v651
  %705 = vmatpush.msra.mxu0 %v650
  %706 = vmatpush.msra.mxu0 %v649
  %707 = vmatpush.msra.mxu0 %v648
  %708 = vmatmul.f32.gmra.mxu0 %v669
  %v709 = vpop.f32.mrf.mxu0
  %v710 = vadd.f32 %v666, %v709
  %711 = vmatmul.f32.gmra.mxu0 %v672
  %v712 = vpop.f32.mrf.mxu0
  %v713 = vadd.f32 %v666, %v712
  %714 = vmatmul.f32.gmra.mxu0 %v675
  %v715 = vpop.f32.mrf.mxu0
  %v716 = vadd.f32 %v666, %v715
  %717 = vmatmul.f32.gmra.mxu0 %v678
  %v718 = vpop.f32.mrf.mxu0
  %v719 = vadd.f32 %v666, %v718
  %720 = vmatmul.f32.gmra.mxu0 %v681
  %v721 = vpop.f32.mrf.mxu0
  %v722 = vadd.f32 %v666, %v721
  %723 = vmatmul.f32.gmra.mxu0 %v684
  %v724 = vpop.f32.mrf.mxu0
  %v725 = vadd.f32 %v666, %v724
  %726 = vmatmul.f32.gmra.mxu0 %v687
  %v727 = vpop.f32.mrf.mxu0
  %v728 = vadd.f32 %v666, %v727
  %729 = vmatmul.f32.gmra.mxu0 %v690
  %v730 = vpop.f32.mrf.mxu0
  %v731 = vadd.f32 %v666, %v730
  %732 = vdwg.mxu0
  %733 = vst [vmem:[#allocation2] sm:$0xff] %v710
  %734 = vst [vmem:[#allocation2 + $0x8] sm:$0xff] %v713
  %735 = vst [vmem:[#allocation2 + $0x10] sm:$0xff] %v716
  %736 = vst [vmem:[#allocation2 + $0x18] sm:$0xff] %v719
  %737 = vst [vmem:[#allocation2 + $0x20] sm:$0xff] %v722
  %738 = vst [vmem:[#allocation2 + $0x28] sm:$0xff] %v725
  %739 = vst [vmem:[#allocation2 + $0x30] sm:$0xff] %v728
  %740 = vst [vmem:[#allocation2 + $0x38] sm:$0xff] %v731
  %v741 = vld [vmem:[#allocation2] sm:$0xff]
  %742 = vmatpush.msra.mxu0 0.0
  %743 = vmatpush.msra.mxu0 0.0
  %744 = vmatpush.msra.mxu0 0.0
  %745 = vmatpush.msra.mxu0 0.0
  %746 = vmatpush.msra.mxu0 0.0
  %747 = vmatpush.msra.mxu0 0.0
  %748 = vmatpush.msra.mxu0 0.0
  %749 = vmatpush.msra.mxu0 0.0
  %750 = vmatpush.msra.mxu0 0.0
  %751 = vmatpush.msra.mxu0 0.0
  %752 = vmatpush.msra.mxu0 0.0
  %753 = vmatpush.msra.mxu0 0.0
  %754 = vmatpush.msra.mxu0 %v655
  %755 = vmatpush.msra.mxu0 %v654
  %756 = vmatpush.msra.mxu0 %v653
  %757 = vmatpush.msra.mxu0 %v652
  %758 = vmatmul.f32.gmra.mxu0 %v121
  %v759 = vpop.f32.mrf.mxu0
  %v760 = vadd.f32 0.0, %v759
  %761 = vdwg.mxu0
  %v762 = vadd.f32 %v741, %v760
  %v763 = vxor.u32 %v762, 2147483648
  %v764 = vmul.f32 %v763, 1.442695
  %v765 = vpow.pop %v764
  %v766 = vadd.f32 %v765, 1.0
  %v767 = vrcp.pop %v766
  %v768 = vmul.f32 %v766, %v767
  %v769 = vsub.f32 1.0, %v768
  %v770 = vmul.f32 %v767, %v769
  %v771 = vadd.f32 %v767, %v770
  %vm772 = vweird.f32 %v766
  %vm773 = vweird.f32 %v767
  %vm774 = vmor %vm772, %vm773
  %v775 = vsel %vm774, %v767, %v771
  %v776 = vand.u32 2147483647, %v766
  %vm777 = vcmp.eq.f32.partialorder %v776, 8.507059e+37
  %v778 = vand.u32 %v766, 2147483648
  %v779 = vor.u32 1.1754944e-38, %v778
  %v780 = vsel %vm777, %v779, %v775
  %v781 = vmul.f32 1.0, %v780
  %v782 = vtanh.pop %v762
  %v783 = vmul.f32 %v781, 0.0
  %785 = vrot.lane.b32.xlu0 %v782, 32
  %v786 = vpop.permute.xlu0 %785
  %v788 = vmul.f32 %v781, %v786
  %790 = vrot.lane.b32.xlu0 %v788, 32
  %v791 = vpop.permute.xlu0 %790
  %v793 = vadd.f32 %v783, %v791
  %v794 = vtanh.pop %v793
  %796 = vrot.lane.b32.xlu0 %v794, 32
  %v797 = vpop.permute.xlu0 %796
  %v799 = vmul.f32 %v781, %v797
  %801 = vrot.lane.b32.xlu0 %v799, 64
  %v802 = vpop.permute.xlu0 %801
  %804 = vst.msk [vmem:[%s7] sm:$0xff] %vm119, %v802
  %v805 = vld [vmem:[#allocation2 + $0x8] sm:$0xff]
  %v806 = vsel %vm119, %v802, 0
  %808 = vmatpush.msra.mxu0 0.0
  %809 = vmatpush.msra.mxu0 0.0
  %810 = vmatpush.msra.mxu0 0.0
  %811 = vmatpush.msra.mxu0 0.0
  %812 = vmatpush.msra.mxu0 0.0
  %813 = vmatpush.msra.mxu0 0.0
  %814 = vmatpush.msra.mxu0 0.0
  %815 = vmatpush.msra.mxu0 0.0
  %816 = vmatpush.msra.mxu0 0.0
  %817 = vmatpush.msra.mxu0 0.0
  %818 = vmatpush.msra.mxu0 0.0
  %819 = vmatpush.msra.mxu0 0.0
  %820 = vmatpush.msra.mxu0 %v655
  %821 = vmatpush.msra.mxu0 %v654
  %822 = vmatpush.msra.mxu0 %v653
  %823 = vmatpush.msra.mxu0 %v652
  %824 = vmatmul.f32.gmra.mxu0 %v806
  %v825 = vpop.f32.mrf.mxu0
  %v826 = vadd.f32 0.0, %v825
  %827 = vdwg.mxu0
  %v828 = vadd.f32 %v805, %v826
  %v829 = vxor.u32 %v828, 2147483648
  %v830 = vmul.f32 %v829, 1.442695
  %v831 = vpow.pop %v830
  %v832 = vadd.f32 %v831, 1.0
  %v833 = vrcp.pop %v832
  %v834 = vmul.f32 %v832, %v833
  %v835 = vsub.f32 1.0, %v834
  %v836 = vmul.f32 %v833, %v835
  %v837 = vadd.f32 %v833, %v836
  %vm838 = vweird.f32 %v832
  %vm839 = vweird.f32 %v833
  %vm840 = vmor %vm838, %vm839
  %v841 = vsel %vm840, %v833, %v837
  %v842 = vand.u32 2147483647, %v832
  %vm843 = vcmp.eq.f32.partialorder %v842, 8.507059e+37
  %v844 = vand.u32 %v832, 2147483648
  %v845 = vor.u32 1.1754944e-38, %v844
  %v846 = vsel %vm843, %v845, %v841
  %v847 = vmul.f32 1.0, %v846
  %v848 = vtanh.pop %v828
  %v849 = vmul.f32 %v847, %v793
  %851 = vrot.lane.b32.xlu0 %v848, 32
  %v852 = vpop.permute.xlu0 %851
  %v854 = vmul.f32 %v847, %v852
  %856 = vrot.lane.b32.xlu0 %v854, 32
  %v857 = vpop.permute.xlu0 %856
  %v859 = vadd.f32 %v849, %v857
  %v860 = vtanh.pop %v859
  %862 = vrot.lane.b32.xlu0 %v860, 32
  %v863 = vpop.permute.xlu0 %862
  %v865 = vmul.f32 %v847, %v863
  %867 = vrot.lane.b32.xlu0 %v865, 64
  %v868 = vpop.permute.xlu0 %867
  %870 = vst.msk [vmem:[%s7 + $0x8] sm:$0xff] %vm119, %v868
  %v871 = vld [vmem:[#allocation2 + $0x10] sm:$0xff]
  %v872 = vsel %vm119, %v868, 0
  %874 = vmatpush.msra.mxu0 0.0
  %875 = vmatpush.msra.mxu0 0.0
  %876 = vmatpush.msra.mxu0 0.0
  %877 = vmatpush.msra.mxu0 0.0
  %878 = vmatpush.msra.mxu0 0.0
  %879 = vmatpush.msra.mxu0 0.0
  %880 = vmatpush.msra.mxu0 0.0
  %881 = vmatpush.msra.mxu0 0.0
  %882 = vmatpush.msra.mxu0 0.0
  %883 = vmatpush.msra.mxu0 0.0
  %884 = vmatpush.msra.mxu0 0.0
  %885 = vmatpush.msra.mxu0 0.0
  %886 = vmatpush.msra.mxu0 %v655
  %887 = vmatpush.msra.mxu0 %v654
  %888 = vmatpush.msra.mxu0 %v653
  %889 = vmatpush.msra.mxu0 %v652
  %890 = vmatmul.f32.gmra.mxu0 %v872
  %v891 = vpop.f32.mrf.mxu0
  %v892 = vadd.f32 0.0, %v891
  %893 = vdwg.mxu0
  %v894 = vadd.f32 %v871, %v892
  %v895 = vxor.u32 %v894, 2147483648
  %v896 = vmul.f32 %v895, 1.442695
  %v897 = vpow.pop %v896
  %v898 = vadd.f32 %v897, 1.0
  %v899 = vrcp.pop %v898
  %v900 = vmul.f32 %v898, %v899
  %v901 = vsub.f32 1.0, %v900
  %v902 = vmul.f32 %v899, %v901
  %v903 = vadd.f32 %v899, %v902
  %vm904 = vweird.f32 %v898
  %vm905 = vweird.f32 %v899
  %vm906 = vmor %vm904, %vm905
  %v907 = vsel %vm906, %v899, %v903
  %v908 = vand.u32 2147483647, %v898
  %vm909 = vcmp.eq.f32.partialorder %v908, 8.507059e+37
  %v910 = vand.u32 %v898, 2147483648
  %v911 = vor.u32 1.1754944e-38, %v910
  %v912 = vsel %vm909, %v911, %v907
  %v913 = vmul.f32 1.0, %v912
  %v914 = vtanh.pop %v894
  %v915 = vmul.f32 %v913, %v859
  %917 = vrot.lane.b32.xlu0 %v914, 32
  %v918 = vpop.permute.xlu0 %917
  %v920 = vmul.f32 %v913, %v918
  %922 = vrot.lane.b32.xlu0 %v920, 32
  %v923 = vpop.permute.xlu0 %922
  %v925 = vadd.f32 %v915, %v923
  %v926 = vtanh.pop %v925
  %928 = vrot.lane.b32.xlu0 %v926, 32
  %v929 = vpop.permute.xlu0 %928
  %v931 = vmul.f32 %v913, %v929
  %933 = vrot.lane.b32.xlu0 %v931, 64
  %v934 = vpop.permute.xlu0 %933
  %936 = vst.msk [vmem:[%s7 + $0x10] sm:$0xff] %vm119, %v934
  %v937 = vld [vmem:[#allocation2 + $0x18] sm:$0xff]
  %v938 = vsel %vm119, %v934, 0
  %940 = vmatpush.msra.mxu0 0.0
  %941 = vmatpush.msra.mxu0 0.0
  %942 = vmatpush.msra.mxu0 0.0
  %943 = vmatpush.msra.mxu0 0.0
  %944 = vmatpush.msra.mxu0 0.0
  %945 = vmatpush.msra.mxu0 0.0
  %946 = vmatpush.msra.mxu0 0.0
  %947 = vmatpush.msra.mxu0 0.0
  %948 = vmatpush.msra.mxu0 0.0
  %949 = vmatpush.msra.mxu0 0.0
  %950 = vmatpush.msra.mxu0 0.0
  %951 = vmatpush.msra.mxu0 0.0
  %952 = vmatpush.msra.mxu0 %v655
  %953 = vmatpush.msra.mxu0 %v654
  %954 = vmatpush.msra.mxu0 %v653
  %955 = vmatpush.msra.mxu0 %v652
  %956 = vmatmul.f32.gmra.mxu0 %v938
  %v957 = vpop.f32.mrf.mxu0
  %v958 = vadd.f32 0.0, %v957
  %959 = vdwg.mxu0
  %v960 = vadd.f32 %v937, %v958
  %v961 = vxor.u32 %v960, 2147483648
  %v962 = vmul.f32 %v961, 1.442695
  %v963 = vpow.pop %v962
  %v964 = vadd.f32 %v963, 1.0
  %v965 = vrcp.pop %v964
  %v966 = vmul.f32 %v964, %v965
  %v967 = vsub.f32 1.0, %v966
  %v968 = vmul.f32 %v965, %v967
  %v969 = vadd.f32 %v965, %v968
  %vm970 = vweird.f32 %v964
  %vm971 = vweird.f32 %v965
  %vm972 = vmor %vm970, %vm971
  %v973 = vsel %vm972, %v965, %v969
  %v974 = vand.u32 2147483647, %v964
  %vm975 = vcmp.eq.f32.partialorder %v974, 8.507059e+37
  %v976 = vand.u32 %v964, 2147483648
  %v977 = vor.u32 1.1754944e-38, %v976
  %v978 = vsel %vm975, %v977, %v973
  %v979 = vmul.f32 1.0, %v978
  %v980 = vtanh.pop %v960
  %v981 = vmul.f32 %v979, %v925
  %983 = vrot.lane.b32.xlu0 %v980, 32
  %v984 = vpop.permute.xlu0 %983
  %v986 = vmul.f32 %v979, %v984
  %988 = vrot.lane.b32.xlu0 %v986, 32
  %v989 = vpop.permute.xlu0 %988
  %v991 = vadd.f32 %v981, %v989
  %v992 = vtanh.pop %v991
  %994 = vrot.lane.b32.xlu0 %v992, 32
  %v995 = vpop.permute.xlu0 %994
  %v997 = vmul.f32 %v979, %v995
  %999 = vrot.lane.b32.xlu0 %v997, 64
  %v1000 = vpop.permute.xlu0 %999
  %1002 = vst.msk [vmem:[%s7 + $0x18] sm:$0xff] %vm119, %v1000
  %v1003 = vld [vmem:[#allocation2 + $0x20] sm:$0xff]
  %v1004 = vsel %vm119, %v1000, 0
  %1006 = vmatpush.msra.mxu0 0.0
  %1007 = vmatpush.msra.mxu0 0.0
  %1008 = vmatpush.msra.mxu0 0.0
  %1009 = vmatpush.msra.mxu0 0.0
  %1010 = vmatpush.msra.mxu0 0.0
  %1011 = vmatpush.msra.mxu0 0.0
  %1012 = vmatpush.msra.mxu0 0.0
  %1013 = vmatpush.msra.mxu0 0.0
  %1014 = vmatpush.msra.mxu0 0.0
  %1015 = vmatpush.msra.mxu0 0.0
  %1016 = vmatpush.msra.mxu0 0.0
  %1017 = vmatpush.msra.mxu0 0.0
  %1018 = vmatpush.msra.mxu0 %v655
  %1019 = vmatpush.msra.mxu0 %v654
  %1020 = vmatpush.msra.mxu0 %v653
  %1021 = vmatpush.msra.mxu0 %v652
  %1022 = vmatmul.f32.gmra.mxu0 %v1004
  %v1023 = vpop.f32.mrf.mxu0
  %v1024 = vadd.f32 0.0, %v1023
  %1025 = vdwg.mxu0
  %v1026 = vadd.f32 %v1003, %v1024
  %v1027 = vxor.u32 %v1026, 2147483648
  %v1028 = vmul.f32 %v1027, 1.442695
  %v1029 = vpow.pop %v1028
  %v1030 = vadd.f32 %v1029, 1.0
  %v1031 = vrcp.pop %v1030
  %v1032 = vmul.f32 %v1030, %v1031
  %v1033 = vsub.f32 1.0, %v1032
  %v1034 = vmul.f32 %v1031, %v1033
  %v1035 = vadd.f32 %v1031, %v1034
  %vm1036 = vweird.f32 %v1030
  %vm1037 = vweird.f32 %v1031
  %vm1038 = vmor %vm1036, %vm1037
  %v1039 = vsel %vm1038, %v1031, %v1035
  %v1040 = vand.u32 2147483647, %v1030
  %vm1041 = vcmp.eq.f32.partialorder %v1040, 8.507059e+37
  %v1042 = vand.u32 %v1030, 2147483648
  %v1043 = vor.u32 1.1754944e-38, %v1042
  %v1044 = vsel %vm1041, %v1043, %v1039
  %v1045 = vmul.f32 1.0, %v1044
  %v1046 = vtanh.pop %v1026
  %v1047 = vmul.f32 %v1045, %v991
  %1049 = vrot.lane.b32.xlu0 %v1046, 32
  %v1050 = vpop.permute.xlu0 %1049
  %v1052 = vmul.f32 %v1045, %v1050
  %1054 = vrot.lane.b32.xlu0 %v1052, 32
  %v1055 = vpop.permute.xlu0 %1054
  %v1057 = vadd.f32 %v1047, %v1055
  %v1058 = vtanh.pop %v1057
  %1060 = vrot.lane.b32.xlu0 %v1058, 32
  %v1061 = vpop.permute.xlu0 %1060
  %v1063 = vmul.f32 %v1045, %v1061
  %1065 = vrot.lane.b32.xlu0 %v1063, 64
  %v1066 = vpop.permute.xlu0 %1065
  %1068 = vst.msk [vmem:[%s7 + $0x20] sm:$0xff] %vm119, %v1066
  %v1069 = vld [vmem:[#allocation2 + $0x28] sm:$0xff]
  %v1070 = vsel %vm119, %v1066, 0
  %1072 = vmatpush.msra.mxu0 0.0
  %1073 = vmatpush.msra.mxu0 0.0
  %1074 = vmatpush.msra.mxu0 0.0
  %1075 = vmatpush.msra.mxu0 0.0
  %1076 = vmatpush.msra.mxu0 0.0
  %1077 = vmatpush.msra.mxu0 0.0
  %1078 = vmatpush.msra.mxu0 0.0
  %1079 = vmatpush.msra.mxu0 0.0
  %1080 = vmatpush.msra.mxu0 0.0
  %1081 = vmatpush.msra.mxu0 0.0
  %1082 = vmatpush.msra.mxu0 0.0
  %1083 = vmatpush.msra.mxu0 0.0
  %1084 = vmatpush.msra.mxu0 %v655
  %1085 = vmatpush.msra.mxu0 %v654
  %1086 = vmatpush.msra.mxu0 %v653
  %1087 = vmatpush.msra.mxu0 %v652
  %1088 = vmatmul.f32.gmra.mxu0 %v1070
  %v1089 = vpop.f32.mrf.mxu0
  %v1090 = vadd.f32 0.0, %v1089
  %1091 = vdwg.mxu0
  %v1092 = vadd.f32 %v1069, %v1090
  %v1093 = vxor.u32 %v1092, 2147483648
  %v1094 = vmul.f32 %v1093, 1.442695
  %v1095 = vpow.pop %v1094
  %v1096 = vadd.f32 %v1095, 1.0
  %v1097 = vrcp.pop %v1096
  %v1098 = vmul.f32 %v1096, %v1097
  %v1099 = vsub.f32 1.0, %v1098
  %v1100 = vmul.f32 %v1097, %v1099
  %v1101 = vadd.f32 %v1097, %v1100
  %vm1102 = vweird.f32 %v1096
  %vm1103 = vweird.f32 %v1097
  %vm1104 = vmor %vm1102, %vm1103
  %v1105 = vsel %vm1104, %v1097, %v1101
  %v1106 = vand.u32 2147483647, %v1096
  %vm1107 = vcmp.eq.f32.partialorder %v1106, 8.507059e+37
  %v1108 = vand.u32 %v1096, 2147483648
  %v1109 = vor.u32 1.1754944e-38, %v1108
  %v1110 = vsel %vm1107, %v1109, %v1105
  %v1111 = vmul.f32 1.0, %v1110
  %v1112 = vtanh.pop %v1092
  %v1113 = vmul.f32 %v1111, %v1057
  %1115 = vrot.lane.b32.xlu0 %v1112, 32
  %v1116 = vpop.permute.xlu0 %1115
  %v1118 = vmul.f32 %v1111, %v1116
  %1120 = vrot.lane.b32.xlu0 %v1118, 32
  %v1121 = vpop.permute.xlu0 %1120
  %v1123 = vadd.f32 %v1113, %v1121
  %v1124 = vtanh.pop %v1123
  %1126 = vrot.lane.b32.xlu0 %v1124, 32
  %v1127 = vpop.permute.xlu0 %1126
  %v1129 = vmul.f32 %v1111, %v1127
  %1131 = vrot.lane.b32.xlu0 %v1129, 64
  %v1132 = vpop.permute.xlu0 %1131
  %1134 = vst.msk [vmem:[%s7 + $0x28] sm:$0xff] %vm119, %v1132
  %v1135 = vld [vmem:[#allocation2 + $0x30] sm:$0xff]
  %v1136 = vsel %vm119, %v1132, 0
  %1138 = vmatpush.msra.mxu0 0.0
  %1139 = vmatpush.msra.mxu0 0.0
  %1140 = vmatpush.msra.mxu0 0.0
  %1141 = vmatpush.msra.mxu0 0.0
  %1142 = vmatpush.msra.mxu0 0.0
  %1143 = vmatpush.msra.mxu0 0.0
  %1144 = vmatpush.msra.mxu0 0.0
  %1145 = vmatpush.msra.mxu0 0.0
  %1146 = vmatpush.msra.mxu0 0.0
  %1147 = vmatpush.msra.mxu0 0.0
  %1148 = vmatpush.msra.mxu0 0.0
  %1149 = vmatpush.msra.mxu0 0.0
  %1150 = vmatpush.msra.mxu0 %v655
  %1151 = vmatpush.msra.mxu0 %v654
  %1152 = vmatpush.msra.mxu0 %v653
  %1153 = vmatpush.msra.mxu0 %v652
  %1154 = vmatmul.f32.gmra.mxu0 %v1136
  %v1155 = vpop.f32.mrf.mxu0
  %v1156 = vadd.f32 0.0, %v1155
  %1157 = vdwg.mxu0
  %v1158 = vadd.f32 %v1135, %v1156
  %v1159 = vxor.u32 %v1158, 2147483648
  %v1160 = vmul.f32 %v1159, 1.442695
  %v1161 = vpow.pop %v1160
  %v1162 = vadd.f32 %v1161, 1.0
  %v1163 = vrcp.pop %v1162
  %v1164 = vmul.f32 %v1162, %v1163
  %v1165 = vsub.f32 1.0, %v1164
  %v1166 = vmul.f32 %v1163, %v1165
  %v1167 = vadd.f32 %v1163, %v1166
  %vm1168 = vweird.f32 %v1162
  %vm1169 = vweird.f32 %v1163
  %vm1170 = vmor %vm1168, %vm1169
  %v1171 = vsel %vm1170, %v1163, %v1167
  %v1172 = vand.u32 2147483647, %v1162
  %vm1173 = vcmp.eq.f32.partialorder %v1172, 8.507059e+37
  %v1174 = vand.u32 %v1162, 2147483648
  %v1175 = vor.u32 1.1754944e-38, %v1174
  %v1176 = vsel %vm1173, %v1175, %v1171
  %v1177 = vmul.f32 1.0, %v1176
  %v1178 = vtanh.pop %v1158
  %v1179 = vmul.f32 %v1177, %v1123
  %1181 = vrot.lane.b32.xlu0 %v1178, 32
  %v1182 = vpop.permute.xlu0 %1181
  %v1184 = vmul.f32 %v1177, %v1182
  %1186 = vrot.lane.b32.xlu0 %v1184, 32
  %v1187 = vpop.permute.xlu0 %1186
  %v1189 = vadd.f32 %v1179, %v1187
  %v1190 = vtanh.pop %v1189
  %1192 = vrot.lane.b32.xlu0 %v1190, 32
  %v1193 = vpop.permute.xlu0 %1192
  %v1195 = vmul.f32 %v1177, %v1193
  %1197 = vrot.lane.b32.xlu0 %v1195, 64
  %v1198 = vpop.permute.xlu0 %1197
  %1200 = vst.msk [vmem:[%s7 + $0x30] sm:$0xff] %vm119, %v1198
  %v1201 = vld [vmem:[#allocation2 + $0x38] sm:$0xff]
  %v1202 = vsel %vm119, %v1198, 0
  %1204 = vmatpush.msra.mxu0 0.0
  %1205 = vmatpush.msra.mxu0 0.0
  %1206 = vmatpush.msra.mxu0 0.0
  %1207 = vmatpush.msra.mxu0 0.0
  %1208 = vmatpush.msra.mxu0 0.0
  %1209 = vmatpush.msra.mxu0 0.0
  %1210 = vmatpush.msra.mxu0 0.0
  %1211 = vmatpush.msra.mxu0 0.0
  %1212 = vmatpush.msra.mxu0 0.0
  %1213 = vmatpush.msra.mxu0 0.0
  %1214 = vmatpush.msra.mxu0 0.0
  %1215 = vmatpush.msra.mxu0 0.0
  %1216 = vmatpush.msra.mxu0 %v655
  %1217 = vmatpush.msra.mxu0 %v654
  %1218 = vmatpush.msra.mxu0 %v653
  %1219 = vmatpush.msra.mxu0 %v652
  %1220 = vmatmul.f32.gmra.mxu0 %v1202
  %v1221 = vpop.f32.mrf.mxu0
  %v1222 = vadd.f32 0.0, %v1221
  %1223 = vdwg.mxu0
  %v1224 = vadd.f32 %v1201, %v1222
  %v1225 = vxor.u32 %v1224, 2147483648
  %v1226 = vmul.f32 %v1225, 1.442695
  %v1227 = vpow.pop %v1226
  %v1228 = vadd.f32 %v1227, 1.0
  %v1229 = vrcp.pop %v1228
  %v1230 = vmul.f32 %v1228, %v1229
  %v1231 = vsub.f32 1.0, %v1230
  %v1232 = vmul.f32 %v1229, %v1231
  %v1233 = vadd.f32 %v1229, %v1232
  %vm1234 = vweird.f32 %v1228
  %vm1235 = vweird.f32 %v1229
  %vm1236 = vmor %vm1234, %vm1235
  %v1237 = vsel %vm1236, %v1229, %v1233
  %v1238 = vand.u32 2147483647, %v1228
  %vm1239 = vcmp.eq.f32.partialorder %v1238, 8.507059e+37
  %v1240 = vand.u32 %v1228, 2147483648
  %v1241 = vor.u32 1.1754944e-38, %v1240
  %v1242 = vsel %vm1239, %v1241, %v1237
  %v1243 = vmul.f32 1.0, %v1242
  %v1244 = vtanh.pop %v1224
  %v1245 = vmul.f32 %v1243, %v1189
  %1247 = vrot.lane.b32.xlu0 %v1244, 32
  %v1248 = vpop.permute.xlu0 %1247
  %v1250 = vmul.f32 %v1243, %v1248
  %1252 = vrot.lane.b32.xlu0 %v1250, 32
  %v1253 = vpop.permute.xlu0 %1252
  %v1255 = vadd.f32 %v1245, %v1253
  %v1256 = vtanh.pop %v1255
  %1258 = vrot.lane.b32.xlu0 %v1256, 32
  %v1259 = vpop.permute.xlu0 %1258
  %v1261 = vmul.f32 %v1243, %v1259
  %1263 = vrot.lane.b32.xlu0 %v1261, 64
  %v1264 = vpop.permute.xlu0 %1263
  %1266 = vst.msk [vmem:[%s7 + $0x38] sm:$0xff] %vm119, %v1264
  // Predicated region
  $region30: #{dae_forward.3} parent=0 // pred_check
    _
  $region31: #{dae_forward.3} parent=0 // pred_check_branch
    %1268 = sbr.rel (0) target = $region33
  $region32: #{dae_forward.3} parent=0 // pred_region
    _
  $region33: #{dae_forward.3} parent=0 // pred_fallthru
    _
  // Predicated region
  $region34: #{dae_forward.3} parent=0 // pred_check
    _
  $region35: #{dae_forward.3} parent=0 // pred_check_branch
    %1270 = sbr.rel (0) target = $region37
  $region36: #{dae_forward.3} parent=0 // pred_region
    _
  $region37: #{dae_forward.3} parent=0 // pred_fallthru
    _

// kernel: dae_forward.2
$region0: #{dae_forward.2}
  #allocation0 [shape = 'u32[]', space=smem, size = 0x4, offset = 0x4, fixed_abs, tag = 'smem constant byte address 0x4 - core index']
  #allocation1 [shape = 'u32[72,128]{1,0:T(1,128)}', space=vmem, size = 0x9000, scoped, tag = 'internal scratch']
  #allocation2 [shape = 'f32[64,256]{1,0:T(8,128)}', space=vmem, size = 0x10000, scoped, tag = 'scratch operand']
  #allocation3 [shape = 'f32[64,64]{1,0:T(8,128)}', space=vmem, size = 0x8000, scoped, tag = 'scratch operand']
  %s0 = inlined_call_operand.vmem [shape: f32[64,16], index: 0, kind: input, shape index: {}]
  %s1 = inlined_call_operand.vmem [shape: f32[16,256], index: 1, kind: input, shape index: {}]
  %s2 = inlined_call_operand.vmem [shape: f32[32,256], index: 2, kind: input, shape index: {}]
  %s3 = inlined_call_operand.vmem [shape: f32[1,256], index: 3, kind: input, shape index: {}]
  %s4 = inlined_call_operand.vmem [shape: f32[64,256], index: 4, kind: input, shape index: {}]
  %s5 = inlined_call_operand.vmem [shape: f32[32,256], index: 5, kind: input, shape index: {}]
  %s6 = inlined_call_operand.vmem [shape: f32[1,256], index: 6, kind: input, shape index: {}]
  %s7 = inlined_call_operand.vmem [shape: f32[8,64], index: 7, kind: output, shape index: {}]
  %s8 = sld [smem:[#allocation0]]
  $region38: #{dae_forward.2} parent=0
    _
  %s10 = ssub.s32 1, %s8
  %s11 = scalar_select 0, %s10, %s8
  // Predicated region
  $region2: #{dae_forward.2} parent=0 // pred_check
    _
  $region3: #{dae_forward.2} parent=0 // pred_check_branch
    %13 = sbr.rel (0) target = $region5
  $region4: #{dae_forward.2} parent=0 // pred_region
    _
  $region5: #{dae_forward.2} parent=0 // pred_fallthru
    _
  // Predicated region
  $region6: #{dae_forward.2} parent=0 // pred_check
    _
  $region7: #{dae_forward.2} parent=0 // pred_check_branch
    %15 = sbr.rel (0) target = $region9
  $region8: #{dae_forward.2} parent=0 // pred_region
    _
  $region9: #{dae_forward.2} parent=0 // pred_fallthru
    _
  // Predicated region
  $region10: #{dae_forward.2} parent=0 // pred_check
    _
  $region11: #{dae_forward.2} parent=0 // pred_check_branch
    %17 = sbr.rel (0) target = $region13
  $region12: #{dae_forward.2} parent=0 // pred_region
    _
  $region13: #{dae_forward.2} parent=0 // pred_fallthru
    _
  // Predicated region
  $region14: #{dae_forward.2} parent=0 // pred_check
    _
  $region15: #{dae_forward.2} parent=0 // pred_check_branch
    %19 = sbr.rel (0) target = $region17
  $region16: #{dae_forward.2} parent=0 // pred_region
    _
  $region17: #{dae_forward.2} parent=0 // pred_fallthru
    _
  // Predicated region
  $region18: #{dae_forward.2} parent=0 // pred_check
    _
  $region19: #{dae_forward.2} parent=0 // pred_check_branch
    %21 = sbr.rel (0) target = $region21
  $region20: #{dae_forward.2} parent=0 // pred_region
    _
  $region21: #{dae_forward.2} parent=0 // pred_fallthru
    _
  // Predicated region
  $region22: #{dae_forward.2} parent=0 // pred_check
    _
  $region23: #{dae_forward.2} parent=0 // pred_check_branch
    %23 = sbr.rel (0) target = $region25
  $region24: #{dae_forward.2} parent=0 // pred_region
    _
  $region25: #{dae_forward.2} parent=0 // pred_fallthru
    _
  // Predicated region
  $region26: #{dae_forward.2} parent=0 // pred_check
    _
  $region27: #{dae_forward.2} parent=0 // pred_check_branch
    %25 = sbr.rel (0) target = $region29
  $region28: #{dae_forward.2} parent=0 // pred_region
    _
  $region29: #{dae_forward.2} parent=0 // pred_fallthru
    _
  %v26 = vld [vmem:[%s1] sm:$0xff]
  %v27 = vld [vmem:[%s1 + $0x8] sm:$0xff]
  %v28 = vld [vmem:[%s1 + $0x10] sm:$0xff]
  %v29 = vld [vmem:[%s1 + $0x18] sm:$0xff]
  %v30 = vld [vmem:[%s2] sm:$0xff]
  %v31 = vld [vmem:[%s2 + $0x8] sm:$0xff]
  %v32 = vld [vmem:[%s2 + $0x10] sm:$0xff]
  %v33 = vld [vmem:[%s2 + $0x18] sm:$0xff]
  %v34 = vld [vmem:[%s2 + $0x20] sm:$0xff]
  %v35 = vld [vmem:[%s2 + $0x28] sm:$0xff]
  %v36 = vld [vmem:[%s2 + $0x30] sm:$0xff]
  %v37 = vld [vmem:[%s2 + $0x38] sm:$0xff]
  %v38 = vld [vmem:[%s3] sm:$0x3]
  %v39 = vld [vmem:[%s0] sm:$0xff]
  %v40 = vld [vmem:[%s0 + $0x8] sm:$0xff]
  %v41 = vld [vmem:[%s0 + $0x10] sm:$0xff]
  %v42 = vld [vmem:[%s0 + $0x18] sm:$0xff]
  %v43 = vld [vmem:[%s0 + $0x20] sm:$0xff]
  %v44 = vld [vmem:[%s0 + $0x28] sm:$0xff]
  %v45 = vld [vmem:[%s0 + $0x30] sm:$0xff]
  %v46 = vld [vmem:[%s0 + $0x38] sm:$0xff]
  %v48 = vperm.slane %v38, 0
  %v49 = vperm.slane %v38, 1
  %vm52 = vcmask 130048
  %v54 = vsel %vm52, %v39, 0
  %v57 = vsel %vm52, %v40, 0
  %v60 = vsel %vm52, %v41, 0
  %v63 = vsel %vm52, %v42, 0
  %v66 = vsel %vm52, %v43, 0
  %v69 = vsel %vm52, %v44, 0
  %v72 = vsel %vm52, %v45, 0
  %v75 = vsel %vm52, %v46, 0
  %77 = vmatpush.msra.mxu0 0.0
  %78 = vmatpush.msra.mxu0 0.0
  %79 = vmatpush.msra.mxu0 0.0
  %80 = vmatpush.msra.mxu0 0.0
  %81 = vmatpush.msra.mxu0 0.0
  %82 = vmatpush.msra.mxu0 0.0
  %83 = vmatpush.msra.mxu0 0.0
  %84 = vmatpush.msra.mxu0 0.0
  %85 = vmatpush.msra.mxu0 0.0
  %86 = vmatpush.msra.mxu0 0.0
  %87 = vmatpush.msra.mxu0 0.0
  %88 = vmatpush.msra.mxu0 0.0
  %89 = vmatpush.msra.mxu0 0.0
  %90 = vmatpush.msra.mxu0 0.0
  %91 = vmatpush.msra.mxu0 %v28
  %92 = vmatpush.msra.mxu0 %v26
  %93 = vmatmul.f32.gmra.mxu0 %v54
  %v94 = vpop.f32.mrf.mxu0
  %v95 = vadd.f32 %v48, %v94
  %96 = vmatmul.f32.gmra.mxu0 %v57
  %v97 = vpop.f32.mrf.mxu0
  %v98 = vadd.f32 %v48, %v97
  %99 = vmatmul.f32.gmra.mxu0 %v60
  %v100 = vpop.f32.mrf.mxu0
  %v101 = vadd.f32 %v48, %v100
  %102 = vmatmul.f32.gmra.mxu0 %v63
  %v103 = vpop.f32.mrf.mxu0
  %v104 = vadd.f32 %v48, %v103
  %105 = vmatmul.f32.gmra.mxu0 %v66
  %v106 = vpop.f32.mrf.mxu0
  %v107 = vadd.f32 %v48, %v106
  %108 = vmatmul.f32.gmra.mxu0 %v69
  %v109 = vpop.f32.mrf.mxu0
  %v110 = vadd.f32 %v48, %v109
  %111 = vmatmul.f32.gmra.mxu0 %v72
  %v112 = vpop.f32.mrf.mxu0
  %v113 = vadd.f32 %v48, %v112
  %114 = vmatmul.f32.gmra.mxu0 %v75
  %v115 = vpop.f32.mrf.mxu0
  %v116 = vadd.f32 %v48, %v115
  %117 = vdwg.mxu0
  %118 = vmatpush.msra.mxu0 0.0
  %119 = vmatpush.msra.mxu0 0.0
  %120 = vmatpush.msra.mxu0 0.0
  %121 = vmatpush.msra.mxu0 0.0
  %122 = vmatpush.msra.mxu0 0.0
  %123 = vmatpush.msra.mxu0 0.0
  %124 = vmatpush.msra.mxu0 0.0
  %125 = vmatpush.msra.mxu0 0.0
  %126 = vmatpush.msra.mxu0 0.0
  %127 = vmatpush.msra.mxu0 0.0
  %128 = vmatpush.msra.mxu0 0.0
  %129 = vmatpush.msra.mxu0 0.0
  %130 = vmatpush.msra.mxu0 0.0
  %131 = vmatpush.msra.mxu0 0.0
  %132 = vmatpush.msra.mxu0 %v29
  %133 = vmatpush.msra.mxu0 %v27
  %134 = vmatmul.f32.gmra.mxu0 %v54
  %v135 = vpop.f32.mrf.mxu0
  %v136 = vadd.f32 %v49, %v135
  %137 = vmatmul.f32.gmra.mxu0 %v57
  %v138 = vpop.f32.mrf.mxu0
  %v139 = vadd.f32 %v49, %v138
  %140 = vmatmul.f32.gmra.mxu0 %v60
  %v141 = vpop.f32.mrf.mxu0
  %v142 = vadd.f32 %v49, %v141
  %143 = vmatmul.f32.gmra.mxu0 %v63
  %v144 = vpop.f32.mrf.mxu0
  %v145 = vadd.f32 %v49, %v144
  %146 = vmatmul.f32.gmra.mxu0 %v66
  %v147 = vpop.f32.mrf.mxu0
  %v148 = vadd.f32 %v49, %v147
  %149 = vmatmul.f32.gmra.mxu0 %v69
  %v150 = vpop.f32.mrf.mxu0
  %v151 = vadd.f32 %v49, %v150
  %152 = vmatmul.f32.gmra.mxu0 %v72
  %v153 = vpop.f32.mrf.mxu0
  %v154 = vadd.f32 %v49, %v153
  %155 = vmatmul.f32.gmra.mxu0 %v75
  %v156 = vpop.f32.mrf.mxu0
  %v157 = vadd.f32 %v49, %v156
  %158 = vdwg.mxu0
  %159 = vst [vmem:[#allocation2] sm:$0xff] %v95
  %160 = vst [vmem:[#allocation2 + $0x8] sm:$0xff] %v136
  %161 = vst [vmem:[#allocation2 + $0x10] sm:$0xff] %v98
  %162 = vst [vmem:[#allocation2 + $0x18] sm:$0xff] %v139
  %163 = vst [vmem:[#allocation2 + $0x20] sm:$0xff] %v101
  %164 = vst [vmem:[#allocation2 + $0x28] sm:$0xff] %v142
  %165 = vst [vmem:[#allocation2 + $0x30] sm:$0xff] %v104
  %166 = vst [vmem:[#allocation2 + $0x38] sm:$0xff] %v145
  %167 = vst [vmem:[#allocation2 + $0x40] sm:$0xff] %v107
  %168 = vst [vmem:[#allocation2 + $0x48] sm:$0xff] %v148
  %169 = vst [vmem:[#allocation2 + $0x50] sm:$0xff] %v110
  %170 = vst [vmem:[#allocation2 + $0x58] sm:$0xff] %v151
  %171 = vst [vmem:[#allocation2 + $0x60] sm:$0xff] %v113
  %172 = vst [vmem:[#allocation2 + $0x68] sm:$0xff] %v154
  %173 = vst [vmem:[#allocation2 + $0x70] sm:$0xff] %v116
  %174 = vst [vmem:[#allocation2 + $0x78] sm:$0xff] %v157
  %v175 = vld [vmem:[#allocation2] sm:$0xff]
  %vm176 = vcmask 261120
  %v178 = vsel %vm176, 0.0, 0
  %180 = vmatpush.msra.mxu0 0.0
  %181 = vmatpush.msra.mxu0 0.0
  %182 = vmatpush.msra.mxu0 0.0
  %183 = vmatpush.msra.mxu0 0.0
  %184 = vmatpush.msra.mxu0 0.0
  %185 = vmatpush.msra.mxu0 0.0
  %186 = vmatpush.msra.mxu0 0.0
  %187 = vmatpush.msra.mxu0 0.0
  %188 = vmatpush.msra.mxu0 0.0
  %189 = vmatpush.msra.mxu0 0.0
  %190 = vmatpush.msra.mxu0 0.0
  %191 = vmatpush.msra.mxu0 0.0
  %192 = vmatpush.msra.mxu0 %v36
  %193 = vmatpush.msra.mxu0 %v34
  %194 = vmatpush.msra.mxu0 %v32
  %195 = vmatpush.msra.mxu0 %v30
  %196 = vmatmul.f32.gmra.mxu0 %v178
  %v197 = vpop.f32.mrf.mxu0
  %v198 = vadd.f32 0.0, %v197
  %199 = vdwg.mxu0
  %v200 = vadd.f32 %v175, %v198
  %v201 = vld [vmem:[#allocation2 + $0x78] sm:$0xff]
  %202 = vmatpush.msra.mxu0 0.0
  %203 = vmatpush.msra.mxu0 0.0
  %204 = vmatpush.msra.mxu0 0.0
  %205 = vmatpush.msra.mxu0 0.0
  %206 = vmatpush.msra.mxu0 0.0
  %207 = vmatpush.msra.mxu0 0.0
  %208 = vmatpush.msra.mxu0 0.0
  %209 = vmatpush.msra.mxu0 0.0
  %210 = vmatpush.msra.mxu0 0.0
  %211 = vmatpush.msra.mxu0 0.0
  %212 = vmatpush.msra.mxu0 0.0
  %213 = vmatpush.msra.mxu0 0.0
  %214 = vmatpush.msra.mxu0 %v37
  %215 = vmatpush.msra.mxu0 %v35
  %216 = vmatpush.msra.mxu0 %v33
  %217 = vmatpush.msra.mxu0 %v31
  %218 = vmatmul.f32.gmra.mxu0 %v178
  %v219 = vpop.f32.mrf.mxu0
  %v220 = vadd.f32 0.0, %v219
  %221 = vdwg.mxu0
  %v222 = vadd.f32 %v201, %v220
  %v223 = vxor.u32 %v200, 2147483648
  %v224 = vmul.f32 %v223, 1.442695
  %v225 = vpow.pop %v224
  %v226 = vadd.f32 %v225, 1.0
  %v227 = vrcp.pop %v226
  %v228 = vmul.f32 %v226, %v227
  %v229 = vsub.f32 1.0, %v228
  %v230 = vmul.f32 %v227, %v229
  %v231 = vadd.f32 %v227, %v230
  %vm232 = vweird.f32 %v226
  %vm233 = vweird.f32 %v227
  %vm234 = vmor %vm232, %vm233
  %v235 = vsel %vm234, %v227, %v231
  %v236 = vand.u32 2147483647, %v226
  %vm237 = vcmp.eq.f32.partialorder %v236, 8.507059e+37
  %v238 = vand.u32 %v226, 2147483648
  %v239 = vor.u32 1.1754944e-38, %v238
  %v240 = vsel %vm237, %v239, %v235
  %v241 = vmul.f32 1.0, %v240
  %v242 = vxor.u32 %v222, 2147483648
  %v243 = vmul.f32 %v242, 1.442695
  %v244 = vpow.pop %v243
  %v245 = vadd.f32 %v244, 1.0
  %v246 = vrcp.pop %v245
  %v247 = vmul.f32 %v245, %v246
  %v248 = vsub.f32 1.0, %v247
  %v249 = vmul.f32 %v246, %v248
  %v250 = vadd.f32 %v246, %v249
  %vm251 = vweird.f32 %v245
  %vm252 = vweird.f32 %v246
  %vm253 = vmor %vm251, %vm252
  %v254 = vsel %vm253, %v246, %v250
  %v255 = vand.u32 2147483647, %v245
  %vm256 = vcmp.eq.f32.partialorder %v255, 8.507059e+37
  %v257 = vand.u32 %v245, 2147483648
  %v258 = vor.u32 1.1754944e-38, %v257
  %v259 = vsel %vm256, %v258, %v254
  %v260 = vmul.f32 1.0, %v259
  %v261 = vtanh.pop %v200
  %v262 = vtanh.pop %v222
  %v263 = vmul.f32 %v241, 0.0
  %265 = vrot.lane.b32.xlu0 %v261, 32
  %v266 = vpop.permute.xlu0 %265
  %v268 = vmul.f32 %v241, %v266
  %270 = vrot.lane.b32.xlu0 %v268, 32
  %v271 = vpop.permute.xlu0 %270
  %v273 = vadd.f32 %v263, %v271
  %v274 = vtanh.pop %v273
  %276 = vrot.lane.b32.xlu0 %v274, 32
  %v277 = vpop.permute.xlu0 %276
  %v279 = vmul.f32 %v241, %v277
  %v280 = vmul.f32 %v260, 0.0
  %282 = vrot.lane.b32.xlu0 %v262, 32
  %v283 = vpop.permute.xlu0 %282
  %v285 = vmul.f32 %v260, %v283
  %287 = vrot.lane.b32.xlu0 %v285, 32
  %v288 = vpop.permute.xlu0 %287
  %v290 = vadd.f32 %v280, %v288
  %v291 = vtanh.pop %v290
  %293 = vrot.lane.b32.xlu0 %v291, 32
  %v294 = vpop.permute.xlu0 %293
  %v296 = vmul.f32 %v260, %v294
  %298 = vrot.lane.b32.xlu0 %v279, 64
  %v299 = vpop.permute.xlu0 %298
  %301 = vst.msk [vmem:[#allocation3] sm:$0xff] %vm176, %v299
  %303 = vrot.lane.b32.xlu0 %v296, 96
  %v304 = vpop.permute.xlu0 %303
  %vm306 = vcmask 523520
  %307 = vst.msk [vmem:[#allocation3 + $0x38] sm:$0xff] %vm306, %v304
  %v308 = vld [vmem:[#allocation2 + $0x10] sm:$0xff]
  %v309 = vsel %vm176, %v299, 0
  %311 = vmatpush.msra.mxu0 0.0
  %312 = vmatpush.msra.mxu0 0.0
  %313 = vmatpush.msra.mxu0 0.0
  %314 = vmatpush.msra.mxu0 0.0
  %315 = vmatpush.msra.mxu0 0.0
  %316 = vmatpush.msra.mxu0 0.0
  %317 = vmatpush.msra.mxu0 0.0
  %318 = vmatpush.msra.mxu0 0.0
  %319 = vmatpush.msra.mxu0 0.0
  %320 = vmatpush.msra.mxu0 0.0
  %321 = vmatpush.msra.mxu0 0.0
  %322 = vmatpush.msra.mxu0 0.0
  %323 = vmatpush.msra.mxu0 %v36
  %324 = vmatpush.msra.mxu0 %v34
  %325 = vmatpush.msra.mxu0 %v32
  %326 = vmatpush.msra.mxu0 %v30
  %327 = vmatmul.f32.gmra.mxu0 %v309
  %v328 = vpop.f32.mrf.mxu0
  %v329 = vadd.f32 0.0, %v328
  %330 = vdwg.mxu0
  %v331 = vadd.f32 %v308, %v329
  %v332 = vld [vmem:[#allocation2 + $0x68] sm:$0xff]
  %333 = vrot.lane.b32.xlu0 %v296, 64
  %v334 = vpop.permute.xlu0 %333
  %v335 = vsel %vm176, %v334, 0
  %337 = vmatpush.msra.mxu0 0.0
  %338 = vmatpush.msra.mxu0 0.0
  %339 = vmatpush.msra.mxu0 0.0
  %340 = vmatpush.msra.mxu0 0.0
  %341 = vmatpush.msra.mxu0 0.0
  %342 = vmatpush.msra.mxu0 0.0
  %343 = vmatpush.msra.mxu0 0.0
  %344 = vmatpush.msra.mxu0 0.0
  %345 = vmatpush.msra.mxu0 0.0
  %346 = vmatpush.msra.mxu0 0.0
  %347 = vmatpush.msra.mxu0 0.0
  %348 = vmatpush.msra.mxu0 0.0
  %349 = vmatpush.msra.mxu0 %v37
  %350 = vmatpush.msra.mxu0 %v35
  %351 = vmatpush.msra.mxu0 %v33
  %352 = vmatpush.msra.mxu0 %v31
  %353 = vmatmul.f32.gmra.mxu0 %v335
  %v354 = vpop.f32.mrf.mxu0
  %v355 = vadd.f32 0.0, %v354
  %356 = vdwg.mxu0
  %v357 = vadd.f32 %v332, %v355
  %v358 = vxor.u32 %v331, 2147483648
  %v359 = vmul.f32 %v358, 1.442695
  %v360 = vpow.pop %v359
  %v361 = vadd.f32 %v360, 1.0
  %v362 = vrcp.pop %v361
  %v363 = vmul.f32 %v361, %v362
  %v364 = vsub.f32 1.0, %v363
  %v365 = vmul.f32 %v362, %v364
  %v366 = vadd.f32 %v362, %v365
  %vm367 = vweird.f32 %v361
  %vm368 = vweird.f32 %v362
  %vm369 = vmor %vm367, %vm368
  %v370 = vsel %vm369, %v362, %v366
  %v371 = vand.u32 2147483647, %v361
  %vm372 = vcmp.eq.f32.partialorder %v371, 8.507059e+37
  %v373 = vand.u32 %v361, 2147483648
  %v374 = vor.u32 1.1754944e-38, %v373
  %v375 = vsel %vm372, %v374, %v370
  %v376 = vmul.f32 1.0, %v375
  %v377 = vxor.u32 %v357, 2147483648
  %v378 = vmul.f32 %v377, 1.442695
  %v379 = vpow.pop %v378
  %v380 = vadd.f32 %v379, 1.0
  %v381 = vrcp.pop %v380
  %v382 = vmul.f32 %v380, %v381
  %v383 = vsub.f32 1.0, %v382
  %v384 = vmul.f32 %v381, %v383
  %v385 = vadd.f32 %v381, %v384
  %vm386 = vweird.f32 %v380
  %vm387 = vweird.f32 %v381
  %vm388 = vmor %vm386, %vm387
  %v389 = vsel %vm388, %v381, %v385
  %v390 = vand.u32 2147483647, %v380
  %vm391 = vcmp.eq.f32.partialorder %v390, 8.507059e+37
  %v392 = vand.u32 %v380, 2147483648
  %v393 = vor.u32 1.1754944e-38, %v392
  %v394 = vsel %vm391, %v393, %v389
  %v395 = vmul.f32 1.0, %v394
  %v396 = vtanh.pop %v331
  %v397 = vtanh.pop %v357
  %v398 = vmul.f32 %v376, %v273
  %400 = vrot.lane.b32.xlu0 %v396, 32
  %v401 = vpop.permute.xlu0 %400
  %v403 = vmul.f32 %v376, %v401
  %405 = vrot.lane.b32.xlu0 %v403, 32
  %v406 = vpop.permute.xlu0 %405
  %v408 = vadd.f32 %v398, %v406
  %v409 = vtanh.pop %v408
  %411 = vrot.lane.b32.xlu0 %v409, 32
  %v412 = vpop.permute.xlu0 %411
  %v414 = vmul.f32 %v376, %v412
  %v415 = vmul.f32 %v395, %v290
  %417 = vrot.lane.b32.xlu0 %v397, 32
  %v418 = vpop.permute.xlu0 %417
  %v420 = vmul.f32 %v395, %v418
  %422 = vrot.lane.b32.xlu0 %v420, 32
  %v423 = vpop.permute.xlu0 %422
  %v425 = vadd.f32 %v415, %v423
  %v426 = vtanh.pop %v425
  %428 = vrot.lane.b32.xlu0 %v426, 32
  %v429 = vpop.permute.xlu0 %428
  %v431 = vmul.f32 %v395, %v429
  %433 = vrot.lane.b32.xlu0 %v414, 64
  %v434 = vpop.permute.xlu0 %433
  %436 = vst.msk [vmem:[#allocation3 + $0x8] sm:$0xff] %vm176, %v434
  %438 = vrot.lane.b32.xlu0 %v431, 96
  %v439 = vpop.permute.xlu0 %438
  %441 = vst.msk [vmem:[#allocation3 + $0x30] sm:$0xff] %vm306, %v439
  %v442 = vld [vmem:[#allocation2 + $0x20] sm:$0xff]
  %v443 = vsel %vm176, %v434, 0
  %445 = vmatpush.msra.mxu0 0.0
  %446 = vmatpush.msra.mxu0 0.0
  %447 = vmatpush.msra.mxu0 0.0
  %448 = vmatpush.msra.mxu0 0.0
  %449 = vmatpush.msra.mxu0 0.0
  %450 = vmatpush.msra.mxu0 0.0
  %451 = vmatpush.msra.mxu0 0.0
  %452 = vmatpush.msra.mxu0 0.0
  %453 = vmatpush.msra.mxu0 0.0
  %454 = vmatpush.msra.mxu0 0.0
  %455 = vmatpush.msra.mxu0 0.0
  %456 = vmatpush.msra.mxu0 0.0
  %457 = vmatpush.msra.mxu0 %v36
  %458 = vmatpush.msra.mxu0 %v34
  %459 = vmatpush.msra.mxu0 %v32
  %460 = vmatpush.msra.mxu0 %v30
  %461 = vmatmul.f32.gmra.mxu0 %v443
  %v462 = vpop.f32.mrf.mxu0
  %v463 = vadd.f32 0.0, %v462
  %464 = vdwg.mxu0
  %v465 = vadd.f32 %v442, %v463
  %v466 = vld [vmem:[#allocation2 + $0x58] sm:$0xff]
  %467 = vrot.lane.b32.xlu0 %v431, 64
  %v468 = vpop.permute.xlu0 %467
  %v469 = vsel %vm176, %v468, 0
  %471 = vmatpush.msra.mxu0 0.0
  %472 = vmatpush.msra.mxu0 0.0
  %473 = vmatpush.msra.mxu0 0.0
  %474 = vmatpush.msra.mxu0 0.0
  %475 = vmatpush.msra.mxu0 0.0
  %476 = vmatpush.msra.mxu0 0.0
  %477 = vmatpush.msra.mxu0 0.0
  %478 = vmatpush.msra.mxu0 0.0
  %479 = vmatpush.msra.mxu0 0.0
  %480 = vmatpush.msra.mxu0 0.0
  %481 = vmatpush.msra.mxu0 0.0
  %482 = vmatpush.msra.mxu0 0.0
  %483 = vmatpush.msra.mxu0 %v37
  %484 = vmatpush.msra.mxu0 %v35
  %485 = vmatpush.msra.mxu0 %v33
  %486 = vmatpush.msra.mxu0 %v31
  %487 = vmatmul.f32.gmra.mxu0 %v469
  %v488 = vpop.f32.mrf.mxu0
  %v489 = vadd.f32 0.0, %v488
  %490 = vdwg.mxu0
  %v491 = vadd.f32 %v466, %v489
  %v492 = vxor.u32 %v465, 2147483648
  %v493 = vmul.f32 %v492, 1.442695
  %v494 = vpow.pop %v493
  %v495 = vadd.f32 %v494, 1.0
  %v496 = vrcp.pop %v495
  %v497 = vmul.f32 %v495, %v496
  %v498 = vsub.f32 1.0, %v497
  %v499 = vmul.f32 %v496, %v498
  %v500 = vadd.f32 %v496, %v499
  %vm501 = vweird.f32 %v495
  %vm502 = vweird.f32 %v496
  %vm503 = vmor %vm501, %vm502
  %v504 = vsel %vm503, %v496, %v500
  %v505 = vand.u32 2147483647, %v495
  %vm506 = vcmp.eq.f32.partialorder %v505, 8.507059e+37
  %v507 = vand.u32 %v495, 2147483648
  %v508 = vor.u32 1.1754944e-38, %v507
  %v509 = vsel %vm506, %v508, %v504
  %v510 = vmul.f32 1.0, %v509
  %v511 = vxor.u32 %v491, 2147483648
  %v512 = vmul.f32 %v511, 1.442695
  %v513 = vpow.pop %v512
  %v514 = vadd.f32 %v513, 1.0
  %v515 = vrcp.pop %v514
  %v516 = vmul.f32 %v514, %v515
  %v517 = vsub.f32 1.0, %v516
  %v518 = vmul.f32 %v515, %v517
  %v519 = vadd.f32 %v515, %v518
  %vm520 = vweird.f32 %v514
  %vm521 = vweird.f32 %v515
  %vm522 = vmor %vm520, %vm521
  %v523 = vsel %vm522, %v515, %v519
  %v524 = vand.u32 2147483647, %v514
  %vm525 = vcmp.eq.f32.partialorder %v524, 8.507059e+37
  %v526 = vand.u32 %v514, 2147483648
  %v527 = vor.u32 1.1754944e-38, %v526
  %v528 = vsel %vm525, %v527, %v523
  %v529 = vmul.f32 1.0, %v528
  %v530 = vtanh.pop %v465
  %v531 = vtanh.pop %v491
  %v532 = vmul.f32 %v510, %v408
  %534 = vrot.lane.b32.xlu0 %v530, 32
  %v535 = vpop.permute.xlu0 %534
  %v537 = vmul.f32 %v510, %v535
  %539 = vrot.lane.b32.xlu0 %v537, 32
  %v540 = vpop.permute.xlu0 %539
  %v542 = vadd.f32 %v532, %v540
  %v543 = vtanh.pop %v542
  %545 = vrot.lane.b32.xlu0 %v543, 32
  %v546 = vpop.permute.xlu0 %545
  %v548 = vmul.f32 %v510, %v546
  %v549 = vmul.f32 %v529, %v425
  %551 = vrot.lane.b32.xlu0 %v531, 32
  %v552 = vpop.permute.xlu0 %551
  %v554 = vmul.f32 %v529, %v552
  %556 = vrot.lane.b32.xlu0 %v554, 32
  %v557 = vpop.permute.xlu0 %556
  %v559 = vadd.f32 %v549, %v557
  %v560 = vtanh.pop %v559
  %562 = vrot.lane.b32.xlu0 %v560, 32
  %v563 = vpop.permute.xlu0 %562
  %v565 = vmul.f32 %v529, %v563
  %567 = vrot.lane.b32.xlu0 %v548, 64
  %v568 = vpop.permute.xlu0 %567
  %570 = vst.msk [vmem:[#allocation3 + $0x10] sm:$0xff] %vm176, %v568
  %572 = vrot.lane.b32.xlu0 %v565, 96
  %v573 = vpop.permute.xlu0 %572
  %575 = vst.msk [vmem:[#allocation3 + $0x28] sm:$0xff] %vm306, %v573
  %v576 = vld [vmem:[#allocation2 + $0x30] sm:$0xff]
  %v577 = vsel %vm176, %v568, 0
  %579 = vmatpush.msra.mxu0 0.0
  %580 = vmatpush.msra.mxu0 0.0
  %581 = vmatpush.msra.mxu0 0.0
  %582 = vmatpush.msra.mxu0 0.0
  %583 = vmatpush.msra.mxu0 0.0
  %584 = vmatpush.msra.mxu0 0.0
  %585 = vmatpush.msra.mxu0 0.0
  %586 = vmatpush.msra.mxu0 0.0
  %587 = vmatpush.msra.mxu0 0.0
  %588 = vmatpush.msra.mxu0 0.0
  %589 = vmatpush.msra.mxu0 0.0
  %590 = vmatpush.msra.mxu0 0.0
  %591 = vmatpush.msra.mxu0 %v36
  %592 = vmatpush.msra.mxu0 %v34
  %593 = vmatpush.msra.mxu0 %v32
  %594 = vmatpush.msra.mxu0 %v30
  %595 = vmatmul.f32.gmra.mxu0 %v577
  %v596 = vpop.f32.mrf.mxu0
  %v597 = vadd.f32 0.0, %v596
  %598 = vdwg.mxu0
  %v599 = vadd.f32 %v576, %v597
  %v600 = vld [vmem:[#allocation2 + $0x48] sm:$0xff]
  %601 = vrot.lane.b32.xlu0 %v565, 64
  %v602 = vpop.permute.xlu0 %601
  %v603 = vsel %vm176, %v602, 0
  %605 = vmatpush.msra.mxu0 0.0
  %606 = vmatpush.msra.mxu0 0.0
  %607 = vmatpush.msra.mxu0 0.0
  %608 = vmatpush.msra.mxu0 0.0
  %609 = vmatpush.msra.mxu0 0.0
  %610 = vmatpush.msra.mxu0 0.0
  %611 = vmatpush.msra.mxu0 0.0
  %612 = vmatpush.msra.mxu0 0.0
  %613 = vmatpush.msra.mxu0 0.0
  %614 = vmatpush.msra.mxu0 0.0
  %615 = vmatpush.msra.mxu0 0.0
  %616 = vmatpush.msra.mxu0 0.0
  %617 = vmatpush.msra.mxu0 %v37
  %618 = vmatpush.msra.mxu0 %v35
  %619 = vmatpush.msra.mxu0 %v33
  %620 = vmatpush.msra.mxu0 %v31
  %621 = vmatmul.f32.gmra.mxu0 %v603
  %v622 = vpop.f32.mrf.mxu0
  %v623 = vadd.f32 0.0, %v622
  %624 = vdwg.mxu0
  %v625 = vadd.f32 %v600, %v623
  %v626 = vxor.u32 %v599, 2147483648
  %v627 = vmul.f32 %v626, 1.442695
  %v628 = vpow.pop %v627
  %v629 = vadd.f32 %v628, 1.0
  %v630 = vrcp.pop %v629
  %v631 = vmul.f32 %v629, %v630
  %v632 = vsub.f32 1.0, %v631
  %v633 = vmul.f32 %v630, %v632
  %v634 = vadd.f32 %v630, %v633
  %vm635 = vweird.f32 %v629
  %vm636 = vweird.f32 %v630
  %vm637 = vmor %vm635, %vm636
  %v638 = vsel %vm637, %v630, %v634
  %v639 = vand.u32 2147483647, %v629
  %vm640 = vcmp.eq.f32.partialorder %v639, 8.507059e+37
  %v641 = vand.u32 %v629, 2147483648
  %v642 = vor.u32 1.1754944e-38, %v641
  %v643 = vsel %vm640, %v642, %v638
  %v644 = vmul.f32 1.0, %v643
  %v645 = vxor.u32 %v625, 2147483648
  %v646 = vmul.f32 %v645, 1.442695
  %v647 = vpow.pop %v646
  %v648 = vadd.f32 %v647, 1.0
  %v649 = vrcp.pop %v648
  %v650 = vmul.f32 %v648, %v649
  %v651 = vsub.f32 1.0, %v650
  %v652 = vmul.f32 %v649, %v651
  %v653 = vadd.f32 %v649, %v652
  %vm654 = vweird.f32 %v648
  %vm655 = vweird.f32 %v649
  %vm656 = vmor %vm654, %vm655
  %v657 = vsel %vm656, %v649, %v653
  %v658 = vand.u32 2147483647, %v648
  %vm659 = vcmp.eq.f32.partialorder %v658, 8.507059e+37
  %v660 = vand.u32 %v648, 2147483648
  %v661 = vor.u32 1.1754944e-38, %v660
  %v662 = vsel %vm659, %v661, %v657
  %v663 = vmul.f32 1.0, %v662
  %v664 = vtanh.pop %v599
  %v665 = vtanh.pop %v625
  %v666 = vmul.f32 %v644, %v542
  %668 = vrot.lane.b32.xlu0 %v664, 32
  %v669 = vpop.permute.xlu0 %668
  %v671 = vmul.f32 %v644, %v669
  %673 = vrot.lane.b32.xlu0 %v671, 32
  %v674 = vpop.permute.xlu0 %673
  %v676 = vadd.f32 %v666, %v674
  %v677 = vtanh.pop %v676
  %679 = vrot.lane.b32.xlu0 %v677, 32
  %v680 = vpop.permute.xlu0 %679
  %v682 = vmul.f32 %v644, %v680
  %v683 = vmul.f32 %v663, %v559
  %685 = vrot.lane.b32.xlu0 %v665, 32
  %v686 = vpop.permute.xlu0 %685
  %v688 = vmul.f32 %v663, %v686
  %690 = vrot.lane.b32.xlu0 %v688, 32
  %v691 = vpop.permute.xlu0 %690
  %v693 = vadd.f32 %v683, %v691
  %v694 = vtanh.pop %v693
  %696 = vrot.lane.b32.xlu0 %v694, 32
  %v697 = vpop.permute.xlu0 %696
  %v699 = vmul.f32 %v663, %v697
  %701 = vrot.lane.b32.xlu0 %v682, 64
  %v702 = vpop.permute.xlu0 %701
  %704 = vst.msk [vmem:[#allocation3 + $0x18] sm:$0xff] %vm176, %v702
  %706 = vrot.lane.b32.xlu0 %v699, 96
  %v707 = vpop.permute.xlu0 %706
  %709 = vst.msk [vmem:[#allocation3 + $0x20] sm:$0xff] %vm306, %v707
  %v710 = vld [vmem:[#allocation2 + $0x40] sm:$0xff]
  %v711 = vsel %vm176, %v702, 0
  %713 = vmatpush.msra.mxu0 0.0
  %714 = vmatpush.msra.mxu0 0.0
  %715 = vmatpush.msra.mxu0 0.0
  %716 = vmatpush.msra.mxu0 0.0
  %717 = vmatpush.msra.mxu0 0.0
  %718 = vmatpush.msra.mxu0 0.0
  %719 = vmatpush.msra.mxu0 0.0
  %720 = vmatpush.msra.mxu0 0.0
  %721 = vmatpush.msra.mxu0 0.0
  %722 = vmatpush.msra.mxu0 0.0
  %723 = vmatpush.msra.mxu0 0.0
  %724 = vmatpush.msra.mxu0 0.0
  %725 = vmatpush.msra.mxu0 %v36
  %726 = vmatpush.msra.mxu0 %v34
  %727 = vmatpush.msra.mxu0 %v32
  %728 = vmatpush.msra.mxu0 %v30
  %729 = vmatmul.f32.gmra.mxu0 %v711
  %v730 = vpop.f32.mrf.mxu0
  %v731 = vadd.f32 0.0, %v730
  %732 = vdwg.mxu0
  %v733 = vadd.f32 %v710, %v731
  %v734 = vld [vmem:[#allocation2 + $0x38] sm:$0xff]
  %735 = vrot.lane.b32.xlu0 %v699, 64
  %v736 = vpop.permute.xlu0 %735
  %v737 = vsel %vm176, %v736, 0
  %739 = vmatpush.msra.mxu0 0.0
  %740 = vmatpush.msra.mxu0 0.0
  %741 = vmatpush.msra.mxu0 0.0
  %742 = vmatpush.msra.mxu0 0.0
  %743 = vmatpush.msra.mxu0 0.0
  %744 = vmatpush.msra.mxu0 0.0
  %745 = vmatpush.msra.mxu0 0.0
  %746 = vmatpush.msra.mxu0 0.0
  %747 = vmatpush.msra.mxu0 0.0
  %748 = vmatpush.msra.mxu0 0.0
  %749 = vmatpush.msra.mxu0 0.0
  %750 = vmatpush.msra.mxu0 0.0
  %751 = vmatpush.msra.mxu0 %v37
  %752 = vmatpush.msra.mxu0 %v35
  %753 = vmatpush.msra.mxu0 %v33
  %754 = vmatpush.msra.mxu0 %v31
  %755 = vmatmul.f32.gmra.mxu0 %v737
  %v756 = vpop.f32.mrf.mxu0
  %v757 = vadd.f32 0.0, %v756
  %758 = vdwg.mxu0
  %v759 = vadd.f32 %v734, %v757
  %v760 = vxor.u32 %v733, 2147483648
  %v761 = vmul.f32 %v760, 1.442695
  %v762 = vpow.pop %v761
  %v763 = vadd.f32 %v762, 1.0
  %v764 = vrcp.pop %v763
  %v765 = vmul.f32 %v763, %v764
  %v766 = vsub.f32 1.0, %v765
  %v767 = vmul.f32 %v764, %v766
  %v768 = vadd.f32 %v764, %v767
  %vm769 = vweird.f32 %v763
  %vm770 = vweird.f32 %v764
  %vm771 = vmor %vm769, %vm770
  %v772 = vsel %vm771, %v764, %v768
  %v773 = vand.u32 2147483647, %v763
  %vm774 = vcmp.eq.f32.partialorder %v773, 8.507059e+37
  %v775 = vand.u32 %v763, 2147483648
  %v776 = vor.u32 1.1754944e-38, %v775
  %v777 = vsel %vm774, %v776, %v772
  %v778 = vmul.f32 1.0, %v777
  %v779 = vxor.u32 %v759, 2147483648
  %v780 = vmul.f32 %v779, 1.442695
  %v781 = vpow.pop %v780
  %v782 = vadd.f32 %v781, 1.0
  %v783 = vrcp.pop %v782
  %v784 = vmul.f32 %v782, %v783
  %v785 = vsub.f32 1.0, %v784
  %v786 = vmul.f32 %v783, %v785
  %v787 = vadd.f32 %v783, %v786
  %vm788 = vweird.f32 %v782
  %vm789 = vweird.f32 %v783
  %vm790 = vmor %vm788, %vm789
  %v791 = vsel %vm790, %v783, %v787
  %v792 = vand.u32 2147483647, %v782
  %vm793 = vcmp.eq.f32.partialorder %v792, 8.507059e+37
  %v794 = vand.u32 %v782, 2147483648
  %v795 = vor.u32 1.1754944e-38, %v794
  %v796 = vsel %vm793, %v795, %v791
  %v797 = vmul.f32 1.0, %v796
  %v798 = vtanh.pop %v733
  %v799 = vtanh.pop %v759
  %v800 = vmul.f32 %v778, %v676
  %802 = vrot.lane.b32.xlu0 %v798, 32
  %v803 = vpop.permute.xlu0 %802
  %v805 = vmul.f32 %v778, %v803
  %807 = vrot.lane.b32.xlu0 %v805, 32
  %v808 = vpop.permute.xlu0 %807
  %v810 = vadd.f32 %v800, %v808
  %v811 = vtanh.pop %v810
  %813 = vrot.lane.b32.xlu0 %v811, 32
  %v814 = vpop.permute.xlu0 %813
  %v816 = vmul.f32 %v778, %v814
  %v817 = vmul.f32 %v797, %v693
  %819 = vrot.lane.b32.xlu0 %v799, 32
  %v820 = vpop.permute.xlu0 %819
  %v822 = vmul.f32 %v797, %v820
  %824 = vrot.lane.b32.xlu0 %v822, 32
  %v825 = vpop.permute.xlu0 %824
  %v827 = vadd.f32 %v817, %v825
  %v828 = vtanh.pop %v827
  %830 = vrot.lane.b32.xlu0 %v828, 32
  %v831 = vpop.permute.xlu0 %830
  %v833 = vmul.f32 %v797, %v831
  %835 = vrot.lane.b32.xlu0 %v816, 64
  %v836 = vpop.permute.xlu0 %835
  %838 = vst.msk [vmem:[#allocation3 + $0x20] sm:$0xff] %vm176, %v836
  %840 = vrot.lane.b32.xlu0 %v833, 96
  %v841 = vpop.permute.xlu0 %840
  %843 = vst.msk [vmem:[#allocation3 + $0x18] sm:$0xff] %vm306, %v841
  %v844 = vld [vmem:[#allocation2 + $0x50] sm:$0xff]
  %v845 = vsel %vm176, %v836, 0
  %847 = vmatpush.msra.mxu0 0.0
  %848 = vmatpush.msra.mxu0 0.0
  %849 = vmatpush.msra.mxu0 0.0
  %850 = vmatpush.msra.mxu0 0.0
  %851 = vmatpush.msra.mxu0 0.0
  %852 = vmatpush.msra.mxu0 0.0
  %853 = vmatpush.msra.mxu0 0.0
  %854 = vmatpush.msra.mxu0 0.0
  %855 = vmatpush.msra.mxu0 0.0
  %856 = vmatpush.msra.mxu0 0.0
  %857 = vmatpush.msra.mxu0 0.0
  %858 = vmatpush.msra.mxu0 0.0
  %859 = vmatpush.msra.mxu0 %v36
  %860 = vmatpush.msra.mxu0 %v34
  %861 = vmatpush.msra.mxu0 %v32
  %862 = vmatpush.msra.mxu0 %v30
  %863 = vmatmul.f32.gmra.mxu0 %v845
  %v864 = vpop.f32.mrf.mxu0
  %v865 = vadd.f32 0.0, %v864
  %866 = vdwg.mxu0
  %v867 = vadd.f32 %v844, %v865
  %v868 = vld [vmem:[#allocation2 + $0x28] sm:$0xff]
  %869 = vrot.lane.b32.xlu0 %v833, 64
  %v870 = vpop.permute.xlu0 %869
  %v871 = vsel %vm176, %v870, 0
  %873 = vmatpush.msra.mxu0 0.0
  %874 = vmatpush.msra.mxu0 0.0
  %875 = vmatpush.msra.mxu0 0.0
  %876 = vmatpush.msra.mxu0 0.0
  %877 = vmatpush.msra.mxu0 0.0
  %878 = vmatpush.msra.mxu0 0.0
  %879 = vmatpush.msra.mxu0 0.0
  %880 = vmatpush.msra.mxu0 0.0
  %881 = vmatpush.msra.mxu0 0.0
  %882 = vmatpush.msra.mxu0 0.0
  %883 = vmatpush.msra.mxu0 0.0
  %884 = vmatpush.msra.mxu0 0.0
  %885 = vmatpush.msra.mxu0 %v37
  %886 = vmatpush.msra.mxu0 %v35
  %887 = vmatpush.msra.mxu0 %v33
  %888 = vmatpush.msra.mxu0 %v31
  %889 = vmatmul.f32.gmra.mxu0 %v871
  %v890 = vpop.f32.mrf.mxu0
  %v891 = vadd.f32 0.0, %v890
  %892 = vdwg.mxu0
  %v893 = vadd.f32 %v868, %v891
  %v894 = vxor.u32 %v867, 2147483648
  %v895 = vmul.f32 %v894, 1.442695
  %v896 = vpow.pop %v895
  %v897 = vadd.f32 %v896, 1.0
  %v898 = vrcp.pop %v897
  %v899 = vmul.f32 %v897, %v898
  %v900 = vsub.f32 1.0, %v899
  %v901 = vmul.f32 %v898, %v900
  %v902 = vadd.f32 %v898, %v901
  %vm903 = vweird.f32 %v897
  %vm904 = vweird.f32 %v898
  %vm905 = vmor %vm903, %vm904
  %v906 = vsel %vm905, %v898, %v902
  %v907 = vand.u32 2147483647, %v897
  %vm908 = vcmp.eq.f32.partialorder %v907, 8.507059e+37
  %v909 = vand.u32 %v897, 2147483648
  %v910 = vor.u32 1.1754944e-38, %v909
  %v911 = vsel %vm908, %v910, %v906
  %v912 = vmul.f32 1.0, %v911
  %v913 = vxor.u32 %v893, 2147483648
  %v914 = vmul.f32 %v913, 1.442695
  %v915 = vpow.pop %v914
  %v916 = vadd.f32 %v915, 1.0
  %v917 = vrcp.pop %v916
  %v918 = vmul.f32 %v916, %v917
  %v919 = vsub.f32 1.0, %v918
  %v920 = vmul.f32 %v917, %v919
  %v921 = vadd.f32 %v917, %v920
  %vm922 = vweird.f32 %v916
  %vm923 = vweird.f32 %v917
  %vm924 = vmor %vm922, %vm923
  %v925 = vsel %vm924, %v917, %v921
  %v926 = vand.u32 2147483647, %v916
  %vm927 = vcmp.eq.f32.partialorder %v926, 8.507059e+37
  %v928 = vand.u32 %v916, 2147483648
  %v929 = vor.u32 1.1754944e-38, %v928
  %v930 = vsel %vm927, %v929, %v925
  %v931 = vmul.f32 1.0, %v930
  %v932 = vtanh.pop %v867
  %v933 = vtanh.pop %v893
  %v934 = vmul.f32 %v912, %v810
  %936 = vrot.lane.b32.xlu0 %v932, 32
  %v937 = vpop.permute.xlu0 %936
  %v939 = vmul.f32 %v912, %v937
  %941 = vrot.lane.b32.xlu0 %v939, 32
  %v942 = vpop.permute.xlu0 %941
  %v944 = vadd.f32 %v934, %v942
  %v945 = vtanh.pop %v944
  %947 = vrot.lane.b32.xlu0 %v945, 32
  %v948 = vpop.permute.xlu0 %947
  %v950 = vmul.f32 %v912, %v948
  %v951 = vmul.f32 %v931, %v827
  %953 = vrot.lane.b32.xlu0 %v933, 32
  %v954 = vpop.permute.xlu0 %953
  %v956 = vmul.f32 %v931, %v954
  %958 = vrot.lane.b32.xlu0 %v956, 32
  %v959 = vpop.permute.xlu0 %958
  %v961 = vadd.f32 %v951, %v959
  %v962 = vtanh.pop %v961
  %964 = vrot.lane.b32.xlu0 %v962, 32
  %v965 = vpop.permute.xlu0 %964
  %v967 = vmul.f32 %v931, %v965
  %969 = vrot.lane.b32.xlu0 %v950, 64
  %v970 = vpop.permute.xlu0 %969
  %972 = vst.msk [vmem:[#allocation3 + $0x28] sm:$0xff] %vm176, %v970
  %974 = vrot.lane.b32.xlu0 %v967, 96
  %v975 = vpop.permute.xlu0 %974
  %977 = vst.msk [vmem:[#allocation3 + $0x10] sm:$0xff] %vm306, %v975
  %v978 = vld [vmem:[#allocation2 + $0x60] sm:$0xff]
  %v979 = vsel %vm176, %v970, 0
  %981 = vmatpush.msra.mxu0 0.0
  %982 = vmatpush.msra.mxu0 0.0
  %983 = vmatpush.msra.mxu0 0.0
  %984 = vmatpush.msra.mxu0 0.0
  %985 = vmatpush.msra.mxu0 0.0
  %986 = vmatpush.msra.mxu0 0.0
  %987 = vmatpush.msra.mxu0 0.0
  %988 = vmatpush.msra.mxu0 0.0
  %989 = vmatpush.msra.mxu0 0.0
  %990 = vmatpush.msra.mxu0 0.0
  %991 = vmatpush.msra.mxu0 0.0
  %992 = vmatpush.msra.mxu0 0.0
  %993 = vmatpush.msra.mxu0 %v36
  %994 = vmatpush.msra.mxu0 %v34
  %995 = vmatpush.msra.mxu0 %v32
  %996 = vmatpush.msra.mxu0 %v30
  %997 = vmatmul.f32.gmra.mxu0 %v979
  %v998 = vpop.f32.mrf.mxu0
  %v999 = vadd.f32 0.0, %v998
  %1000 = vdwg.mxu0
  %v1001 = vadd.f32 %v978, %v999
  %v1002 = vld [vmem:[#allocation2 + $0x18] sm:$0xff]
  %1003 = vrot.lane.b32.xlu0 %v967, 64
  %v1004 = vpop.permute.xlu0 %1003
  %v1005 = vsel %vm176, %v1004, 0
  %1007 = vmatpush.msra.mxu0 0.0
  %1008 = vmatpush.msra.mxu0 0.0
  %1009 = vmatpush.msra.mxu0 0.0
  %1010 = vmatpush.msra.mxu0 0.0
  %1011 = vmatpush.msra.mxu0 0.0
  %1012 = vmatpush.msra.mxu0 0.0
  %1013 = vmatpush.msra.mxu0 0.0
  %1014 = vmatpush.msra.mxu0 0.0
  %1015 = vmatpush.msra.mxu0 0.0
  %1016 = vmatpush.msra.mxu0 0.0
  %1017 = vmatpush.msra.mxu0 0.0
  %1018 = vmatpush.msra.mxu0 0.0
  %1019 = vmatpush.msra.mxu0 %v37
  %1020 = vmatpush.msra.mxu0 %v35
  %1021 = vmatpush.msra.mxu0 %v33
  %1022 = vmatpush.msra.mxu0 %v31
  %1023 = vmatmul.f32.gmra.mxu0 %v1005
  %v1024 = vpop.f32.mrf.mxu0
  %v1025 = vadd.f32 0.0, %v1024
  %1026 = vdwg.mxu0
  %v1027 = vadd.f32 %v1002, %v1025
  %v1028 = vxor.u32 %v1001, 2147483648
  %v1029 = vmul.f32 %v1028, 1.442695
  %v1030 = vpow.pop %v1029
  %v1031 = vadd.f32 %v1030, 1.0
  %v1032 = vrcp.pop %v1031
  %v1033 = vmul.f32 %v1031, %v1032
  %v1034 = vsub.f32 1.0, %v1033
  %v1035 = vmul.f32 %v1032, %v1034
  %v1036 = vadd.f32 %v1032, %v1035
  %vm1037 = vweird.f32 %v1031
  %vm1038 = vweird.f32 %v1032
  %vm1039 = vmor %vm1037, %vm1038
  %v1040 = vsel %vm1039, %v1032, %v1036
  %v1041 = vand.u32 2147483647, %v1031
  %vm1042 = vcmp.eq.f32.partialorder %v1041, 8.507059e+37
  %v1043 = vand.u32 %v1031, 2147483648
  %v1044 = vor.u32 1.1754944e-38, %v1043
  %v1045 = vsel %vm1042, %v1044, %v1040
  %v1046 = vmul.f32 1.0, %v1045
  %v1047 = vxor.u32 %v1027, 2147483648
  %v1048 = vmul.f32 %v1047, 1.442695
  %v1049 = vpow.pop %v1048
  %v1050 = vadd.f32 %v1049, 1.0
  %v1051 = vrcp.pop %v1050
  %v1052 = vmul.f32 %v1050, %v1051
  %v1053 = vsub.f32 1.0, %v1052
  %v1054 = vmul.f32 %v1051, %v1053
  %v1055 = vadd.f32 %v1051, %v1054
  %vm1056 = vweird.f32 %v1050
  %vm1057 = vweird.f32 %v1051
  %vm1058 = vmor %vm1056, %vm1057
  %v1059 = vsel %vm1058, %v1051, %v1055
  %v1060 = vand.u32 2147483647, %v1050
  %vm1061 = vcmp.eq.f32.partialorder %v1060, 8.507059e+37
  %v1062 = vand.u32 %v1050, 2147483648
  %v1063 = vor.u32 1.1754944e-38, %v1062
  %v1064 = vsel %vm1061, %v1063, %v1059
  %v1065 = vmul.f32 1.0, %v1064
  %v1066 = vtanh.pop %v1001
  %v1067 = vtanh.pop %v1027
  %v1068 = vmul.f32 %v1046, %v944
  %1070 = vrot.lane.b32.xlu0 %v1066, 32
  %v1071 = vpop.permute.xlu0 %1070
  %v1073 = vmul.f32 %v1046, %v1071
  %1075 = vrot.lane.b32.xlu0 %v1073, 32
  %v1076 = vpop.permute.xlu0 %1075
  %v1078 = vadd.f32 %v1068, %v1076
  %v1079 = vtanh.pop %v1078
  %1081 = vrot.lane.b32.xlu0 %v1079, 32
  %v1082 = vpop.permute.xlu0 %1081
  %v1084 = vmul.f32 %v1046, %v1082
  %v1085 = vmul.f32 %v1065, %v961
  %1087 = vrot.lane.b32.xlu0 %v1067, 32
  %v1088 = vpop.permute.xlu0 %1087
  %v1090 = vmul.f32 %v1065, %v1088
  %1092 = vrot.lane.b32.xlu0 %v1090, 32
  %v1093 = vpop.permute.xlu0 %1092
  %v1095 = vadd.f32 %v1085, %v1093
  %v1096 = vtanh.pop %v1095
  %1098 = vrot.lane.b32.xlu0 %v1096, 32
  %v1099 = vpop.permute.xlu0 %1098
  %v1101 = vmul.f32 %v1065, %v1099
  %1103 = vrot.lane.b32.xlu0 %v1084, 64
  %v1104 = vpop.permute.xlu0 %1103
  %1106 = vst.msk [vmem:[#allocation3 + $0x30] sm:$0xff] %vm176, %v1104
  %1108 = vrot.lane.b32.xlu0 %v1101, 96
  %v1109 = vpop.permute.xlu0 %1108
  %1111 = vst.msk [vmem:[#allocation3 + $0x8] sm:$0xff] %vm306, %v1109
  %v1112 = vld [vmem:[#allocation2 + $0x70] sm:$0xff]
  %v1113 = vsel %vm176, %v1104, 0
  %1115 = vmatpush.msra.mxu0 0.0
  %1116 = vmatpush.msra.mxu0 0.0
  %1117 = vmatpush.msra.mxu0 0.0
  %1118 = vmatpush.msra.mxu0 0.0
  %1119 = vmatpush.msra.mxu0 0.0
  %1120 = vmatpush.msra.mxu0 0.0
  %1121 = vmatpush.msra.mxu0 0.0
  %1122 = vmatpush.msra.mxu0 0.0
  %1123 = vmatpush.msra.mxu0 0.0
  %1124 = vmatpush.msra.mxu0 0.0
  %1125 = vmatpush.msra.mxu0 0.0
  %1126 = vmatpush.msra.mxu0 0.0
  %1127 = vmatpush.msra.mxu0 %v36
  %1128 = vmatpush.msra.mxu0 %v34
  %1129 = vmatpush.msra.mxu0 %v32
  %1130 = vmatpush.msra.mxu0 %v30
  %1131 = vmatmul.f32.gmra.mxu0 %v1113
  %v1132 = vpop.f32.mrf.mxu0
  %v1133 = vadd.f32 0.0, %v1132
  %1134 = vdwg.mxu0
  %v1135 = vadd.f32 %v1112, %v1133
  %v1136 = vld [vmem:[#allocation2 + $0x8] sm:$0xff]
  %1137 = vrot.lane.b32.xlu0 %v1101, 64
  %v1138 = vpop.permute.xlu0 %1137
  %v1139 = vsel %vm176, %v1138, 0
  %1141 = vmatpush.msra.mxu0 0.0
  %1142 = vmatpush.msra.mxu0 0.0
  %1143 = vmatpush.msra.mxu0 0.0
  %1144 = vmatpush.msra.mxu0 0.0
  %1145 = vmatpush.msra.mxu0 0.0
  %1146 = vmatpush.msra.mxu0 0.0
  %1147 = vmatpush.msra.mxu0 0.0
  %1148 = vmatpush.msra.mxu0 0.0
  %1149 = vmatpush.msra.mxu0 0.0
  %1150 = vmatpush.msra.mxu0 0.0
  %1151 = vmatpush.msra.mxu0 0.0
  %1152 = vmatpush.msra.mxu0 0.0
  %1153 = vmatpush.msra.mxu0 %v37
  %1154 = vmatpush.msra.mxu0 %v35
  %1155 = vmatpush.msra.mxu0 %v33
  %1156 = vmatpush.msra.mxu0 %v31
  %1157 = vmatmul.f32.gmra.mxu0 %v1139
  %v1158 = vpop.f32.mrf.mxu0
  %v1159 = vadd.f32 0.0, %v1158
  %1160 = vdwg.mxu0
  %v1161 = vadd.f32 %v1136, %v1159
  %v1162 = vxor.u32 %v1135, 2147483648
  %v1163 = vmul.f32 %v1162, 1.442695
  %v1164 = vpow.pop %v1163
  %v1165 = vadd.f32 %v1164, 1.0
  %v1166 = vrcp.pop %v1165
  %v1167 = vmul.f32 %v1165, %v1166
  %v1168 = vsub.f32 1.0, %v1167
  %v1169 = vmul.f32 %v1166, %v1168
  %v1170 = vadd.f32 %v1166, %v1169
  %vm1171 = vweird.f32 %v1165
  %vm1172 = vweird.f32 %v1166
  %vm1173 = vmor %vm1171, %vm1172
  %v1174 = vsel %vm1173, %v1166, %v1170
  %v1175 = vand.u32 2147483647, %v1165
  %vm1176 = vcmp.eq.f32.partialorder %v1175, 8.507059e+37
  %v1177 = vand.u32 %v1165, 2147483648
  %v1178 = vor.u32 1.1754944e-38, %v1177
  %v1179 = vsel %vm1176, %v1178, %v1174
  %v1180 = vmul.f32 1.0, %v1179
  %v1181 = vxor.u32 %v1161, 2147483648
  %v1182 = vmul.f32 %v1181, 1.442695
  %v1183 = vpow.pop %v1182
  %v1184 = vadd.f32 %v1183, 1.0
  %v1185 = vrcp.pop %v1184
  %v1186 = vmul.f32 %v1184, %v1185
  %v1187 = vsub.f32 1.0, %v1186
  %v1188 = vmul.f32 %v1185, %v1187
  %v1189 = vadd.f32 %v1185, %v1188
  %vm1190 = vweird.f32 %v1184
  %vm1191 = vweird.f32 %v1185
  %vm1192 = vmor %vm1190, %vm1191
  %v1193 = vsel %vm1192, %v1185, %v1189
  %v1194 = vand.u32 2147483647, %v1184
  %vm1195 = vcmp.eq.f32.partialorder %v1194, 8.507059e+37
  %v1196 = vand.u32 %v1184, 2147483648
  %v1197 = vor.u32 1.1754944e-38, %v1196
  %v1198 = vsel %vm1195, %v1197, %v1193
  %v1199 = vmul.f32 1.0, %v1198
  %v1200 = vtanh.pop %v1135
  %v1201 = vtanh.pop %v1161
  %v1202 = vmul.f32 %v1180, %v1078
  %1204 = vrot.lane.b32.xlu0 %v1200, 32
  %v1205 = vpop.permute.xlu0 %1204
  %v1207 = vmul.f32 %v1180, %v1205
  %1209 = vrot.lane.b32.xlu0 %v1207, 32
  %v1210 = vpop.permute.xlu0 %1209
  %v1212 = vadd.f32 %v1202, %v1210
  %v1213 = vtanh.pop %v1212
  %1215 = vrot.lane.b32.xlu0 %v1213, 32
  %v1216 = vpop.permute.xlu0 %1215
  %v1218 = vmul.f32 %v1180, %v1216
  %v1219 = vmul.f32 %v1199, %v1095
  %1221 = vrot.lane.b32.xlu0 %v1201, 32
  %v1222 = vpop.permute.xlu0 %1221
  %v1224 = vmul.f32 %v1199, %v1222
  %1226 = vrot.lane.b32.xlu0 %v1224, 32
  %v1227 = vpop.permute.xlu0 %1226
  %v1229 = vadd.f32 %v1219, %v1227
  %v1230 = vtanh.pop %v1229
  %1232 = vrot.lane.b32.xlu0 %v1230, 32
  %v1233 = vpop.permute.xlu0 %1232
  %v1235 = vmul.f32 %v1199, %v1233
  %1237 = vrot.lane.b32.xlu0 %v1218, 64
  %v1238 = vpop.permute.xlu0 %1237
  %1240 = vst.msk [vmem:[#allocation3 + $0x38] sm:$0xff] %vm176, %v1238
  %1242 = vrot.lane.b32.xlu0 %v1235, 96
  %v1243 = vpop.permute.xlu0 %1242
  %1245 = vst.msk [vmem:[#allocation3] sm:$0xff] %vm306, %v1243
  %v1246 = vld [vmem:[%s4] sm:$0xff]
  %v1247 = vld [vmem:[%s4 + $0x8] sm:$0xff]
  %v1248 = vld [vmem:[%s4 + $0x10] sm:$0xff]
  %v1249 = vld [vmem:[%s4 + $0x18] sm:$0xff]
  %v1250 = vld [vmem:[%s4 + $0x20] sm:$0xff]
  %v1251 = vld [vmem:[%s4 + $0x28] sm:$0xff]
  %v1252 = vld [vmem:[%s4 + $0x30] sm:$0xff]
  %v1253 = vld [vmem:[%s4 + $0x38] sm:$0xff]
  %v1254 = vld [vmem:[%s4 + $0x40] sm:$0xff]
  %v1255 = vld [vmem:[%s4 + $0x48] sm:$0xff]
  %v1256 = vld [vmem:[%s4 + $0x50] sm:$0xff]
  %v1257 = vld [vmem:[%s4 + $0x58] sm:$0xff]
  %v1258 = vld [vmem:[%s4 + $0x60] sm:$0xff]
  %v1259 = vld [vmem:[%s4 + $0x68] sm:$0xff]
  %v1260 = vld [vmem:[%s4 + $0x70] sm:$0xff]
  %v1261 = vld [vmem:[%s4 + $0x78] sm:$0xff]
  %v1262 = vld [vmem:[%s5] sm:$0xff]
  %v1263 = vld [vmem:[%s5 + $0x8] sm:$0xff]
  %v1264 = vld [vmem:[%s5 + $0x10] sm:$0xff]
  %v1265 = vld [vmem:[%s5 + $0x18] sm:$0xff]
  %v1266 = vld [vmem:[%s5 + $0x20] sm:$0xff]
  %v1267 = vld [vmem:[%s5 + $0x28] sm:$0xff]
  %v1268 = vld [vmem:[%s5 + $0x30] sm:$0xff]
  %v1269 = vld [vmem:[%s5 + $0x38] sm:$0xff]
  %v1270 = vld [vmem:[%s6] sm:$0x3]
  %v1271 = vld [vmem:[#allocation3] sm:$0xff]
  %v1272 = vld [vmem:[#allocation3 + $0x8] sm:$0xff]
  %v1273 = vld [vmem:[#allocation3 + $0x10] sm:$0xff]
  %v1274 = vld [vmem:[#allocation3 + $0x18] sm:$0xff]
  %v1275 = vld [vmem:[#allocation3 + $0x20] sm:$0xff]
  %v1276 = vld [vmem:[#allocation3 + $0x28] sm:$0xff]
  %v1277 = vld [vmem:[#allocation3 + $0x30] sm:$0xff]
  %v1278 = vld [vmem:[#allocation3 + $0x38] sm:$0xff]
  %v1280 = vperm.slane %v1270, 0
  %v1281 = vperm.slane %v1270, 1
  %vm1284 = vcmask 523264
  %v1286 = vsel %vm1284, %v1271, 0
  %v1289 = vsel %vm1284, %v1272, 0
  %v1292 = vsel %vm1284, %v1273, 0
  %v1295 = vsel %vm1284, %v1274, 0
  %v1298 = vsel %vm1284, %v1275, 0
  %v1301 = vsel %vm1284, %v1276, 0
  %v1304 = vsel %vm1284, %v1277, 0
  %v1307 = vsel %vm1284, %v1278, 0
  %1309 = vmatpush.msra.mxu0 0.0
  %1310 = vmatpush.msra.mxu0 0.0
  %1311 = vmatpush.msra.mxu0 0.0
  %1312 = vmatpush.msra.mxu0 0.0
  %1313 = vmatpush.msra.mxu0 0.0
  %1314 = vmatpush.msra.mxu0 0.0
  %1315 = vmatpush.msra.mxu0 0.0
  %1316 = vmatpush.msra.mxu0 0.0
  %1317 = vmatpush.msra.mxu0 %v1260
  %1318 = vmatpush.msra.mxu0 %v1258
  %1319 = vmatpush.msra.mxu0 %v1256
  %1320 = vmatpush.msra.mxu0 %v1254
  %1321 = vmatpush.msra.mxu0 %v1252
  %1322 = vmatpush.msra.mxu0 %v1250
  %1323 = vmatpush.msra.mxu0 %v1248
  %1324 = vmatpush.msra.mxu0 %v1246
  %1325 = vmatmul.f32.gmra.mxu0 %v1286
  %v1326 = vpop.f32.mrf.mxu0
  %v1327 = vadd.f32 %v1280, %v1326
  %1328 = vmatmul.f32.gmra.mxu0 %v1289
  %v1329 = vpop.f32.mrf.mxu0
  %v1330 = vadd.f32 %v1280, %v1329
  %1331 = vmatmul.f32.gmra.mxu0 %v1292
  %v1332 = vpop.f32.mrf.mxu0
  %v1333 = vadd.f32 %v1280, %v1332
  %1334 = vmatmul.f32.gmra.mxu0 %v1295
  %v1335 = vpop.f32.mrf.mxu0
  %v1336 = vadd.f32 %v1280, %v1335
  %1337 = vmatmul.f32.gmra.mxu0 %v1298
  %v1338 = vpop.f32.mrf.mxu0
  %v1339 = vadd.f32 %v1280, %v1338
  %1340 = vmatmul.f32.gmra.mxu0 %v1301
  %v1341 = vpop.f32.mrf.mxu0
  %v1342 = vadd.f32 %v1280, %v1341
  %1343 = vmatmul.f32.gmra.mxu0 %v1304
  %v1344 = vpop.f32.mrf.mxu0
  %v1345 = vadd.f32 %v1280, %v1344
  %1346 = vmatmul.f32.gmra.mxu0 %v1307
  %v1347 = vpop.f32.mrf.mxu0
  %v1348 = vadd.f32 %v1280, %v1347
  %1349 = vdwg.mxu0
  %1350 = vmatpush.msra.mxu0 0.0
  %1351 = vmatpush.msra.mxu0 0.0
  %1352 = vmatpush.msra.mxu0 0.0
  %1353 = vmatpush.msra.mxu0 0.0
  %1354 = vmatpush.msra.mxu0 0.0
  %1355 = vmatpush.msra.mxu0 0.0
  %1356 = vmatpush.msra.mxu0 0.0
  %1357 = vmatpush.msra.mxu0 0.0
  %1358 = vmatpush.msra.mxu0 %v1261
  %1359 = vmatpush.msra.mxu0 %v1259
  %1360 = vmatpush.msra.mxu0 %v1257
  %1361 = vmatpush.msra.mxu0 %v1255
  %1362 = vmatpush.msra.mxu0 %v1253
  %1363 = vmatpush.msra.mxu0 %v1251
  %1364 = vmatpush.msra.mxu0 %v1249
  %1365 = vmatpush.msra.mxu0 %v1247
  %1366 = vmatmul.f32.gmra.mxu0 %v1286
  %v1367 = vpop.f32.mrf.mxu0
  %v1368 = vadd.f32 %v1281, %v1367
  %1369 = vmatmul.f32.gmra.mxu0 %v1289
  %v1370 = vpop.f32.mrf.mxu0
  %v1371 = vadd.f32 %v1281, %v1370
  %1372 = vmatmul.f32.gmra.mxu0 %v1292
  %v1373 = vpop.f32.mrf.mxu0
  %v1374 = vadd.f32 %v1281, %v1373
  %1375 = vmatmul.f32.gmra.mxu0 %v1295
  %v1376 = vpop.f32.mrf.mxu0
  %v1377 = vadd.f32 %v1281, %v1376
  %1378 = vmatmul.f32.gmra.mxu0 %v1298
  %v1379 = vpop.f32.mrf.mxu0
  %v1380 = vadd.f32 %v1281, %v1379
  %1381 = vmatmul.f32.gmra.mxu0 %v1301
  %v1382 = vpop.f32.mrf.mxu0
  %v1383 = vadd.f32 %v1281, %v1382
  %1384 = vmatmul.f32.gmra.mxu0 %v1304
  %v1385 = vpop.f32.mrf.mxu0
  %v1386 = vadd.f32 %v1281, %v1385
  %1387 = vmatmul.f32.gmra.mxu0 %v1307
  %v1388 = vpop.f32.mrf.mxu0
  %v1389 = vadd.f32 %v1281, %v1388
  %1390 = vdwg.mxu0
  %1391 = vst [vmem:[#allocation2] sm:$0xff] %v1327
  %1392 = vst [vmem:[#allocation2 + $0x8] sm:$0xff] %v1368
  %1393 = vst [vmem:[#allocation2 + $0x10] sm:$0xff] %v1330
  %1394 = vst [vmem:[#allocation2 + $0x18] sm:$0xff] %v1371
  %1395 = vst [vmem:[#allocation2 + $0x20] sm:$0xff] %v1333
  %1396 = vst [vmem:[#allocation2 + $0x28] sm:$0xff] %v1374
  %1397 = vst [vmem:[#allocation2 + $0x30] sm:$0xff] %v1336
  %1398 = vst [vmem:[#allocation2 + $0x38] sm:$0xff] %v1377
  %1399 = vst [vmem:[#allocation2 + $0x40] sm:$0xff] %v1339
  %1400 = vst [vmem:[#allocation2 + $0x48] sm:$0xff] %v1380
  %1401 = vst [vmem:[#allocation2 + $0x50] sm:$0xff] %v1342
  %1402 = vst [vmem:[#allocation2 + $0x58] sm:$0xff] %v1383
  %1403 = vst [vmem:[#allocation2 + $0x60] sm:$0xff] %v1345
  %1404 = vst [vmem:[#allocation2 + $0x68] sm:$0xff] %v1386
  %1405 = vst [vmem:[#allocation2 + $0x70] sm:$0xff] %v1348
  %1406 = vst [vmem:[#allocation2 + $0x78] sm:$0xff] %v1389
  %v1407 = vld [vmem:[#allocation2] sm:$0xff]
  %1408 = vmatpush.msra.mxu0 0.0
  %1409 = vmatpush.msra.mxu0 0.0
  %1410 = vmatpush.msra.mxu0 0.0
  %1411 = vmatpush.msra.mxu0 0.0
  %1412 = vmatpush.msra.mxu0 0.0
  %1413 = vmatpush.msra.mxu0 0.0
  %1414 = vmatpush.msra.mxu0 0.0
  %1415 = vmatpush.msra.mxu0 0.0
  %1416 = vmatpush.msra.mxu0 0.0
  %1417 = vmatpush.msra.mxu0 0.0
  %1418 = vmatpush.msra.mxu0 0.0
  %1419 = vmatpush.msra.mxu0 0.0
  %1420 = vmatpush.msra.mxu0 %v1268
  %1421 = vmatpush.msra.mxu0 %v1266
  %1422 = vmatpush.msra.mxu0 %v1264
  %1423 = vmatpush.msra.mxu0 %v1262
  %1424 = vmatmul.f32.gmra.mxu0 %v178
  %v1425 = vpop.f32.mrf.mxu0
  %v1426 = vadd.f32 0.0, %v1425
  %1427 = vdwg.mxu0
  %v1428 = vadd.f32 %v1407, %v1426
  %v1429 = vld [vmem:[#allocation2 + $0x78] sm:$0xff]
  %1430 = vmatpush.msra.mxu0 0.0
  %1431 = vmatpush.msra.mxu0 0.0
  %1432 = vmatpush.msra.mxu0 0.0
  %1433 = vmatpush.msra.mxu0 0.0
  %1434 = vmatpush.msra.mxu0 0.0
  %1435 = vmatpush.msra.mxu0 0.0
  %1436 = vmatpush.msra.mxu0 0.0
  %1437 = vmatpush.msra.mxu0 0.0
  %1438 = vmatpush.msra.mxu0 0.0
  %1439 = vmatpush.msra.mxu0 0.0
  %1440 = vmatpush.msra.mxu0 0.0
  %1441 = vmatpush.msra.mxu0 0.0
  %1442 = vmatpush.msra.mxu0 %v1269
  %1443 = vmatpush.msra.mxu0 %v1267
  %1444 = vmatpush.msra.mxu0 %v1265
  %1445 = vmatpush.msra.mxu0 %v1263
  %1446 = vmatmul.f32.gmra.mxu0 %v178
  %v1447 = vpop.f32.mrf.mxu0
  %v1448 = vadd.f32 0.0, %v1447
  %1449 = vdwg.mxu0
  %v1450 = vadd.f32 %v1429, %v1448
  %v1451 = vxor.u32 %v1428, 2147483648
  %v1452 = vmul.f32 %v1451, 1.442695
  %v1453 = vpow.pop %v1452
  %v1454 = vadd.f32 %v1453, 1.0
  %v1455 = vrcp.pop %v1454
  %v1456 = vmul.f32 %v1454, %v1455
  %v1457 = vsub.f32 1.0, %v1456
  %v1458 = vmul.f32 %v1455, %v1457
  %v1459 = vadd.f32 %v1455, %v1458
  %vm1460 = vweird.f32 %v1454
  %vm1461 = vweird.f32 %v1455
  %vm1462 = vmor %vm1460, %vm1461
  %v1463 = vsel %vm1462, %v1455, %v1459
  %v1464 = vand.u32 2147483647, %v1454
  %vm1465 = vcmp.eq.f32.partialorder %v1464, 8.507059e+37
  %v1466 = vand.u32 %v1454, 2147483648
  %v1467 = vor.u32 1.1754944e-38, %v1466
  %v1468 = vsel %vm1465, %v1467, %v1463
  %v1469 = vmul.f32 1.0, %v1468
  %v1470 = vxor.u32 %v1450, 2147483648
  %v1471 = vmul.f32 %v1470, 1.442695
  %v1472 = vpow.pop %v1471
  %v1473 = vadd.f32 %v1472, 1.0
  %v1474 = vrcp.pop %v1473
  %v1475 = vmul.f32 %v1473, %v1474
  %v1476 = vsub.f32 1.0, %v1475
  %v1477 = vmul.f32 %v1474, %v1476
  %v1478 = vadd.f32 %v1474, %v1477
  %vm1479 = vweird.f32 %v1473
  %vm1480 = vweird.f32 %v1474
  %vm1481 = vmor %vm1479, %vm1480
  %v1482 = vsel %vm1481, %v1474, %v1478
  %v1483 = vand.u32 2147483647, %v1473
  %vm1484 = vcmp.eq.f32.partialorder %v1483, 8.507059e+37
  %v1485 = vand.u32 %v1473, 2147483648
  %v1486 = vor.u32 1.1754944e-38, %v1485
  %v1487 = vsel %vm1484, %v1486, %v1482
  %v1488 = vmul.f32 1.0, %v1487
  %v1489 = vtanh.pop %v1428
  %v1490 = vtanh.pop %v1450
  %v1491 = vmul.f32 %v1469, 0.0
  %1493 = vrot.lane.b32.xlu0 %v1489, 32
  %v1494 = vpop.permute.xlu0 %1493
  %v1496 = vmul.f32 %v1469, %v1494
  %1498 = vrot.lane.b32.xlu0 %v1496, 32
  %v1499 = vpop.permute.xlu0 %1498
  %v1501 = vadd.f32 %v1491, %v1499
  %v1502 = vtanh.pop %v1501
  %1504 = vrot.lane.b32.xlu0 %v1502, 32
  %v1505 = vpop.permute.xlu0 %1504
  %v1507 = vmul.f32 %v1469, %v1505
  %v1508 = vmul.f32 %v1488, 0.0
  %1510 = vrot.lane.b32.xlu0 %v1490, 32
  %v1511 = vpop.permute.xlu0 %1510
  %v1513 = vmul.f32 %v1488, %v1511
  %1515 = vrot.lane.b32.xlu0 %v1513, 32
  %v1516 = vpop.permute.xlu0 %1515
  %v1518 = vadd.f32 %v1508, %v1516
  %v1519 = vtanh.pop %v1518
  %1521 = vrot.lane.b32.xlu0 %v1519, 32
  %v1522 = vpop.permute.xlu0 %1521
  %v1524 = vmul.f32 %v1488, %v1522
  %1526 = vrot.lane.b32.xlu0 %v1507, 64
  %v1527 = vpop.permute.xlu0 %1526
  %1529 = vst.msk [vmem:[#allocation3] sm:$0xff] %vm176, %v1527
  %1531 = vrot.lane.b32.xlu0 %v1524, 96
  %v1532 = vpop.permute.xlu0 %1531
  %1534 = vst.msk [vmem:[#allocation3 + $0x38] sm:$0xff] %vm306, %v1532
  %v1535 = vld [vmem:[#allocation2 + $0x10] sm:$0xff]
  %v1536 = vsel %vm176, %v1527, 0
  %1538 = vmatpush.msra.mxu0 0.0
  %1539 = vmatpush.msra.mxu0 0.0
  %1540 = vmatpush.msra.mxu0 0.0
  %1541 = vmatpush.msra.mxu0 0.0
  %1542 = vmatpush.msra.mxu0 0.0
  %1543 = vmatpush.msra.mxu0 0.0
  %1544 = vmatpush.msra.mxu0 0.0
  %1545 = vmatpush.msra.mxu0 0.0
  %1546 = vmatpush.msra.mxu0 0.0
  %1547 = vmatpush.msra.mxu0 0.0
  %1548 = vmatpush.msra.mxu0 0.0
  %1549 = vmatpush.msra.mxu0 0.0
  %1550 = vmatpush.msra.mxu0 %v1268
  %1551 = vmatpush.msra.mxu0 %v1266
  %1552 = vmatpush.msra.mxu0 %v1264
  %1553 = vmatpush.msra.mxu0 %v1262
  %1554 = vmatmul.f32.gmra.mxu0 %v1536
  %v1555 = vpop.f32.mrf.mxu0
  %v1556 = vadd.f32 0.0, %v1555
  %1557 = vdwg.mxu0
  %v1558 = vadd.f32 %v1535, %v1556
  %v1559 = vld [vmem:[#allocation2 + $0x68] sm:$0xff]
  %1560 = vrot.lane.b32.xlu0 %v1524, 64
  %v1561 = vpop.permute.xlu0 %1560
  %v1562 = vsel %vm176, %v1561, 0
  %1564 = vmatpush.msra.mxu0 0.0
  %1565 = vmatpush.msra.mxu0 0.0
  %1566 = vmatpush.msra.mxu0 0.0
  %1567 = vmatpush.msra.mxu0 0.0
  %1568 = vmatpush.msra.mxu0 0.0
  %1569 = vmatpush.msra.mxu0 0.0
  %1570 = vmatpush.msra.mxu0 0.0
  %1571 = vmatpush.msra.mxu0 0.0
  %1572 = vmatpush.msra.mxu0 0.0
  %1573 = vmatpush.msra.mxu0 0.0
  %1574 = vmatpush.msra.mxu0 0.0
  %1575 = vmatpush.msra.mxu0 0.0
  %1576 = vmatpush.msra.mxu0 %v1269
  %1577 = vmatpush.msra.mxu0 %v1267
  %1578 = vmatpush.msra.mxu0 %v1265
  %1579 = vmatpush.msra.mxu0 %v1263
  %1580 = vmatmul.f32.gmra.mxu0 %v1562
  %v1581 = vpop.f32.mrf.mxu0
  %v1582 = vadd.f32 0.0, %v1581
  %1583 = vdwg.mxu0
  %v1584 = vadd.f32 %v1559, %v1582
  %v1585 = vxor.u32 %v1558, 2147483648
  %v1586 = vmul.f32 %v1585, 1.442695
  %v1587 = vpow.pop %v1586
  %v1588 = vadd.f32 %v1587, 1.0
  %v1589 = vrcp.pop %v1588
  %v1590 = vmul.f32 %v1588, %v1589
  %v1591 = vsub.f32 1.0, %v1590
  %v1592 = vmul.f32 %v1589, %v1591
  %v1593 = vadd.f32 %v1589, %v1592
  %vm1594 = vweird.f32 %v1588
  %vm1595 = vweird.f32 %v1589
  %vm1596 = vmor %vm1594, %vm1595
  %v1597 = vsel %vm1596, %v1589, %v1593
  %v1598 = vand.u32 2147483647, %v1588
  %vm1599 = vcmp.eq.f32.partialorder %v1598, 8.507059e+37
  %v1600 = vand.u32 %v1588, 2147483648
  %v1601 = vor.u32 1.1754944e-38, %v1600
  %v1602 = vsel %vm1599, %v1601, %v1597
  %v1603 = vmul.f32 1.0, %v1602
  %v1604 = vxor.u32 %v1584, 2147483648
  %v1605 = vmul.f32 %v1604, 1.442695
  %v1606 = vpow.pop %v1605
  %v1607 = vadd.f32 %v1606, 1.0
  %v1608 = vrcp.pop %v1607
  %v1609 = vmul.f32 %v1607, %v1608
  %v1610 = vsub.f32 1.0, %v1609
  %v1611 = vmul.f32 %v1608, %v1610
  %v1612 = vadd.f32 %v1608, %v1611
  %vm1613 = vweird.f32 %v1607
  %vm1614 = vweird.f32 %v1608
  %vm1615 = vmor %vm1613, %vm1614
  %v1616 = vsel %vm1615, %v1608, %v1612
  %v1617 = vand.u32 2147483647, %v1607
  %vm1618 = vcmp.eq.f32.partialorder %v1617, 8.507059e+37
  %v1619 = vand.u32 %v1607, 2147483648
  %v1620 = vor.u32 1.1754944e-38, %v1619
  %v1621 = vsel %vm1618, %v1620, %v1616
  %v1622 = vmul.f32 1.0, %v1621
  %v1623 = vtanh.pop %v1558
  %v1624 = vtanh.pop %v1584
  %v1625 = vmul.f32 %v1603, %v1501
  %1627 = vrot.lane.b32.xlu0 %v1623, 32
  %v1628 = vpop.permute.xlu0 %1627
  %v1630 = vmul.f32 %v1603, %v1628
  %1632 = vrot.lane.b32.xlu0 %v1630, 32
  %v1633 = vpop.permute.xlu0 %1632
  %v1635 = vadd.f32 %v1625, %v1633
  %v1636 = vtanh.pop %v1635
  %1638 = vrot.lane.b32.xlu0 %v1636, 32
  %v1639 = vpop.permute.xlu0 %1638
  %v1641 = vmul.f32 %v1603, %v1639
  %v1642 = vmul.f32 %v1622, %v1518
  %1644 = vrot.lane.b32.xlu0 %v1624, 32
  %v1645 = vpop.permute.xlu0 %1644
  %v1647 = vmul.f32 %v1622, %v1645
  %1649 = vrot.lane.b32.xlu0 %v1647, 32
  %v1650 = vpop.permute.xlu0 %1649
  %v1652 = vadd.f32 %v1642, %v1650
  %v1653 = vtanh.pop %v1652
  %1655 = vrot.lane.b32.xlu0 %v1653, 32
  %v1656 = vpop.permute.xlu0 %1655
  %v1658 = vmul.f32 %v1622, %v1656
  %1660 = vrot.lane.b32.xlu0 %v1641, 64
  %v1661 = vpop.permute.xlu0 %1660
  %1663 = vst.msk [vmem:[#allocation3 + $0x8] sm:$0xff] %vm176, %v1661
  %1665 = vrot.lane.b32.xlu0 %v1658, 96
  %v1666 = vpop.permute.xlu0 %1665
  %1668 = vst.msk [vmem:[#allocation3 + $0x30] sm:$0xff] %vm306, %v1666
  %v1669 = vld [vmem:[#allocation2 + $0x20] sm:$0xff]
  %v1670 = vsel %vm176, %v1661, 0
  %1672 = vmatpush.msra.mxu0 0.0
  %1673 = vmatpush.msra.mxu0 0.0
  %1674 = vmatpush.msra.mxu0 0.0
  %1675 = vmatpush.msra.mxu0 0.0
  %1676 = vmatpush.msra.mxu0 0.0
  %1677 = vmatpush.msra.mxu0 0.0
  %1678 = vmatpush.msra.mxu0 0.0
  %1679 = vmatpush.msra.mxu0 0.0
  %1680 = vmatpush.msra.mxu0 0.0
  %1681 = vmatpush.msra.mxu0 0.0
  %1682 = vmatpush.msra.mxu0 0.0
  %1683 = vmatpush.msra.mxu0 0.0
  %1684 = vmatpush.msra.mxu0 %v1268
  %1685 = vmatpush.msra.mxu0 %v1266
  %1686 = vmatpush.msra.mxu0 %v1264
  %1687 = vmatpush.msra.mxu0 %v1262
  %1688 = vmatmul.f32.gmra.mxu0 %v1670
  %v1689 = vpop.f32.mrf.mxu0
  %v1690 = vadd.f32 0.0, %v1689
  %1691 = vdwg.mxu0
  %v1692 = vadd.f32 %v1669, %v1690
  %v1693 = vld [vmem:[#allocation2 + $0x58] sm:$0xff]
  %1694 = vrot.lane.b32.xlu0 %v1658, 64
  %v1695 = vpop.permute.xlu0 %1694
  %v1696 = vsel %vm176, %v1695, 0
  %1698 = vmatpush.msra.mxu0 0.0
  %1699 = vmatpush.msra.mxu0 0.0
  %1700 = vmatpush.msra.mxu0 0.0
  %1701 = vmatpush.msra.mxu0 0.0
  %1702 = vmatpush.msra.mxu0 0.0
  %1703 = vmatpush.msra.mxu0 0.0
  %1704 = vmatpush.msra.mxu0 0.0
  %1705 = vmatpush.msra.mxu0 0.0
  %1706 = vmatpush.msra.mxu0 0.0
  %1707 = vmatpush.msra.mxu0 0.0
  %1708 = vmatpush.msra.mxu0 0.0
  %1709 = vmatpush.msra.mxu0 0.0
  %1710 = vmatpush.msra.mxu0 %v1269
  %1711 = vmatpush.msra.mxu0 %v1267
  %1712 = vmatpush.msra.mxu0 %v1265
  %1713 = vmatpush.msra.mxu0 %v1263
  %1714 = vmatmul.f32.gmra.mxu0 %v1696
  %v1715 = vpop.f32.mrf.mxu0
  %v1716 = vadd.f32 0.0, %v1715
  %1717 = vdwg.mxu0
  %v1718 = vadd.f32 %v1693, %v1716
  %v1719 = vxor.u32 %v1692, 2147483648
  %v1720 = vmul.f32 %v1719, 1.442695
  %v1721 = vpow.pop %v1720
  %v1722 = vadd.f32 %v1721, 1.0
  %v1723 = vrcp.pop %v1722
  %v1724 = vmul.f32 %v1722, %v1723
  %v1725 = vsub.f32 1.0, %v1724
  %v1726 = vmul.f32 %v1723, %v1725
  %v1727 = vadd.f32 %v1723, %v1726
  %vm1728 = vweird.f32 %v1722
  %vm1729 = vweird.f32 %v1723
  %vm1730 = vmor %vm1728, %vm1729
  %v1731 = vsel %vm1730, %v1723, %v1727
  %v1732 = vand.u32 2147483647, %v1722
  %vm1733 = vcmp.eq.f32.partialorder %v1732, 8.507059e+37
  %v1734 = vand.u32 %v1722, 2147483648
  %v1735 = vor.u32 1.1754944e-38, %v1734
  %v1736 = vsel %vm1733, %v1735, %v1731
  %v1737 = vmul.f32 1.0, %v1736
  %v1738 = vxor.u32 %v1718, 2147483648
  %v1739 = vmul.f32 %v1738, 1.442695
  %v1740 = vpow.pop %v1739
  %v1741 = vadd.f32 %v1740, 1.0
  %v1742 = vrcp.pop %v1741
  %v1743 = vmul.f32 %v1741, %v1742
  %v1744 = vsub.f32 1.0, %v1743
  %v1745 = vmul.f32 %v1742, %v1744
  %v1746 = vadd.f32 %v1742, %v1745
  %vm1747 = vweird.f32 %v1741
  %vm1748 = vweird.f32 %v1742
  %vm1749 = vmor %vm1747, %vm1748
  %v1750 = vsel %vm1749, %v1742, %v1746
  %v1751 = vand.u32 2147483647, %v1741
  %vm1752 = vcmp.eq.f32.partialorder %v1751, 8.507059e+37
  %v1753 = vand.u32 %v1741, 2147483648
  %v1754 = vor.u32 1.1754944e-38, %v1753
  %v1755 = vsel %vm1752, %v1754, %v1750
  %v1756 = vmul.f32 1.0, %v1755
  %v1757 = vtanh.pop %v1692
  %v1758 = vtanh.pop %v1718
  %v1759 = vmul.f32 %v1737, %v1635
  %1761 = vrot.lane.b32.xlu0 %v1757, 32
  %v1762 = vpop.permute.xlu0 %1761
  %v1764 = vmul.f32 %v1737, %v1762
  %1766 = vrot.lane.b32.xlu0 %v1764, 32
  %v1767 = vpop.permute.xlu0 %1766
  %v1769 = vadd.f32 %v1759, %v1767
  %v1770 = vtanh.pop %v1769
  %1772 = vrot.lane.b32.xlu0 %v1770, 32
  %v1773 = vpop.permute.xlu0 %1772
  %v1775 = vmul.f32 %v1737, %v1773
  %v1776 = vmul.f32 %v1756, %v1652
  %1778 = vrot.lane.b32.xlu0 %v1758, 32
  %v1779 = vpop.permute.xlu0 %1778
  %v1781 = vmul.f32 %v1756, %v1779
  %1783 = vrot.lane.b32.xlu0 %v1781, 32
  %v1784 = vpop.permute.xlu0 %1783
  %v1786 = vadd.f32 %v1776, %v1784
  %v1787 = vtanh.pop %v1786
  %1789 = vrot.lane.b32.xlu0 %v1787, 32
  %v1790 = vpop.permute.xlu0 %1789
  %v1792 = vmul.f32 %v1756, %v1790
  %1794 = vrot.lane.b32.xlu0 %v1775, 64
  %v1795 = vpop.permute.xlu0 %1794
  %1797 = vst.msk [vmem:[#allocation3 + $0x10] sm:$0xff] %vm176, %v1795
  %1799 = vrot.lane.b32.xlu0 %v1792, 96
  %v1800 = vpop.permute.xlu0 %1799
  %1802 = vst.msk [vmem:[#allocation3 + $0x28] sm:$0xff] %vm306, %v1800
  %v1803 = vld [vmem:[#allocation2 + $0x30] sm:$0xff]
  %v1804 = vsel %vm176, %v1795, 0
  %1806 = vmatpush.msra.mxu0 0.0
  %1807 = vmatpush.msra.mxu0 0.0
  %1808 = vmatpush.msra.mxu0 0.0
  %1809 = vmatpush.msra.mxu0 0.0
  %1810 = vmatpush.msra.mxu0 0.0
  %1811 = vmatpush.msra.mxu0 0.0
  %1812 = vmatpush.msra.mxu0 0.0
  %1813 = vmatpush.msra.mxu0 0.0
  %1814 = vmatpush.msra.mxu0 0.0
  %1815 = vmatpush.msra.mxu0 0.0
  %1816 = vmatpush.msra.mxu0 0.0
  %1817 = vmatpush.msra.mxu0 0.0
  %1818 = vmatpush.msra.mxu0 %v1268
  %1819 = vmatpush.msra.mxu0 %v1266
  %1820 = vmatpush.msra.mxu0 %v1264
  %1821 = vmatpush.msra.mxu0 %v1262
  %1822 = vmatmul.f32.gmra.mxu0 %v1804
  %v1823 = vpop.f32.mrf.mxu0
  %v1824 = vadd.f32 0.0, %v1823
  %1825 = vdwg.mxu0
  %v1826 = vadd.f32 %v1803, %v1824
  %v1827 = vld [vmem:[#allocation2 + $0x48] sm:$0xff]
  %1828 = vrot.lane.b32.xlu0 %v1792, 64
  %v1829 = vpop.permute.xlu0 %1828
  %v1830 = vsel %vm176, %v1829, 0
  %1832 = vmatpush.msra.mxu0 0.0
  %1833 = vmatpush.msra.mxu0 0.0
  %1834 = vmatpush.msra.mxu0 0.0
  %1835 = vmatpush.msra.mxu0 0.0
  %1836 = vmatpush.msra.mxu0 0.0
  %1837 = vmatpush.msra.mxu0 0.0
  %1838 = vmatpush.msra.mxu0 0.0
  %1839 = vmatpush.msra.mxu0 0.0
  %1840 = vmatpush.msra.mxu0 0.0
  %1841 = vmatpush.msra.mxu0 0.0
  %1842 = vmatpush.msra.mxu0 0.0
  %1843 = vmatpush.msra.mxu0 0.0
  %1844 = vmatpush.msra.mxu0 %v1269
  %1845 = vmatpush.msra.mxu0 %v1267
  %1846 = vmatpush.msra.mxu0 %v1265
  %1847 = vmatpush.msra.mxu0 %v1263
  %1848 = vmatmul.f32.gmra.mxu0 %v1830
  %v1849 = vpop.f32.mrf.mxu0
  %v1850 = vadd.f32 0.0, %v1849
  %1851 = vdwg.mxu0
  %v1852 = vadd.f32 %v1827, %v1850
  %v1853 = vxor.u32 %v1826, 2147483648
  %v1854 = vmul.f32 %v1853, 1.442695
  %v1855 = vpow.pop %v1854
  %v1856 = vadd.f32 %v1855, 1.0
  %v1857 = vrcp.pop %v1856
  %v1858 = vmul.f32 %v1856, %v1857
  %v1859 = vsub.f32 1.0, %v1858
  %v1860 = vmul.f32 %v1857, %v1859
  %v1861 = vadd.f32 %v1857, %v1860
  %vm1862 = vweird.f32 %v1856
  %vm1863 = vweird.f32 %v1857
  %vm1864 = vmor %vm1862, %vm1863
  %v1865 = vsel %vm1864, %v1857, %v1861
  %v1866 = vand.u32 2147483647, %v1856
  %vm1867 = vcmp.eq.f32.partialorder %v1866, 8.507059e+37
  %v1868 = vand.u32 %v1856, 2147483648
  %v1869 = vor.u32 1.1754944e-38, %v1868
  %v1870 = vsel %vm1867, %v1869, %v1865
  %v1871 = vmul.f32 1.0, %v1870
  %v1872 = vxor.u32 %v1852, 2147483648
  %v1873 = vmul.f32 %v1872, 1.442695
  %v1874 = vpow.pop %v1873
  %v1875 = vadd.f32 %v1874, 1.0
  %v1876 = vrcp.pop %v1875
  %v1877 = vmul.f32 %v1875, %v1876
  %v1878 = vsub.f32 1.0, %v1877
  %v1879 = vmul.f32 %v1876, %v1878
  %v1880 = vadd.f32 %v1876, %v1879
  %vm1881 = vweird.f32 %v1875
  %vm1882 = vweird.f32 %v1876
  %vm1883 = vmor %vm1881, %vm1882
  %v1884 = vsel %vm1883, %v1876, %v1880
  %v1885 = vand.u32 2147483647, %v1875
  %vm1886 = vcmp.eq.f32.partialorder %v1885, 8.507059e+37
  %v1887 = vand.u32 %v1875, 2147483648
  %v1888 = vor.u32 1.1754944e-38, %v1887
  %v1889 = vsel %vm1886, %v1888, %v1884
  %v1890 = vmul.f32 1.0, %v1889
  %v1891 = vtanh.pop %v1826
  %v1892 = vtanh.pop %v1852
  %v1893 = vmul.f32 %v1871, %v1769
  %1895 = vrot.lane.b32.xlu0 %v1891, 32
  %v1896 = vpop.permute.xlu0 %1895
  %v1898 = vmul.f32 %v1871, %v1896
  %1900 = vrot.lane.b32.xlu0 %v1898, 32
  %v1901 = vpop.permute.xlu0 %1900
  %v1903 = vadd.f32 %v1893, %v1901
  %v1904 = vtanh.pop %v1903
  %1906 = vrot.lane.b32.xlu0 %v1904, 32
  %v1907 = vpop.permute.xlu0 %1906
  %v1909 = vmul.f32 %v1871, %v1907
  %v1910 = vmul.f32 %v1890, %v1786
  %1912 = vrot.lane.b32.xlu0 %v1892, 32
  %v1913 = vpop.permute.xlu0 %1912
  %v1915 = vmul.f32 %v1890, %v1913
  %1917 = vrot.lane.b32.xlu0 %v1915, 32
  %v1918 = vpop.permute.xlu0 %1917
  %v1920 = vadd.f32 %v1910, %v1918
  %v1921 = vtanh.pop %v1920
  %1923 = vrot.lane.b32.xlu0 %v1921, 32
  %v1924 = vpop.permute.xlu0 %1923
  %v1926 = vmul.f32 %v1890, %v1924
  %1928 = vrot.lane.b32.xlu0 %v1909, 64
  %v1929 = vpop.permute.xlu0 %1928
  %1931 = vst.msk [vmem:[#allocation3 + $0x18] sm:$0xff] %vm176, %v1929
  %1933 = vrot.lane.b32.xlu0 %v1926, 96
  %v1934 = vpop.permute.xlu0 %1933
  %1936 = vst.msk [vmem:[#allocation3 + $0x20] sm:$0xff] %vm306, %v1934
  %v1937 = vld [vmem:[#allocation2 + $0x40] sm:$0xff]
  %v1938 = vsel %vm176, %v1929, 0
  %1940 = vmatpush.msra.mxu0 0.0
  %1941 = vmatpush.msra.mxu0 0.0
  %1942 = vmatpush.msra.mxu0 0.0
  %1943 = vmatpush.msra.mxu0 0.0
  %1944 = vmatpush.msra.mxu0 0.0
  %1945 = vmatpush.msra.mxu0 0.0
  %1946 = vmatpush.msra.mxu0 0.0
  %1947 = vmatpush.msra.mxu0 0.0
  %1948 = vmatpush.msra.mxu0 0.0
  %1949 = vmatpush.msra.mxu0 0.0
  %1950 = vmatpush.msra.mxu0 0.0
  %1951 = vmatpush.msra.mxu0 0.0
  %1952 = vmatpush.msra.mxu0 %v1268
  %1953 = vmatpush.msra.mxu0 %v1266
  %1954 = vmatpush.msra.mxu0 %v1264
  %1955 = vmatpush.msra.mxu0 %v1262
  %1956 = vmatmul.f32.gmra.mxu0 %v1938
  %v1957 = vpop.f32.mrf.mxu0
  %v1958 = vadd.f32 0.0, %v1957
  %1959 = vdwg.mxu0
  %v1960 = vadd.f32 %v1937, %v1958
  %v1961 = vld [vmem:[#allocation2 + $0x38] sm:$0xff]
  %1962 = vrot.lane.b32.xlu0 %v1926, 64
  %v1963 = vpop.permute.xlu0 %1962
  %v1964 = vsel %vm176, %v1963, 0
  %1966 = vmatpush.msra.mxu0 0.0
  %1967 = vmatpush.msra.mxu0 0.0
  %1968 = vmatpush.msra.mxu0 0.0
  %1969 = vmatpush.msra.mxu0 0.0
  %1970 = vmatpush.msra.mxu0 0.0
  %1971 = vmatpush.msra.mxu0 0.0
  %1972 = vmatpush.msra.mxu0 0.0
  %1973 = vmatpush.msra.mxu0 0.0
  %1974 = vmatpush.msra.mxu0 0.0
  %1975 = vmatpush.msra.mxu0 0.0
  %1976 = vmatpush.msra.mxu0 0.0
  %1977 = vmatpush.msra.mxu0 0.0
  %1978 = vmatpush.msra.mxu0 %v1269
  %1979 = vmatpush.msra.mxu0 %v1267
  %1980 = vmatpush.msra.mxu0 %v1265
  %1981 = vmatpush.msra.mxu0 %v1263
  %1982 = vmatmul.f32.gmra.mxu0 %v1964
  %v1983 = vpop.f32.mrf.mxu0
  %v1984 = vadd.f32 0.0, %v1983
  %1985 = vdwg.mxu0
  %v1986 = vadd.f32 %v1961, %v1984
  %v1987 = vxor.u32 %v1960, 2147483648
  %v1988 = vmul.f32 %v1987, 1.442695
  %v1989 = vpow.pop %v1988
  %v1990 = vadd.f32 %v1989, 1.0
  %v1991 = vrcp.pop %v1990
  %v1992 = vmul.f32 %v1990, %v1991
  %v1993 = vsub.f32 1.0, %v1992
  %v1994 = vmul.f32 %v1991, %v1993
  %v1995 = vadd.f32 %v1991, %v1994
  %vm1996 = vweird.f32 %v1990
  %vm1997 = vweird.f32 %v1991
  %vm1998 = vmor %vm1996, %vm1997
  %v1999 = vsel %vm1998, %v1991, %v1995
  %v2000 = vand.u32 2147483647, %v1990
  %vm2001 = vcmp.eq.f32.partialorder %v2000, 8.507059e+37
  %v2002 = vand.u32 %v1990, 2147483648
  %v2003 = vor.u32 1.1754944e-38, %v2002
  %v2004 = vsel %vm2001, %v2003, %v1999
  %v2005 = vmul.f32 1.0, %v2004
  %v2006 = vxor.u32 %v1986, 2147483648
  %v2007 = vmul.f32 %v2006, 1.442695
  %v2008 = vpow.pop %v2007
  %v2009 = vadd.f32 %v2008, 1.0
  %v2010 = vrcp.pop %v2009
  %v2011 = vmul.f32 %v2009, %v2010
  %v2012 = vsub.f32 1.0, %v2011
  %v2013 = vmul.f32 %v2010, %v2012
  %v2014 = vadd.f32 %v2010, %v2013
  %vm2015 = vweird.f32 %v2009
  %vm2016 = vweird.f32 %v2010
  %vm2017 = vmor %vm2015, %vm2016
  %v2018 = vsel %vm2017, %v2010, %v2014
  %v2019 = vand.u32 2147483647, %v2009
  %vm2020 = vcmp.eq.f32.partialorder %v2019, 8.507059e+37
  %v2021 = vand.u32 %v2009, 2147483648
  %v2022 = vor.u32 1.1754944e-38, %v2021
  %v2023 = vsel %vm2020, %v2022, %v2018
  %v2024 = vmul.f32 1.0, %v2023
  %v2025 = vtanh.pop %v1960
  %v2026 = vtanh.pop %v1986
  %v2027 = vmul.f32 %v2005, %v1903
  %2029 = vrot.lane.b32.xlu0 %v2025, 32
  %v2030 = vpop.permute.xlu0 %2029
  %v2032 = vmul.f32 %v2005, %v2030
  %2034 = vrot.lane.b32.xlu0 %v2032, 32
  %v2035 = vpop.permute.xlu0 %2034
  %v2037 = vadd.f32 %v2027, %v2035
  %v2038 = vtanh.pop %v2037
  %2040 = vrot.lane.b32.xlu0 %v2038, 32
  %v2041 = vpop.permute.xlu0 %2040
  %v2043 = vmul.f32 %v2005, %v2041
  %v2044 = vmul.f32 %v2024, %v1920
  %2046 = vrot.lane.b32.xlu0 %v2026, 32
  %v2047 = vpop.permute.xlu0 %2046
  %v2049 = vmul.f32 %v2024, %v2047
  %2051 = vrot.lane.b32.xlu0 %v2049, 32
  %v2052 = vpop.permute.xlu0 %2051
  %v2054 = vadd.f32 %v2044, %v2052
  %v2055 = vtanh.pop %v2054
  %2057 = vrot.lane.b32.xlu0 %v2055, 32
  %v2058 = vpop.permute.xlu0 %2057
  %v2060 = vmul.f32 %v2024, %v2058
  %2062 = vrot.lane.b32.xlu0 %v2043, 64
  %v2063 = vpop.permute.xlu0 %2062
  %2065 = vst.msk [vmem:[#allocation3 + $0x20] sm:$0xff] %vm176, %v2063
  %2067 = vrot.lane.b32.xlu0 %v2060, 96
  %v2068 = vpop.permute.xlu0 %2067
  %2070 = vst.msk [vmem:[#allocation3 + $0x18] sm:$0xff] %vm306, %v2068
  %v2071 = vld [vmem:[#allocation2 + $0x50] sm:$0xff]
  %v2072 = vsel %vm176, %v2063, 0
  %2074 = vmatpush.msra.mxu0 0.0
  %2075 = vmatpush.msra.mxu0 0.0
  %2076 = vmatpush.msra.mxu0 0.0
  %2077 = vmatpush.msra.mxu0 0.0
  %2078 = vmatpush.msra.mxu0 0.0
  %2079 = vmatpush.msra.mxu0 0.0
  %2080 = vmatpush.msra.mxu0 0.0
  %2081 = vmatpush.msra.mxu0 0.0
  %2082 = vmatpush.msra.mxu0 0.0
  %2083 = vmatpush.msra.mxu0 0.0
  %2084 = vmatpush.msra.mxu0 0.0
  %2085 = vmatpush.msra.mxu0 0.0
  %2086 = vmatpush.msra.mxu0 %v1268
  %2087 = vmatpush.msra.mxu0 %v1266
  %2088 = vmatpush.msra.mxu0 %v1264
  %2089 = vmatpush.msra.mxu0 %v1262
  %2090 = vmatmul.f32.gmra.mxu0 %v2072
  %v2091 = vpop.f32.mrf.mxu0
  %v2092 = vadd.f32 0.0, %v2091
  %2093 = vdwg.mxu0
  %v2094 = vadd.f32 %v2071, %v2092
  %v2095 = vld [vmem:[#allocation2 + $0x28] sm:$0xff]
  %2096 = vrot.lane.b32.xlu0 %v2060, 64
  %v2097 = vpop.permute.xlu0 %2096
  %v2098 = vsel %vm176, %v2097, 0
  %2100 = vmatpush.msra.mxu0 0.0
  %2101 = vmatpush.msra.mxu0 0.0
  %2102 = vmatpush.msra.mxu0 0.0
  %2103 = vmatpush.msra.mxu0 0.0
  %2104 = vmatpush.msra.mxu0 0.0
  %2105 = vmatpush.msra.mxu0 0.0
  %2106 = vmatpush.msra.mxu0 0.0
  %2107 = vmatpush.msra.mxu0 0.0
  %2108 = vmatpush.msra.mxu0 0.0
  %2109 = vmatpush.msra.mxu0 0.0
  %2110 = vmatpush.msra.mxu0 0.0
  %2111 = vmatpush.msra.mxu0 0.0
  %2112 = vmatpush.msra.mxu0 %v1269
  %2113 = vmatpush.msra.mxu0 %v1267
  %2114 = vmatpush.msra.mxu0 %v1265
  %2115 = vmatpush.msra.mxu0 %v1263
  %2116 = vmatmul.f32.gmra.mxu0 %v2098
  %v2117 = vpop.f32.mrf.mxu0
  %v2118 = vadd.f32 0.0, %v2117
  %2119 = vdwg.mxu0
  %v2120 = vadd.f32 %v2095, %v2118
  %v2121 = vxor.u32 %v2094, 2147483648
  %v2122 = vmul.f32 %v2121, 1.442695
  %v2123 = vpow.pop %v2122
  %v2124 = vadd.f32 %v2123, 1.0
  %v2125 = vrcp.pop %v2124
  %v2126 = vmul.f32 %v2124, %v2125
  %v2127 = vsub.f32 1.0, %v2126
  %v2128 = vmul.f32 %v2125, %v2127
  %v2129 = vadd.f32 %v2125, %v2128
  %vm2130 = vweird.f32 %v2124
  %vm2131 = vweird.f32 %v2125
  %vm2132 = vmor %vm2130, %vm2131
  %v2133 = vsel %vm2132, %v2125, %v2129
  %v2134 = vand.u32 2147483647, %v2124
  %vm2135 = vcmp.eq.f32.partialorder %v2134, 8.507059e+37
  %v2136 = vand.u32 %v2124, 2147483648
  %v2137 = vor.u32 1.1754944e-38, %v2136
  %v2138 = vsel %vm2135, %v2137, %v2133
  %v2139 = vmul.f32 1.0, %v2138
  %v2140 = vxor.u32 %v2120, 2147483648
  %v2141 = vmul.f32 %v2140, 1.442695
  %v2142 = vpow.pop %v2141
  %v2143 = vadd.f32 %v2142, 1.0
  %v2144 = vrcp.pop %v2143
  %v2145 = vmul.f32 %v2143, %v2144
  %v2146 = vsub.f32 1.0, %v2145
  %v2147 = vmul.f32 %v2144, %v2146
  %v2148 = vadd.f32 %v2144, %v2147
  %vm2149 = vweird.f32 %v2143
  %vm2150 = vweird.f32 %v2144
  %vm2151 = vmor %vm2149, %vm2150
  %v2152 = vsel %vm2151, %v2144, %v2148
  %v2153 = vand.u32 2147483647, %v2143
  %vm2154 = vcmp.eq.f32.partialorder %v2153, 8.507059e+37
  %v2155 = vand.u32 %v2143, 2147483648
  %v2156 = vor.u32 1.1754944e-38, %v2155
  %v2157 = vsel %vm2154, %v2156, %v2152
  %v2158 = vmul.f32 1.0, %v2157
  %v2159 = vtanh.pop %v2094
  %v2160 = vtanh.pop %v2120
  %v2161 = vmul.f32 %v2139, %v2037
  %2163 = vrot.lane.b32.xlu0 %v2159, 32
  %v2164 = vpop.permute.xlu0 %2163
  %v2166 = vmul.f32 %v2139, %v2164
  %2168 = vrot.lane.b32.xlu0 %v2166, 32
  %v2169 = vpop.permute.xlu0 %2168
  %v2171 = vadd.f32 %v2161, %v2169
  %v2172 = vtanh.pop %v2171
  %2174 = vrot.lane.b32.xlu0 %v2172, 32
  %v2175 = vpop.permute.xlu0 %2174
  %v2177 = vmul.f32 %v2139, %v2175
  %v2178 = vmul.f32 %v2158, %v2054
  %2180 = vrot.lane.b32.xlu0 %v2160, 32
  %v2181 = vpop.permute.xlu0 %2180
  %v2183 = vmul.f32 %v2158, %v2181
  %2185 = vrot.lane.b32.xlu0 %v2183, 32
  %v2186 = vpop.permute.xlu0 %2185
  %v2188 = vadd.f32 %v2178, %v2186
  %v2189 = vtanh.pop %v2188
  %2191 = vrot.lane.b32.xlu0 %v2189, 32
  %v2192 = vpop.permute.xlu0 %2191
  %v2194 = vmul.f32 %v2158, %v2192
  %2196 = vrot.lane.b32.xlu0 %v2177, 64
  %v2197 = vpop.permute.xlu0 %2196
  %2199 = vst.msk [vmem:[#allocation3 + $0x28] sm:$0xff] %vm176, %v2197
  %2201 = vrot.lane.b32.xlu0 %v2194, 96
  %v2202 = vpop.permute.xlu0 %2201
  %2204 = vst.msk [vmem:[#allocation3 + $0x10] sm:$0xff] %vm306, %v2202
  %v2205 = vld [vmem:[#allocation2 + $0x60] sm:$0xff]
  %v2206 = vsel %vm176, %v2197, 0
  %2208 = vmatpush.msra.mxu0 0.0
  %2209 = vmatpush.msra.mxu0 0.0
  %2210 = vmatpush.msra.mxu0 0.0
  %2211 = vmatpush.msra.mxu0 0.0
  %2212 = vmatpush.msra.mxu0 0.0
  %2213 = vmatpush.msra.mxu0 0.0
  %2214 = vmatpush.msra.mxu0 0.0
  %2215 = vmatpush.msra.mxu0 0.0
  %2216 = vmatpush.msra.mxu0 0.0
  %2217 = vmatpush.msra.mxu0 0.0
  %2218 = vmatpush.msra.mxu0 0.0
  %2219 = vmatpush.msra.mxu0 0.0
  %2220 = vmatpush.msra.mxu0 %v1268
  %2221 = vmatpush.msra.mxu0 %v1266
  %2222 = vmatpush.msra.mxu0 %v1264
  %2223 = vmatpush.msra.mxu0 %v1262
  %2224 = vmatmul.f32.gmra.mxu0 %v2206
  %v2225 = vpop.f32.mrf.mxu0
  %v2226 = vadd.f32 0.0, %v2225
  %2227 = vdwg.mxu0
  %v2228 = vadd.f32 %v2205, %v2226
  %v2229 = vld [vmem:[#allocation2 + $0x18] sm:$0xff]
  %2230 = vrot.lane.b32.xlu0 %v2194, 64
  %v2231 = vpop.permute.xlu0 %2230
  %v2232 = vsel %vm176, %v2231, 0
  %2234 = vmatpush.msra.mxu0 0.0
  %2235 = vmatpush.msra.mxu0 0.0
  %2236 = vmatpush.msra.mxu0 0.0
  %2237 = vmatpush.msra.mxu0 0.0
  %2238 = vmatpush.msra.mxu0 0.0
  %2239 = vmatpush.msra.mxu0 0.0
  %2240 = vmatpush.msra.mxu0 0.0
  %2241 = vmatpush.msra.mxu0 0.0
  %2242 = vmatpush.msra.mxu0 0.0
  %2243 = vmatpush.msra.mxu0 0.0
  %2244 = vmatpush.msra.mxu0 0.0
  %2245 = vmatpush.msra.mxu0 0.0
  %2246 = vmatpush.msra.mxu0 %v1269
  %2247 = vmatpush.msra.mxu0 %v1267
  %2248 = vmatpush.msra.mxu0 %v1265
  %2249 = vmatpush.msra.mxu0 %v1263
  %2250 = vmatmul.f32.gmra.mxu0 %v2232
  %v2251 = vpop.f32.mrf.mxu0
  %v2252 = vadd.f32 0.0, %v2251
  %2253 = vdwg.mxu0
  %v2254 = vadd.f32 %v2229, %v2252
  %v2255 = vxor.u32 %v2228, 2147483648
  %v2256 = vmul.f32 %v2255, 1.442695
  %v2257 = vpow.pop %v2256
  %v2258 = vadd.f32 %v2257, 1.0
  %v2259 = vrcp.pop %v2258
  %v2260 = vmul.f32 %v2258, %v2259
  %v2261 = vsub.f32 1.0, %v2260
  %v2262 = vmul.f32 %v2259, %v2261
  %v2263 = vadd.f32 %v2259, %v2262
  %vm2264 = vweird.f32 %v2258
  %vm2265 = vweird.f32 %v2259
  %vm2266 = vmor %vm2264, %vm2265
  %v2267 = vsel %vm2266, %v2259, %v2263
  %v2268 = vand.u32 2147483647, %v2258
  %vm2269 = vcmp.eq.f32.partialorder %v2268, 8.507059e+37
  %v2270 = vand.u32 %v2258, 2147483648
  %v2271 = vor.u32 1.1754944e-38, %v2270
  %v2272 = vsel %vm2269, %v2271, %v2267
  %v2273 = vmul.f32 1.0, %v2272
  %v2274 = vxor.u32 %v2254, 2147483648
  %v2275 = vmul.f32 %v2274, 1.442695
  %v2276 = vpow.pop %v2275
  %v2277 = vadd.f32 %v2276, 1.0
  %v2278 = vrcp.pop %v2277
  %v2279 = vmul.f32 %v2277, %v2278
  %v2280 = vsub.f32 1.0, %v2279
  %v2281 = vmul.f32 %v2278, %v2280
  %v2282 = vadd.f32 %v2278, %v2281
  %vm2283 = vweird.f32 %v2277
  %vm2284 = vweird.f32 %v2278
  %vm2285 = vmor %vm2283, %vm2284
  %v2286 = vsel %vm2285, %v2278, %v2282
  %v2287 = vand.u32 2147483647, %v2277
  %vm2288 = vcmp.eq.f32.partialorder %v2287, 8.507059e+37
  %v2289 = vand.u32 %v2277, 2147483648
  %v2290 = vor.u32 1.1754944e-38, %v2289
  %v2291 = vsel %vm2288, %v2290, %v2286
  %v2292 = vmul.f32 1.0, %v2291
  %v2293 = vtanh.pop %v2228
  %v2294 = vtanh.pop %v2254
  %v2295 = vmul.f32 %v2273, %v2171
  %2297 = vrot.lane.b32.xlu0 %v2293, 32
  %v2298 = vpop.permute.xlu0 %2297
  %v2300 = vmul.f32 %v2273, %v2298
  %2302 = vrot.lane.b32.xlu0 %v2300, 32
  %v2303 = vpop.permute.xlu0 %2302
  %v2305 = vadd.f32 %v2295, %v2303
  %v2306 = vtanh.pop %v2305
  %2308 = vrot.lane.b32.xlu0 %v2306, 32
  %v2309 = vpop.permute.xlu0 %2308
  %v2311 = vmul.f32 %v2273, %v2309
  %v2312 = vmul.f32 %v2292, %v2188
  %2314 = vrot.lane.b32.xlu0 %v2294, 32
  %v2315 = vpop.permute.xlu0 %2314
  %v2317 = vmul.f32 %v2292, %v2315
  %2319 = vrot.lane.b32.xlu0 %v2317, 32
  %v2320 = vpop.permute.xlu0 %2319
  %v2322 = vadd.f32 %v2312, %v2320
  %v2323 = vtanh.pop %v2322
  %2325 = vrot.lane.b32.xlu0 %v2323, 32
  %v2326 = vpop.permute.xlu0 %2325
  %v2328 = vmul.f32 %v2292, %v2326
  %2330 = vrot.lane.b32.xlu0 %v2311, 64
  %v2331 = vpop.permute.xlu0 %2330
  %2333 = vst.msk [vmem:[#allocation3 + $0x30] sm:$0xff] %vm176, %v2331
  %2335 = vrot.lane.b32.xlu0 %v2328, 96
  %v2336 = vpop.permute.xlu0 %2335
  %2338 = vst.msk [vmem:[#allocation3 + $0x8] sm:$0xff] %vm306, %v2336
  %v2339 = vld [vmem:[#allocation2 + $0x70] sm:$0xff]
  %v2340 = vsel %vm176, %v2331, 0
  %2342 = vmatpush.msra.mxu0 0.0
  %2343 = vmatpush.msra.mxu0 0.0
  %2344 = vmatpush.msra.mxu0 0.0
  %2345 = vmatpush.msra.mxu0 0.0
  %2346 = vmatpush.msra.mxu0 0.0
  %2347 = vmatpush.msra.mxu0 0.0
  %2348 = vmatpush.msra.mxu0 0.0
  %2349 = vmatpush.msra.mxu0 0.0
  %2350 = vmatpush.msra.mxu0 0.0
  %2351 = vmatpush.msra.mxu0 0.0
  %2352 = vmatpush.msra.mxu0 0.0
  %2353 = vmatpush.msra.mxu0 0.0
  %2354 = vmatpush.msra.mxu0 %v1268
  %2355 = vmatpush.msra.mxu0 %v1266
  %2356 = vmatpush.msra.mxu0 %v1264
  %2357 = vmatpush.msra.mxu0 %v1262
  %2358 = vmatmul.f32.gmra.mxu0 %v2340
  %v2359 = vpop.f32.mrf.mxu0
  %v2360 = vadd.f32 0.0, %v2359
  %2361 = vdwg.mxu0
  %v2362 = vadd.f32 %v2339, %v2360
  %v2363 = vld [vmem:[#allocation2 + $0x8] sm:$0xff]
  %2364 = vrot.lane.b32.xlu0 %v2328, 64
  %v2365 = vpop.permute.xlu0 %2364
  %v2366 = vsel %vm176, %v2365, 0
  %2368 = vmatpush.msra.mxu0 0.0
  %2369 = vmatpush.msra.mxu0 0.0
  %2370 = vmatpush.msra.mxu0 0.0
  %2371 = vmatpush.msra.mxu0 0.0
  %2372 = vmatpush.msra.mxu0 0.0
  %2373 = vmatpush.msra.mxu0 0.0
  %2374 = vmatpush.msra.mxu0 0.0
  %2375 = vmatpush.msra.mxu0 0.0
  %2376 = vmatpush.msra.mxu0 0.0
  %2377 = vmatpush.msra.mxu0 0.0
  %2378 = vmatpush.msra.mxu0 0.0
  %2379 = vmatpush.msra.mxu0 0.0
  %2380 = vmatpush.msra.mxu0 %v1269
  %2381 = vmatpush.msra.mxu0 %v1267
  %2382 = vmatpush.msra.mxu0 %v1265
  %2383 = vmatpush.msra.mxu0 %v1263
  %2384 = vmatmul.f32.gmra.mxu0 %v2366
  %v2385 = vpop.f32.mrf.mxu0
  %v2386 = vadd.f32 0.0, %v2385
  %2387 = vdwg.mxu0
  %v2388 = vadd.f32 %v2363, %v2386
  %v2389 = vxor.u32 %v2362, 2147483648
  %v2390 = vmul.f32 %v2389, 1.442695
  %v2391 = vpow.pop %v2390
  %v2392 = vadd.f32 %v2391, 1.0
  %v2393 = vrcp.pop %v2392
  %v2394 = vmul.f32 %v2392, %v2393
  %v2395 = vsub.f32 1.0, %v2394
  %v2396 = vmul.f32 %v2393, %v2395
  %v2397 = vadd.f32 %v2393, %v2396
  %vm2398 = vweird.f32 %v2392
  %vm2399 = vweird.f32 %v2393
  %vm2400 = vmor %vm2398, %vm2399
  %v2401 = vsel %vm2400, %v2393, %v2397
  %v2402 = vand.u32 2147483647, %v2392
  %vm2403 = vcmp.eq.f32.partialorder %v2402, 8.507059e+37
  %v2404 = vand.u32 %v2392, 2147483648
  %v2405 = vor.u32 1.1754944e-38, %v2404
  %v2406 = vsel %vm2403, %v2405, %v2401
  %v2407 = vmul.f32 1.0, %v2406
  %v2408 = vxor.u32 %v2388, 2147483648
  %v2409 = vmul.f32 %v2408, 1.442695
  %v2410 = vpow.pop %v2409
  %v2411 = vadd.f32 %v2410, 1.0
  %v2412 = vrcp.pop %v2411
  %v2413 = vmul.f32 %v2411, %v2412
  %v2414 = vsub.f32 1.0, %v2413
  %v2415 = vmul.f32 %v2412, %v2414
  %v2416 = vadd.f32 %v2412, %v2415
  %vm2417 = vweird.f32 %v2411
  %vm2418 = vweird.f32 %v2412
  %vm2419 = vmor %vm2417, %vm2418
  %v2420 = vsel %vm2419, %v2412, %v2416
  %v2421 = vand.u32 2147483647, %v2411
  %vm2422 = vcmp.eq.f32.partialorder %v2421, 8.507059e+37
  %v2423 = vand.u32 %v2411, 2147483648
  %v2424 = vor.u32 1.1754944e-38, %v2423
  %v2425 = vsel %vm2422, %v2424, %v2420
  %v2426 = vmul.f32 1.0, %v2425
  %v2427 = vtanh.pop %v2362
  %v2428 = vtanh.pop %v2388
  %v2429 = vmul.f32 %v2407, %v2305
  %2431 = vrot.lane.b32.xlu0 %v2427, 32
  %v2432 = vpop.permute.xlu0 %2431
  %v2434 = vmul.f32 %v2407, %v2432
  %2436 = vrot.lane.b32.xlu0 %v2434, 32
  %v2437 = vpop.permute.xlu0 %2436
  %v2439 = vadd.f32 %v2429, %v2437
  %v2440 = vtanh.pop %v2439
  %2442 = vrot.lane.b32.xlu0 %v2440, 32
  %v2443 = vpop.permute.xlu0 %2442
  %v2445 = vmul.f32 %v2407, %v2443
  %v2446 = vmul.f32 %v2426, %v2322
  %2448 = vrot.lane.b32.xlu0 %v2428, 32
  %v2449 = vpop.permute.xlu0 %2448
  %v2451 = vmul.f32 %v2426, %v2449
  %2453 = vrot.lane.b32.xlu0 %v2451, 32
  %v2454 = vpop.permute.xlu0 %2453
  %v2456 = vadd.f32 %v2446, %v2454
  %v2457 = vtanh.pop %v2456
  %2459 = vrot.lane.b32.xlu0 %v2457, 32
  %v2460 = vpop.permute.xlu0 %2459
  %v2462 = vmul.f32 %v2426, %v2460
  %2464 = vrot.lane.b32.xlu0 %v2445, 64
  %v2465 = vpop.permute.xlu0 %2464
  %2467 = vst.msk [vmem:[#allocation3 + $0x38] sm:$0xff] %vm176, %v2465
  %2469 = vrot.lane.b32.xlu0 %v2462, 96
  %v2470 = vpop.permute.xlu0 %2469
  %2472 = vst.msk [vmem:[#allocation3] sm:$0xff] %vm306, %v2470
  %2473 = vst.msk [vmem:[%s7] sm:$0xff] %vm176, %v2465
  %2474 = vst.msk [vmem:[%s7] sm:$0xff] %vm306, %v2470
  // Predicated region
  $region30: #{dae_forward.2} parent=0 // pred_check
    _
  $region31: #{dae_forward.2} parent=0 // pred_check_branch
    %2476 = sbr.rel (0) target = $region33
  $region32: #{dae_forward.2} parent=0 // pred_region
    _
  $region33: #{dae_forward.2} parent=0 // pred_fallthru
    _
  // Predicated region
  $region34: #{dae_forward.2} parent=0 // pred_check
    _
  $region35: #{dae_forward.2} parent=0 // pred_check_branch
    %2478 = sbr.rel (0) target = $region37
  $region36: #{dae_forward.2} parent=0 // pred_region
    _
  $region37: #{dae_forward.2} parent=0 // pred_fallthru
    _

</llo_original>
